<compile_context>
chip_gen: v6e
topology: v6e:2x2x1
jax: 0.10.0
libtpu: 0.0.40
codegen_flags: <defaults>
</compile_context>

<pallas_src>
import functools

import jax
import jax.numpy as jnp
from jax.experimental import pallas as pl
from jax.experimental.pallas import tpu as pltpu

# ---- module hyper-parameters (from __init__) --------------------------------
IN_CH = 6          # IMU_CNN input_channels
HIDDEN = 256       # IMU_CNN hidden_size
FE_OUT = 786       # IMU_CNN output_size
L1_OUT = 512       # linear1 output
KSIZE = 3          # assumed conv kernel size
PAD = 1

# ---- TPU-friendly padded sizes ----------------------------------------------
C_PAD = 8          # pad 6 channels -> 8 (sublane multiple)
FE_PAD = 1024      # pad 786 -> whole 256-wide MXU tiles (v6e/v7x)
HEAD_PAD = 128     # pad [w2|w3] output lanes to 128 (lane-dense matmul)
OUT_PAD = 128      # packed output block width: [z | kl_row | zeros]


def _round_up(n, m):
    return ((n + m - 1) // m) * m


def _vae_encoder_kernel(
    x_ref,      # (Bblk, Lp, C_PAD)    bf16   time-padded input windows
    wc_ref,     # (K*C_PAD, HIDDEN)    bf16   fused conv taps
    bc_ref,     # (1, HIDDEN)          f32
    wfe_ref,    # (HIDDEN, FE_PAD)     bf16   (1/L GAP scale folded in)
    bfe_ref,    # (1, FE_PAD)          f32
    w1_ref,     # (FE_PAD, L1_OUT)     bf16
    b1_ref,     # (1, L1_OUT)          f32
    w23_ref,    # (L1_OUT, HEAD_PAD)   bf16   [w2 | w3 | 0]
    b23_ref,    # (1, HEAD_PAD)        f32
    eps_ref,    # (Bblk, latent)       f32    N(0,1) samples
    out_ref,    # (Bblk, OUT_PAD)      f32    [z | kl_row | 0]
    *, latent_dims,
):
    Bblk, Lp, _ = x_ref.shape
    L = Lp - 2 * PAD
    lat = latent_dims

    # --- IMU_CNN (assumed): Conv1d(6->256,k=3,pad=1) + ReLU + GAP + Linear ---
    x = x_ref[...]                                               # (Bblk, Lp, C_PAD) bf16
    # im2col once: (Bblk, L, K*C_PAD) -> (Bblk*L, K*C_PAD); single MXU push.
    xcol = jnp.concatenate([x[:, dk:dk + L, :] for dk in range(KSIZE)], axis=-1)
    lhs = xcol.reshape(Bblk * L, KSIZE * C_PAD)
    h = jnp.dot(lhs, wc_ref[...], preferred_element_type=jnp.float32)
    h = jnp.maximum(h + bc_ref[...], 0.0)                        # (Bblk*L, HIDDEN) f32
    # GAP over time: sum only (1/L folded into wfe).
    hsum = jnp.sum(h.reshape(Bblk, L, HIDDEN), axis=1)           # (Bblk, HIDDEN) f32
    feat = jnp.dot(hsum.astype(jnp.bfloat16), wfe_ref[...],
                   preferred_element_type=jnp.float32) + bfe_ref[...]   # (Bblk, FE_PAD)

    # --- VAE head (reference semantics) ---
    x1 = jnp.maximum(
        jnp.dot(feat.astype(jnp.bfloat16), w1_ref[...],
                preferred_element_type=jnp.float32) + b1_ref[...], 0.0)  # (Bblk, 512)
    mulog = jnp.dot(x1.astype(jnp.bfloat16), w23_ref[...],
                    preferred_element_type=jnp.float32) + b23_ref[...]   # (Bblk, 128)
    mu = mulog[:, :lat]
    logsig = mulog[:, lat:2 * lat]          # reuse pre-exp logits (== log(sigma))
    sigma = jnp.exp(logsig)
    z = mu + sigma * eps_ref[...]                                # (Bblk, lat) f32
    kl_row = jnp.sum(sigma * sigma + mu * mu - logsig - 0.5,
                     axis=-1, keepdims=True)                     # (Bblk, 1)

    # Lane-dense packed output: one unmasked (Bblk, 128) store.
    tail = jnp.zeros((Bblk, OUT_PAD - lat - 1), jnp.float32)
    out_ref[...] = jnp.concatenate([z, kl_row, tail], axis=-1)


def init_params(key, latent_dims):
    """Deterministic synthetic parameters (torch-module shapes; conv taps as (K,C,H))."""
    ks = jax.random.split(key, 10)
    s = 0.05
    return dict(
        wc=jax.random.normal(ks[0], (KSIZE, IN_CH, HIDDEN), jnp.float32) * s,
        bc=jax.random.normal(ks[1], (HIDDEN,), jnp.float32) * s,
        wfe=jax.random.normal(ks[2], (HIDDEN, FE_OUT), jnp.float32) * s,
        bfe=jax.random.normal(ks[3], (FE_OUT,), jnp.float32) * s,
        w1=jax.random.normal(ks[4], (FE_OUT, L1_OUT), jnp.float32) * s,
        b1=jax.random.normal(ks[5], (L1_OUT,), jnp.float32) * s,
        w2=jax.random.normal(ks[6], (L1_OUT, latent_dims), jnp.float32) * s,
        b2=jax.random.normal(ks[7], (latent_dims,), jnp.float32) * s,
        w3=jax.random.normal(ks[8], (L1_OUT, latent_dims), jnp.float32) * s,
        b3=jax.random.normal(ks[9], (latent_dims,), jnp.float32) * s,
    )


def prepare_params(p, seq_len):
    """One-time pad / fuse / cast: bf16 weights + f32 biases, HBM-resident.

    The 1/seq_len global-average-pool scale is folded into wfe here, so the
    kernel's GAP is a pure sum.
    """
    latent = p["w2"].shape[1]
    assert 2 * latent <= HEAD_PAD and 2 * latent + 1 <= OUT_PAD
    wc = jnp.pad(p["wc"], ((0, 0), (0, C_PAD - IN_CH), (0, 0)))
    wc = wc.reshape(KSIZE * C_PAD, HIDDEN).astype(jnp.bfloat16)
    wfe = jnp.pad(p["wfe"], ((0, 0), (0, FE_PAD - FE_OUT))) * (1.0 / seq_len)
    w23 = jnp.concatenate([p["w2"], p["w3"]], axis=1)
    b23 = jnp.concatenate([p["b2"], p["b3"]])
    return dict(
        wc=wc,
        bc=p["bc"].reshape(1, HIDDEN).astype(jnp.float32),
        wfe=wfe.astype(jnp.bfloat16),
        bfe=jnp.pad(p["bfe"], (0, FE_PAD - FE_OUT)).reshape(1, FE_PAD).astype(jnp.float32),
        w1=jnp.pad(p["w1"], ((0, FE_PAD - FE_OUT), (0, 0))).astype(jnp.bfloat16),
        b1=p["b1"].reshape(1, L1_OUT).astype(jnp.float32),
        w23=jnp.pad(w23, ((0, 0), (0, HEAD_PAD - 2 * latent))).astype(jnp.bfloat16),
        b23=jnp.pad(b23, (0, HEAD_PAD - 2 * latent)).reshape(1, HEAD_PAD).astype(jnp.float32),
    )


@functools.partial(jax.jit, static_argnames=("latent_dims", "bblk"))
def variational_encoder(x, prep, eps, *, latent_dims, bblk=128):
    """x: (B, 6, L) IMU window -> (z: (B, latent_dims), kl: scalar)."""
    B, C, L = x.shape
    Lp = L + 2 * PAD

    # Batch block: multiple of 8, capped so tiny test batches don't over-pad.
    # For real batches on v7x pick bblk such that B_pad/Bblk is a multiple of 2
    # so both TensorCores get equal work under the "parallel" grid axis.
    Bblk = min(bblk, _round_up(B, 8))
    B_pad = _round_up(B, Bblk)

    # NCL -> (B_pad, L+2, C_PAD) bf16, zero-padded in batch, time (conv pad)
    # and channels.
    xp = jnp.pad(x.astype(jnp.float32), ((0, B_pad - B), (0, 0), (PAD, PAD)))
    xp = jnp.transpose(xp, (0, 2, 1))
    xp = jnp.pad(xp, ((0, 0), (0, 0), (0, C_PAD - C))).astype(jnp.bfloat16)
    eps_p = jnp.pad(eps.astype(jnp.float32), ((0, B_pad - B), (0, 0)))

    const2 = lambda b: (0, 0)

    in_specs = [
        pl.BlockSpec((Bblk, Lp, C_PAD), lambda b: (b, 0, 0)),       # x (per batch block)
        pl.BlockSpec((KSIZE * C_PAD, HIDDEN), const2),              # wc (VMEM-resident)
        pl.BlockSpec((1, HIDDEN), const2),                          # bc
        pl.BlockSpec((HIDDEN, FE_PAD), const2),                     # wfe
        pl.BlockSpec((1, FE_PAD), const2),                          # bfe
        pl.BlockSpec((FE_PAD, L1_OUT), const2),                     # w1
        pl.BlockSpec((1, L1_OUT), const2),                          # b1
        pl.BlockSpec((L1_OUT, HEAD_PAD), const2),                   # w23
        pl.BlockSpec((1, HEAD_PAD), const2),                        # b23
        pl.BlockSpec((Bblk, latent_dims), lambda b: (b, 0)),        # eps
    ]
    out_specs = pl.BlockSpec((Bblk, OUT_PAD), lambda b: (b, 0))     # packed [z|kl|0]

    kernel = functools.partial(_vae_encoder_kernel, latent_dims=latent_dims)

    out = pl.pallas_call(
        kernel,
        grid=(B_pad // Bblk,),
        in_specs=in_specs,
        out_specs=out_specs,
        out_shape=jax.ShapeDtypeStruct((B_pad, OUT_PAD), jnp.float32),
        compiler_params=pltpu.CompilerParams(
            dimension_semantics=("parallel",),
            # Resident footprint is only a few MB (bf16 weights + activations);
            # this limit just leaves ample, explicit headroom on every chip.
            vmem_limit_bytes=32 * 1024 * 1024,
        ),
    )(xp, prep["wc"], prep["bc"], prep["wfe"], prep["bfe"],
      prep["w1"], prep["b1"], prep["w23"], prep["b23"], eps_p)

    # Padded batch rows are sliced away here, so they never touch z or the KL.
    z = out[:B, :latent_dims]
    kl = jnp.sum(out[:B, latent_dims])
    return z, kl


def _reference(x, prep, eps, latent_dims):
    """Pure-JAX reference mirroring the kernel's padding / bf16 cast points."""
    B, C, L = x.shape
    xp = jnp.pad(x.astype(jnp.float32), ((0, 0), (0, 0), (PAD, PAD)))
    xp = jnp.transpose(xp, (0, 2, 1))
    xp = jnp.pad(xp, ((0, 0), (0, 0), (0, C_PAD - C)))
    xp = xp.astype(jnp.bfloat16).astype(jnp.float32)
    wc = prep["wc"].astype(jnp.float32).reshape(KSIZE, C_PAD, HIDDEN)
    h = sum(jnp.einsum("blc,co->blo", xp[:, dk:dk + L, :], wc[dk])
            for dk in range(KSIZE))
    h = jnp.maximum(h + prep["bc"][None], 0.0)
    hs = jnp.sum(h, axis=1)                       # 1/L is folded into prep["wfe"]
    feat = (hs.astype(jnp.bfloat16).astype(jnp.float32)
            @ prep["wfe"].astype(jnp.float32) + prep["bfe"][0])
    x1 = jnp.maximum(feat.astype(jnp.bfloat16).astype(jnp.float32)
                     @ prep["w1"].astype(jnp.float32) + prep["b1"][0], 0.0)
    mulog = (x1.astype(jnp.bfloat16).astype(jnp.float32)
             @ prep["w23"].astype(jnp.float32) + prep["b23"][0])
    mu = mulog[:, :latent_dims]
    logsig = mulog[:, latent_dims:2 * latent_dims]
    sigma = jnp.exp(logsig)
    z = mu + sigma * eps
    kl = jnp.sum(sigma ** 2 + mu ** 2 - logsig - 0.5)
    return z, kl


if __name__ == "__main__":
    latent_dims = 8
    B, C, L = 2, IN_CH, 16   # small IMU window: batch=2, 6 channels, 16 timesteps

    key = jax.random.PRNGKey(0)
    k_x, k_p, k_eps = jax.random.split(key, 3)

    x = jax.random.normal(k_x, (B, C, L), jnp.float32)
    params = init_params(k_p, latent_dims)
    prep = prepare_params(params, seq_len=L)           # bf16 / padded / fused weights
    eps = jax.random.normal(k_eps, (B, latent_dims), jnp.float32)

    z, kl = variational_encoder(x, prep, eps, latent_dims=latent_dims)
    jax.block_until_ready((z, kl))

    z_ref, kl_ref = _reference(x, prep, eps, latent_dims)
    assert z.shape == (B, latent_dims)
    assert jnp.isfinite(z).all() and jnp.isfinite(kl)
    assert jnp.allclose(z, z_ref, rtol=1e-2, atol=1e-2)
    assert jnp.allclose(kl, kl_ref, rtol=1e-2, atol=1e-2)
    print("KERNEL_OK")
</pallas_src>

<mosaic_0001>
module attributes {stable_mosaic.version = 11 : i64} {
  func.func @_vae_encoder_kernel(%arg0: i32, %arg1: memref<8x18x8xbf16, #tpu.memory_space<vmem>>, %arg2: memref<24x256xbf16, #tpu.memory_space<vmem>>, %arg3: memref<1x256xf32, #tpu.memory_space<vmem>>, %arg4: memref<256x1024xbf16, #tpu.memory_space<vmem>>, %arg5: memref<1x1024xf32, #tpu.memory_space<vmem>>, %arg6: memref<1024x512xbf16, #tpu.memory_space<vmem>>, %arg7: memref<1x512xf32, #tpu.memory_space<vmem>>, %arg8: memref<512x128xbf16, #tpu.memory_space<vmem>>, %arg9: memref<1x128xf32, #tpu.memory_space<vmem>>, %arg10: memref<8x8xf32, #tpu.memory_space<vmem>>, %arg11: memref<8x128xf32, #tpu.memory_space<vmem>>) attributes {dimension_semantics = [#tpu.dimension_semantics<parallel>], iteration_bounds = array<i64: 1>, scalar_prefetch = 0 : i64, scratch_operands = 0 : i64, tpu.core_type = #tpu.core_type<tc>, window_params = [{transform_indices = @transform_0, window_bounds = array<i64: 8, 18, 8>}, {pipeline_mode = #tpu.pipeline_mode<synchronous>, transform_indices = @transform_1, window_bounds = array<i64: 24, 256>}, {pipeline_mode = #tpu.pipeline_mode<synchronous>, transform_indices = @transform_2, window_bounds = array<i64: 1, 256>}, {pipeline_mode = #tpu.pipeline_mode<synchronous>, transform_indices = @transform_3, window_bounds = array<i64: 256, 1024>}, {pipeline_mode = #tpu.pipeline_mode<synchronous>, transform_indices = @transform_4, window_bounds = array<i64: 1, 1024>}, {pipeline_mode = #tpu.pipeline_mode<synchronous>, transform_indices = @transform_5, window_bounds = array<i64: 1024, 512>}, {pipeline_mode = #tpu.pipeline_mode<synchronous>, transform_indices = @transform_6, window_bounds = array<i64: 1, 512>}, {pipeline_mode = #tpu.pipeline_mode<synchronous>, transform_indices = @transform_7, window_bounds = array<i64: 512, 128>}, {pipeline_mode = #tpu.pipeline_mode<synchronous>, transform_indices = @transform_8, window_bounds = array<i64: 1, 128>}, {transform_indices = @transform_9, window_bounds = array<i64: 8, 8>}, {transform_indices = @transform_10, window_bounds = array<i64: 8, 128>}]} {
    %c0 = arith.constant 0 : index
    %c0_0 = arith.constant 0 : index
    %c0_1 = arith.constant 0 : index
    %0 = vector.load %arg1[%c0, %c0_0, %c0_1] : memref<8x18x8xbf16, #tpu.memory_space<vmem>>, vector<8x18x8xbf16>
    %1 = vector.extract_strided_slice %0 {offsets = [0, 0, 0], sizes = [8, 16, 8], strides = [1, 1, 1]} : vector<8x18x8xbf16> to vector<8x16x8xbf16>
    %2 = vector.extract_strided_slice %0 {offsets = [0, 1, 0], sizes = [8, 16, 8], strides = [1, 1, 1]} : vector<8x18x8xbf16> to vector<8x16x8xbf16>
    %3 = vector.extract_strided_slice %0 {offsets = [0, 2, 0], sizes = [8, 16, 8], strides = [1, 1, 1]} : vector<8x18x8xbf16> to vector<8x16x8xbf16>
    %4 = tpu.concatenate %1, %2, %3 in 2 : vector<8x16x8xbf16>, vector<8x16x8xbf16>, vector<8x16x8xbf16> -> vector<8x16x24xbf16>
    %5 = vector.shape_cast %4 : vector<8x16x24xbf16> to vector<128x24xbf16>
    %c0_2 = arith.constant 0 : index
    %c0_3 = arith.constant 0 : index
    %6 = vector.load %arg2[%c0_2, %c0_3] : memref<24x256xbf16, #tpu.memory_space<vmem>>, vector<24x256xbf16>
    %cst = arith.constant dense<0.000000e+00> : vector<128x256xf32>
    %7 = tpu.matmul %5, %6, %cst {dimension_numbers = #tpu.dot_dimension_numbers<[1], [0], [0], [1], [0, 0, 1, 1], [], []>} : vector<128x24xbf16>, vector<24x256xbf16>, vector<128x256xf32> -> vector<128x256xf32>
    %c0_4 = arith.constant 0 : index
    %c0_5 = arith.constant 0 : index
    %8 = vector.load %arg3[%c0_4, %c0_5] : memref<1x256xf32, #tpu.memory_space<vmem>>, vector<1x256xf32>
    %9 = vector.broadcast %8 : vector<1x256xf32> to vector<128x256xf32>
    %10 = arith.addf %7, %9 : vector<128x256xf32>
    %cst_6 = arith.constant 0.000000e+00 : f32
    %11 = vector.broadcast %cst_6 : f32 to vector<128x256xf32>
    %12 = arith.maximumf %10, %11 : vector<128x256xf32>
    %13 = vector.shape_cast %12 : vector<128x256xf32> to vector<8x16x256xf32>
    %cst_7 = arith.constant dense<0.000000e+00> : vector<8x256xf32>
    %14 = vector.multi_reduction <add>, %13, %cst_7 [1] : vector<8x16x256xf32> to vector<8x256xf32>
    %15 = arith.truncf %14 : vector<8x256xf32> to vector<8x256xbf16>
    %c0_8 = arith.constant 0 : index
    %c0_9 = arith.constant 0 : index
    %16 = vector.load %arg4[%c0_8, %c0_9] : memref<256x1024xbf16, #tpu.memory_space<vmem>>, vector<256x1024xbf16>
    %cst_10 = arith.constant dense<0.000000e+00> : vector<8x1024xf32>
    %17 = tpu.matmul %15, %16, %cst_10 {dimension_numbers = #tpu.dot_dimension_numbers<[1], [0], [0], [1], [0, 0, 1, 1], [], []>} : vector<8x256xbf16>, vector<256x1024xbf16>, vector<8x1024xf32> -> vector<8x1024xf32>
    %c0_11 = arith.constant 0 : index
    %c0_12 = arith.constant 0 : index
    %18 = vector.load %arg5[%c0_11, %c0_12] : memref<1x1024xf32, #tpu.memory_space<vmem>>, vector<1x1024xf32>
    %19 = vector.broadcast %18 : vector<1x1024xf32> to vector<8x1024xf32>
    %20 = arith.addf %17, %19 : vector<8x1024xf32>
    %21 = arith.truncf %20 : vector<8x1024xf32> to vector<8x1024xbf16>
    %c0_13 = arith.constant 0 : index
    %c0_14 = arith.constant 0 : index
    %22 = vector.load %arg6[%c0_13, %c0_14] : memref<1024x512xbf16, #tpu.memory_space<vmem>>, vector<1024x512xbf16>
    %cst_15 = arith.constant dense<0.000000e+00> : vector<8x512xf32>
    %23 = tpu.matmul %21, %22, %cst_15 {dimension_numbers = #tpu.dot_dimension_numbers<[1], [0], [0], [1], [0, 0, 1, 1], [], []>} : vector<8x1024xbf16>, vector<1024x512xbf16>, vector<8x512xf32> -> vector<8x512xf32>
    %c0_16 = arith.constant 0 : index
    %c0_17 = arith.constant 0 : index
    %24 = vector.load %arg7[%c0_16, %c0_17] : memref<1x512xf32, #tpu.memory_space<vmem>>, vector<1x512xf32>
    %25 = vector.broadcast %24 : vector<1x512xf32> to vector<8x512xf32>
    %26 = arith.addf %23, %25 : vector<8x512xf32>
    %cst_18 = arith.constant 0.000000e+00 : f32
    %27 = vector.broadcast %cst_18 : f32 to vector<8x512xf32>
    %28 = arith.maximumf %26, %27 : vector<8x512xf32>
    %29 = arith.truncf %28 : vector<8x512xf32> to vector<8x512xbf16>
    %c0_19 = arith.constant 0 : index
    %c0_20 = arith.constant 0 : index
    %30 = vector.load %arg8[%c0_19, %c0_20] : memref<512x128xbf16, #tpu.memory_space<vmem>>, vector<512x128xbf16>
    %cst_21 = arith.constant dense<0.000000e+00> : vector<8x128xf32>
    %31 = tpu.matmul %29, %30, %cst_21 {dimension_numbers = #tpu.dot_dimension_numbers<[1], [0], [0], [1], [0, 0, 1, 1], [], []>} : vector<8x512xbf16>, vector<512x128xbf16>, vector<8x128xf32> -> vector<8x128xf32>
    %c0_22 = arith.constant 0 : index
    %c0_23 = arith.constant 0 : index
    %32 = vector.load %arg9[%c0_22, %c0_23] : memref<1x128xf32, #tpu.memory_space<vmem>>, vector<1x128xf32>
    %33 = vector.broadcast %32 : vector<1x128xf32> to vector<8x128xf32>
    %34 = arith.addf %31, %33 : vector<8x128xf32>
    %35 = vector.extract_strided_slice %34 {offsets = [0, 0], sizes = [8, 8], strides = [1, 1]} : vector<8x128xf32> to vector<8x8xf32>
    %36 = vector.extract_strided_slice %34 {offsets = [0, 8], sizes = [8, 8], strides = [1, 1]} : vector<8x128xf32> to vector<8x8xf32>
    %37 = math.exp %36 : vector<8x8xf32>
    %c0_24 = arith.constant 0 : index
    %c0_25 = arith.constant 0 : index
    %38 = vector.load %arg10[%c0_24, %c0_25] : memref<8x8xf32, #tpu.memory_space<vmem>>, vector<8x8xf32>
    %39 = arith.mulf %37, %38 : vector<8x8xf32>
    %40 = arith.addf %35, %39 : vector<8x8xf32>
    %41 = arith.mulf %37, %37 : vector<8x8xf32>
    %42 = arith.mulf %35, %35 : vector<8x8xf32>
    %43 = arith.addf %41, %42 : vector<8x8xf32>
    %44 = arith.subf %43, %36 : vector<8x8xf32>
    %cst_26 = arith.constant 5.000000e-01 : f32
    %45 = vector.broadcast %cst_26 : f32 to vector<8x8xf32>
    %46 = arith.subf %44, %45 : vector<8x8xf32>
    %cst_27 = arith.constant dense<0.000000e+00> : vector<8xf32>
    %47 = vector.multi_reduction <add>, %46, %cst_27 [1] : vector<8x8xf32> to vector<8xf32>
    %48 = vector.shape_cast %47 : vector<8xf32> to vector<8x1xf32>
    %cst_28 = arith.constant 0.000000e+00 : f32
    %49 = vector.broadcast %cst_28 : f32 to vector<8x119xf32>
    %50 = tpu.concatenate %40, %48, %49 in 1 : vector<8x8xf32>, vector<8x1xf32>, vector<8x119xf32> -> vector<8x128xf32>
    %c0_29 = arith.constant 0 : index
    %c0_30 = arith.constant 0 : index
    %51 = vector.load %arg11[%c0_29, %c0_30] : memref<8x128xf32, #tpu.memory_space<vmem>>, vector<8x128xf32>
    tpu.vector_store %arg11[%c0_29, %c0_30], %50 {strides = array<i32>} : memref<8x128xf32, #tpu.memory_space<vmem>>, vector<8x128xf32>,
    return
  }
  func.func @transform_0(%arg0: i32) -> (i32, i32, i32) {
    %c0_i32 = arith.constant 0 : i32
    %c0_i32_0 = arith.constant 0 : i32
    %c0_i32_1 = arith.constant 0 : i32
    return %arg0, %c0_i32, %c0_i32_0 : i32, i32, i32
  }
  func.func @transform_1(%arg0: i32) -> (i32, i32) {
    %c0_i32 = arith.constant 0 : i32
    %c0_i32_0 = arith.constant 0 : i32
    %c0_i32_1 = arith.constant 0 : i32
    return %c0_i32, %c0_i32_0 : i32, i32
  }
  func.func @transform_2(%arg0: i32) -> (i32, i32) {
    %c0_i32 = arith.constant 0 : i32
    %c0_i32_0 = arith.constant 0 : i32
    %c0_i32_1 = arith.constant 0 : i32
    return %c0_i32, %c0_i32_0 : i32, i32
  }
  func.func @transform_3(%arg0: i32) -> (i32, i32) {
    %c0_i32 = arith.constant 0 : i32
    %c0_i32_0 = arith.constant 0 : i32
    %c0_i32_1 = arith.constant 0 : i32
    return %c0_i32, %c0_i32_0 : i32, i32
  }
  func.func @transform_4(%arg0: i32) -> (i32, i32) {
    %c0_i32 = arith.constant 0 : i32
    %c0_i32_0 = arith.constant 0 : i32
    %c0_i32_1 = arith.constant 0 : i32
    return %c0_i32, %c0_i32_0 : i32, i32
  }
  func.func @transform_5(%arg0: i32) -> (i32, i32) {
    %c0_i32 = arith.constant 0 : i32
    %c0_i32_0 = arith.constant 0 : i32
    %c0_i32_1 = arith.constant 0 : i32
    return %c0_i32, %c0_i32_0 : i32, i32
  }
  func.func @transform_6(%arg0: i32) -> (i32, i32) {
    %c0_i32 = arith.constant 0 : i32
    %c0_i32_0 = arith.constant 0 : i32
    %c0_i32_1 = arith.constant 0 : i32
    return %c0_i32, %c0_i32_0 : i32, i32
  }
  func.func @transform_7(%arg0: i32) -> (i32, i32) {
    %c0_i32 = arith.constant 0 : i32
    %c0_i32_0 = arith.constant 0 : i32
    %c0_i32_1 = arith.constant 0 : i32
    return %c0_i32, %c0_i32_0 : i32, i32
  }
  func.func @transform_8(%arg0: i32) -> (i32, i32) {
    %c0_i32 = arith.constant 0 : i32
    %c0_i32_0 = arith.constant 0 : i32
    %c0_i32_1 = arith.constant 0 : i32
    return %c0_i32, %c0_i32_0 : i32, i32
  }
  func.func @transform_9(%arg0: i32) -> (i32, i32) {
    %c0_i32 = arith.constant 0 : i32
    %c0_i32_0 = arith.constant 0 : i32
    return %arg0, %c0_i32 : i32, i32
  }
  func.func @transform_10(%arg0: i32) -> (i32, i32) {
    %c0_i32 = arith.constant 0 : i32
    %c0_i32_0 = arith.constant 0 : i32
    return %arg0, %c0_i32 : i32, i32
  }
}

</mosaic_0001>

<llo_original>
// kernel: variational_encoder.1
$region0: #{variational_encoder.1}
  #allocation0 [shape = 'u32[]', space=smem, size = 0x4, offset = 0x4, fixed_abs, tag = 'smem constant byte address 0x4 - core index']
  #allocation1 [shape = 'u32[144,128]{1,0:T(1,128)}', space=vmem, size = 0x12000, scoped, tag = 'internal scratch']
  %s0 = inlined_call_operand.vmem [shape: bf16[8,18,8], index: 0, kind: input, shape index: {}]
  %s1 = inlined_call_operand.vmem [shape: bf16[24,256], index: 1, kind: input, shape index: {}]
  %s2 = inlined_call_operand.vmem [shape: f32[1,256], index: 2, kind: input, shape index: {}]
  %s3 = inlined_call_operand.hbm [shape: bf16[256,1024], index: 3, kind: input, shape index: {}]
  %s4 = inlined_call_operand.vmem [shape: f32[1,1024], index: 4, kind: input, shape index: {}]
  %s5 = inlined_call_operand.hbm [shape: bf16[1024,512], index: 5, kind: input, shape index: {}]
  %s6 = inlined_call_operand.vmem [shape: f32[1,512], index: 6, kind: input, shape index: {}]
  %s7 = inlined_call_operand.vmem [shape: bf16[512,128], index: 7, kind: input, shape index: {}]
  %s8 = inlined_call_operand.vmem [shape: f32[1,128], index: 8, kind: input, shape index: {}]
  %s9 = inlined_call_operand.vmem [shape: f32[8,8], index: 9, kind: input, shape index: {}]
  %s10 = inlined_call_operand.vmem [shape: f32[8,128], index: 10, kind: output, shape index: {}]
  %s11 = sld [smem:[#allocation0]]
  $region58: #{variational_encoder.1} parent=0
    _
  %s13 = ssub.s32 1, %s11
  %s14 = scalar_select 0, %s13, %s11
  $region1: #{variational_encoder.1} parent=0
    #allocation2 [shape = 'u8[524288]{0}', space=vmem, size = 0x80000, scoped, tag = 'input window, operand 3, single buffered']
    #allocation3 [shape = 's32[1]{0}', space=sflag, size = 0x4, scoped, tag = 'scoped memory for variational_encoder.1']
    #allocation4 [shape = 'u8[1048576]{0}', space=vmem, size = 0x100000, scoped, tag = 'input window, operand 5, single buffered']
    #allocation5 [shape = 's32[1]{0}', space=sflag, size = 0x4, scoped, tag = 'scoped memory for variational_encoder.1']
    %15 = vsyncpa [#allocation3], 0
    %16 = vsyncpa [#allocation5], 0
    // Predicated region
    $region2: #{variational_encoder.1} parent=1 // pred_check
      _
    $region3: #{variational_encoder.1} parent=1 // pred_check_branch
      %18 = sbr.rel (0) target = $region5
    $region4: #{variational_encoder.1} parent=1 // pred_region
      _
    $region5: #{variational_encoder.1} parent=1 // pred_fallthru
      _
    // Predicated region
    $region6: #{variational_encoder.1} parent=1 // pred_check
      _
    $region7: #{variational_encoder.1} parent=1 // pred_check_branch
      %20 = sbr.rel (0) target = $region9
    $region8: #{variational_encoder.1} parent=1 // pred_region
      _
    $region9: #{variational_encoder.1} parent=1 // pred_fallthru
      _
    // Predicated region
    $region10: #{variational_encoder.1} parent=1 // pred_check
      _
    $region11: #{variational_encoder.1} parent=1 // pred_check_branch
      %22 = sbr.rel (0) target = $region13
    $region12: #{variational_encoder.1} parent=1 // pred_region
      _
    $region13: #{variational_encoder.1} parent=1 // pred_fallthru
      _
    // Predicated region
    $region14: #{variational_encoder.1} parent=1 // pred_check
      _
    $region15: #{variational_encoder.1} parent=1 // pred_check_branch
      %24 = sbr.rel (0) target = $region17
    $region16: #{variational_encoder.1} parent=1 // pred_region
      %s26 = ssub.s32 16384, 16384
      %27 = vsyncadd [#allocation3], %s26
      %s28 = sshll.u32 [#allocation2], 4
      %s29 = int_to_ptr.vmem [resolvable:$true] %s28
      %34 = dma.hbm_to_vmem [thread:$0]  %s3, 16384, %s29, [#allocation3], 512, 512, 32
    $region17: #{variational_encoder.1} parent=1 // pred_fallthru
      _
    // Predicated region
    $region18: #{variational_encoder.1} parent=1 // pred_check
      _
    $region19: #{variational_encoder.1} parent=1 // pred_check_branch
      %36 = sbr.rel (0) target = $region21
    $region20: #{variational_encoder.1} parent=1 // pred_region
      _
    $region21: #{variational_encoder.1} parent=1 // pred_fallthru
      _
    // Predicated region
    $region22: #{variational_encoder.1} parent=1 // pred_check
      _
    $region23: #{variational_encoder.1} parent=1 // pred_check_branch
      %38 = sbr.rel (0) target = $region25
    $region24: #{variational_encoder.1} parent=1 // pred_region
      %s40 = ssub.s32 32768, 32768
      %41 = vsyncadd [#allocation5], %s40
      %s42 = sshll.u32 [#allocation4], 4
      %s43 = int_to_ptr.vmem [resolvable:$true] %s42
      %48 = dma.hbm_to_vmem [thread:$0]  %s5, 32768, %s43, [#allocation5], 256, 256, 16
    $region25: #{variational_encoder.1} parent=1 // pred_fallthru
      _
    // Predicated region
    $region26: #{variational_encoder.1} parent=1 // pred_check
      _
    $region27: #{variational_encoder.1} parent=1 // pred_check_branch
      %50 = sbr.rel (0) target = $region29
    $region28: #{variational_encoder.1} parent=1 // pred_region
      _
    $region29: #{variational_encoder.1} parent=1 // pred_fallthru
      _
    // Predicated region
    $region30: #{variational_encoder.1} parent=1 // pred_check
      _
    $region31: #{variational_encoder.1} parent=1 // pred_check_branch
      %52 = sbr.rel (0) target = $region33
    $region32: #{variational_encoder.1} parent=1 // pred_region
      _
    $region33: #{variational_encoder.1} parent=1 // pred_fallthru
      _
    // Predicated region
    $region34: #{variational_encoder.1} parent=1 // pred_check
      _
    $region35: #{variational_encoder.1} parent=1 // pred_check_branch
      %54 = sbr.rel (0) target = $region37
    $region36: #{variational_encoder.1} parent=1 // pred_region
      _
    $region37: #{variational_encoder.1} parent=1 // pred_fallthru
      _
    // Predicated region
    $region38: #{variational_encoder.1} parent=1 // pred_check
      _
    $region39: #{variational_encoder.1} parent=1 // pred_check_branch
      %56 = sbr.rel (0) target = $region41
    $region40: #{variational_encoder.1} parent=1 // pred_region
      _
    $region41: #{variational_encoder.1} parent=1 // pred_fallthru
      _
    // Predicated region
    $region42: #{variational_encoder.1} parent=1 // pred_check
      _
    $region43: #{variational_encoder.1} parent=1 // pred_check_branch
      %58 = sbr.rel (0) target = $region45
    $region44: #{variational_encoder.1} parent=1 // pred_region
      %59 = dma.done [#allocation3], 16384
    $region45: #{variational_encoder.1} parent=1 // pred_fallthru
      _
    // Predicated region
    $region46: #{variational_encoder.1} parent=1 // pred_check
      _
    $region47: #{variational_encoder.1} parent=1 // pred_check_branch
      %61 = sbr.rel (0) target = $region49
    $region48: #{variational_encoder.1} parent=1 // pred_region
      %62 = dma.done [#allocation5], 32768
    $region49: #{variational_encoder.1} parent=1 // pred_fallthru
      _
    %v64 = vld [vmem:[%s0] sm:$0xf]
    %v65 = vld [vmem:[%s0 + $0x4] sm:$0xf]
    %v66 = vld [vmem:[%s0 + $0x8] sm:$0x1]
    %v67 = vld [vmem:[%s0 + $0xc] sm:$0xf]
    %v68 = vld [vmem:[%s0 + $0x10] sm:$0xf]
    %v69 = vld [vmem:[%s0 + $0x14] sm:$0x1]
    %v70 = vld [vmem:[%s0 + $0x18] sm:$0xf]
    %v71 = vld [vmem:[%s0 + $0x1c] sm:$0xf]
    %v72 = vld [vmem:[%s0 + $0x20] sm:$0x1]
    %v73 = vld [vmem:[%s0 + $0x24] sm:$0xf]
    %v74 = vld [vmem:[%s0 + $0x28] sm:$0xf]
    %v75 = vld [vmem:[%s0 + $0x2c] sm:$0x1]
    %v76 = vld [vmem:[%s0 + $0x30] sm:$0xf]
    %v77 = vld [vmem:[%s0 + $0x34] sm:$0xf]
    %v78 = vld [vmem:[%s0 + $0x38] sm:$0x1]
    %v79 = vld [vmem:[%s0 + $0x3c] sm:$0xf]
    %v80 = vld [vmem:[%s0 + $0x40] sm:$0xf]
    %v81 = vld [vmem:[%s0 + $0x44] sm:$0x1]
    %v82 = vld [vmem:[%s0 + $0x48] sm:$0xf]
    %v83 = vld [vmem:[%s0 + $0x4c] sm:$0xf]
    %v84 = vld [vmem:[%s0 + $0x50] sm:$0x1]
    %v85 = vld [vmem:[%s0 + $0x54] sm:$0xf]
    %v86 = vld [vmem:[%s0 + $0x58] sm:$0xf]
    %v87 = vld [vmem:[%s0 + $0x5c] sm:$0x1]
    %v104 = vunpack.c.l.b16 %v64
    %v105 = vunpack.c.l.b16 %v65
    %v106 = vunpack.c.l.b16 %v67
    %v107 = vunpack.c.l.b16 %v68
    %v108 = vunpack.c.l.b16 %v70
    %v109 = vunpack.c.l.b16 %v71
    %v110 = vunpack.c.l.b16 %v73
    %v111 = vunpack.c.l.b16 %v74
    %v112 = vunpack.c.l.b16 %v76
    %v113 = vunpack.c.l.b16 %v77
    %v114 = vunpack.c.l.b16 %v79
    %v115 = vunpack.c.l.b16 %v80
    %v116 = vunpack.c.l.b16 %v82
    %v117 = vunpack.c.l.b16 %v83
    %v118 = vunpack.c.l.b16 %v85
    %v119 = vunpack.c.l.b16 %v86
    %v120 = vpack.c.b16 %v105, %v104
    %v121 = vpack.c.b16 %v107, %v106
    %v122 = vpack.c.b16 %v109, %v108
    %v123 = vpack.c.b16 %v111, %v110
    %v124 = vpack.c.b16 %v113, %v112
    %v125 = vpack.c.b16 %v115, %v114
    %v126 = vpack.c.b16 %v117, %v116
    %v127 = vpack.c.b16 %v119, %v118
    %v136 = vunpack.c.l.b16 %v66
    %v137 = vunpack.c.l.b16 %v69
    %v138 = vunpack.c.l.b16 %v72
    %v139 = vunpack.c.l.b16 %v75
    %v140 = vunpack.c.l.b16 %v78
    %v141 = vunpack.c.l.b16 %v81
    %v142 = vunpack.c.l.b16 %v84
    %v143 = vunpack.c.l.b16 %v87
    %v144 = vpack.c.b16 %v136, %v136
    %v145 = vpack.c.b16 %v137, %v137
    %v146 = vpack.c.b16 %v138, %v138
    %v147 = vpack.c.b16 %v139, %v139
    %v148 = vpack.c.b16 %v140, %v140
    %v149 = vpack.c.b16 %v141, %v141
    %v150 = vpack.c.b16 %v142, %v142
    %v151 = vpack.c.b16 %v143, %v143
    %vm152 = vsmask.f32 7424
    %v154 = vshrl.u32 %v120, 16
    %v156 = vshll.u32 %v120, 16
    %v158 = vrot.slane %v156, 1
    %v159 = vor.u32 %v154, %v158
    %v161 = vshll.u32 %v144, 16
    %v163 = vrot.slane %v161, 1
    %v164 = vsel %vm152, %v159, %v163
    %v166 = vshrl.u32 %v121, 16
    %v168 = vshll.u32 %v121, 16
    %v170 = vrot.slane %v168, 1
    %v171 = vor.u32 %v166, %v170
    %v173 = vshll.u32 %v145, 16
    %v175 = vrot.slane %v173, 1
    %v176 = vsel %vm152, %v171, %v175
    %v178 = vshrl.u32 %v122, 16
    %v180 = vshll.u32 %v122, 16
    %v182 = vrot.slane %v180, 1
    %v183 = vor.u32 %v178, %v182
    %v185 = vshll.u32 %v146, 16
    %v187 = vrot.slane %v185, 1
    %v188 = vsel %vm152, %v183, %v187
    %v190 = vshrl.u32 %v123, 16
    %v192 = vshll.u32 %v123, 16
    %v194 = vrot.slane %v192, 1
    %v195 = vor.u32 %v190, %v194
    %v197 = vshll.u32 %v147, 16
    %v199 = vrot.slane %v197, 1
    %v200 = vsel %vm152, %v195, %v199
    %v202 = vshrl.u32 %v124, 16
    %v204 = vshll.u32 %v124, 16
    %v206 = vrot.slane %v204, 1
    %v207 = vor.u32 %v202, %v206
    %v209 = vshll.u32 %v148, 16
    %v211 = vrot.slane %v209, 1
    %v212 = vsel %vm152, %v207, %v211
    %v214 = vshrl.u32 %v125, 16
    %v216 = vshll.u32 %v125, 16
    %v218 = vrot.slane %v216, 1
    %v219 = vor.u32 %v214, %v218
    %v221 = vshll.u32 %v149, 16
    %v223 = vrot.slane %v221, 1
    %v224 = vsel %vm152, %v219, %v223
    %v226 = vshrl.u32 %v126, 16
    %v228 = vshll.u32 %v126, 16
    %v230 = vrot.slane %v228, 1
    %v231 = vor.u32 %v226, %v230
    %v233 = vshll.u32 %v150, 16
    %v235 = vrot.slane %v233, 1
    %v236 = vsel %vm152, %v231, %v235
    %v238 = vshrl.u32 %v127, 16
    %v240 = vshll.u32 %v127, 16
    %v242 = vrot.slane %v240, 1
    %v243 = vor.u32 %v238, %v242
    %v245 = vshll.u32 %v151, 16
    %v247 = vrot.slane %v245, 1
    %v248 = vsel %vm152, %v243, %v247
    %249 = vrot.lane.b32.xlu0 %v164, 8
    %v250 = vpop.permute.xlu0 %249
    %251 = vrot.lane.b32.xlu0 %v176, 8
    %v252 = vpop.permute.xlu0 %251
    %253 = vrot.lane.b32.xlu0 %v188, 8
    %v254 = vpop.permute.xlu0 %253
    %255 = vrot.lane.b32.xlu0 %v200, 8
    %v256 = vpop.permute.xlu0 %255
    %257 = vrot.lane.b32.xlu0 %v212, 8
    %v258 = vpop.permute.xlu0 %257
    %259 = vrot.lane.b32.xlu0 %v224, 8
    %v260 = vpop.permute.xlu0 %259
    %261 = vrot.lane.b32.xlu0 %v236, 8
    %v262 = vpop.permute.xlu0 %261
    %263 = vrot.lane.b32.xlu0 %v248, 8
    %v264 = vpop.permute.xlu0 %263
    %vm265 = vcmask 1046528
    %v266 = vrot.slane %v120, 1
    %v267 = vrot.slane %v144, 1
    %v268 = vsel %vm265, %v266, %v267
    %v269 = vrot.slane %v121, 1
    %v270 = vrot.slane %v145, 1
    %v271 = vsel %vm265, %v269, %v270
    %v272 = vrot.slane %v122, 1
    %v273 = vrot.slane %v146, 1
    %v274 = vsel %vm265, %v272, %v273
    %v275 = vrot.slane %v123, 1
    %v276 = vrot.slane %v147, 1
    %v277 = vsel %vm265, %v275, %v276
    %v278 = vrot.slane %v124, 1
    %v279 = vrot.slane %v148, 1
    %v280 = vsel %vm265, %v278, %v279
    %v281 = vrot.slane %v125, 1
    %v282 = vrot.slane %v149, 1
    %v283 = vsel %vm265, %v281, %v282
    %v284 = vrot.slane %v126, 1
    %v285 = vrot.slane %v150, 1
    %v286 = vsel %vm265, %v284, %v285
    %v287 = vrot.slane %v127, 1
    %v288 = vrot.slane %v151, 1
    %v289 = vsel %vm265, %v287, %v288
    %290 = vrot.lane.b32.xlu0 %v268, 16
    %v291 = vpop.permute.xlu0 %290
    %292 = vrot.lane.b32.xlu0 %v271, 16
    %v293 = vpop.permute.xlu0 %292
    %294 = vrot.lane.b32.xlu0 %v274, 16
    %v295 = vpop.permute.xlu0 %294
    %296 = vrot.lane.b32.xlu0 %v277, 16
    %v297 = vpop.permute.xlu0 %296
    %298 = vrot.lane.b32.xlu0 %v280, 16
    %v299 = vpop.permute.xlu0 %298
    %300 = vrot.lane.b32.xlu0 %v283, 16
    %v301 = vpop.permute.xlu0 %300
    %302 = vrot.lane.b32.xlu0 %v286, 16
    %v303 = vpop.permute.xlu0 %302
    %304 = vrot.lane.b32.xlu0 %v289, 16
    %v305 = vpop.permute.xlu0 %304
    %vm306 = vcmask 64512
    %v308 = vsel %vm306, %v120, %v250
    %v310 = vsel %vm306, %v121, %v252
    %v312 = vsel %vm306, %v122, %v254
    %v314 = vsel %vm306, %v123, %v256
    %v316 = vsel %vm306, %v124, %v258
    %v318 = vsel %vm306, %v125, %v260
    %v320 = vsel %vm306, %v126, %v262
    %v322 = vsel %vm306, %v127, %v264
    %vm323 = vcmask 130048
    %v325 = vsel %vm323, %v308, %v291
    %v327 = vsel %vm323, %v310, %v293
    %v329 = vsel %vm323, %v312, %v295
    %v331 = vsel %vm323, %v314, %v297
    %v333 = vsel %vm323, %v316, %v299
    %v335 = vsel %vm323, %v318, %v301
    %v337 = vsel %vm323, %v320, %v303
    %v339 = vsel %vm323, %v322, %v305
    %v340 = vld [vmem:[%s1] sm:$0xff]
    %v341 = vld [vmem:[%s1 + $0x8] sm:$0xff]
    %v342 = vld [vmem:[%s1 + $0x10] sm:$0xff]
    %v343 = vld [vmem:[%s2] sm:$0x3]
    %v345 = vlaneseq
    %v346 = vshrl.u32 %v345, 7
    %v347 = vsub.s32 0, %v346
    %v348 = vrot.slane %v343, %v347
    %v349 = vlaneseq
    %v350 = vshrl.u32 %v349, 7
    %v351 = vsub.s32 1, %v350
    %v352 = vrot.slane %v343, %v351
    %v358 = vunpack.c.l.b16 %v340
    %v359 = vunpack.c.h.b16 %v340
    %v360 = vunpack.c.l.b16 %v341
    %v361 = vunpack.c.h.b16 %v341
    %v362 = vunpack.c.l.b16 %v342
    %v363 = vunpack.c.h.b16 %v342
    %v364 = vpack.c.b16 %v360, %v358
    %v365 = vpack.c.b16 %v361, %v359
    %v366 = vpack.c.b16 %v362, %v362
    %v367 = vpack.c.b16 %v363, %v363
    %vm370 = vcmask 195584
    %v371 = vsel %vm370, %v325, 0
    %v373 = vsel %vm370, %v327, 0
    %v375 = vsel %vm370, %v329, 0
    %v377 = vsel %vm370, %v331, 0
    %v379 = vsel %vm370, %v333, 0
    %v381 = vsel %vm370, %v335, 0
    %v383 = vsel %vm370, %v337, 0
    %v385 = vsel %vm370, %v339, 0
    %vm387 = vcmask 1043456
    %v389 = vsel %vm387, %v366, 0
    %v392 = vsel %vm387, %v367, 0
    %394 = vmatprep.subr.bf16.mxu0 0
    %395 = vmatpush1.bf16.msra.mxu0 0
    %396 = vmatprep.subr.bf16.mxu0 0
    %397 = vmatpush1.bf16.msra.mxu0 0
    %398 = vmatprep.subr.bf16.mxu0 0
    %399 = vmatpush1.bf16.msra.mxu0 0
    %400 = vmatprep.subr.bf16.mxu0 0
    %401 = vmatpush1.bf16.msra.mxu0 0
    %402 = vmatprep.subr.bf16.mxu0 0
    %403 = vmatpush1.bf16.msra.mxu0 0
    %404 = vmatprep.subr.bf16.mxu0 0
    %405 = vmatpush1.bf16.msra.mxu0 0
    %406 = vmatprep.subr.bf16.mxu0 %v392
    %407 = vmatpush1.bf16.msra.mxu0 %v389
    %408 = vmatprep.subr.bf16.mxu0 %v365
    %409 = vmatpush1.bf16.msra.mxu0 %v364
    %410 = vmatprep.subr.bf16.mxu0 0
    %411 = vmatpush2.bf16.msra.mxu0 0
    %412 = vmatprep.subr.bf16.mxu0 0
    %413 = vmatpush2.bf16.msra.mxu0 0
    %414 = vmatprep.subr.bf16.mxu0 0
    %415 = vmatpush2.bf16.msra.mxu0 0
    %416 = vmatprep.subr.bf16.mxu0 0
    %417 = vmatpush2.bf16.msra.mxu0 0
    %418 = vmatprep.subr.bf16.mxu0 0
    %419 = vmatpush2.bf16.msra.mxu0 0
    %420 = vmatprep.subr.bf16.mxu0 0
    %421 = vmatpush2.bf16.msra.mxu0 0
    %422 = vmatprep.subr.bf16.mxu0 0
    %423 = vmatpush2.bf16.msra.mxu0 0
    %424 = vmatprep.subr.bf16.mxu0 0
    %425 = vmatpush2.bf16.msra.mxu0 0
    %426 = vmatprep.mubr.bf16.mxu0 0
    %427 = vmatmul.mubr.bf16.gmra.mxu0 %v371
    %v428 = vpop.f32.mrf.mxu0
    %v429 = vadd.f32 %v348, %v428
    %v430 = vpop.f32.mrf.mxu0
    %v431 = vadd.f32 %v352, %v430
    %v432 = vpop.f32.mrf.mxu0
    %v433 = vadd.f32 %v348, %v432
    %v434 = vpop.f32.mrf.mxu0
    %v435 = vadd.f32 %v352, %v434
    %436 = vmatprep.mubr.bf16.mxu0 0
    %437 = vmatmul.mubr.bf16.gmra.mxu0 %v373
    %v438 = vpop.f32.mrf.mxu0
    %v439 = vadd.f32 %v348, %v438
    %v440 = vpop.f32.mrf.mxu0
    %v441 = vadd.f32 %v352, %v440
    %v442 = vpop.f32.mrf.mxu0
    %v443 = vadd.f32 %v348, %v442
    %v444 = vpop.f32.mrf.mxu0
    %v445 = vadd.f32 %v352, %v444
    %446 = vmatprep.mubr.bf16.mxu0 0
    %447 = vmatmul.mubr.bf16.gmra.mxu0 %v375
    %v448 = vpop.f32.mrf.mxu0
    %v449 = vadd.f32 %v348, %v448
    %v450 = vpop.f32.mrf.mxu0
    %v451 = vadd.f32 %v352, %v450
    %v452 = vpop.f32.mrf.mxu0
    %v453 = vadd.f32 %v348, %v452
    %v454 = vpop.f32.mrf.mxu0
    %v455 = vadd.f32 %v352, %v454
    %456 = vmatprep.mubr.bf16.mxu0 0
    %457 = vmatmul.mubr.bf16.gmra.mxu0 %v377
    %v458 = vpop.f32.mrf.mxu0
    %v459 = vadd.f32 %v348, %v458
    %v460 = vpop.f32.mrf.mxu0
    %v461 = vadd.f32 %v352, %v460
    %v462 = vpop.f32.mrf.mxu0
    %v463 = vadd.f32 %v348, %v462
    %v464 = vpop.f32.mrf.mxu0
    %v465 = vadd.f32 %v352, %v464
    %466 = vmatprep.mubr.bf16.mxu0 0
    %467 = vmatmul.mubr.bf16.gmra.mxu0 %v379
    %v468 = vpop.f32.mrf.mxu0
    %v469 = vadd.f32 %v348, %v468
    %v470 = vpop.f32.mrf.mxu0
    %v471 = vadd.f32 %v352, %v470
    %v472 = vpop.f32.mrf.mxu0
    %v473 = vadd.f32 %v348, %v472
    %v474 = vpop.f32.mrf.mxu0
    %v475 = vadd.f32 %v352, %v474
    %476 = vmatprep.mubr.bf16.mxu0 0
    %477 = vmatmul.mubr.bf16.gmra.mxu0 %v381
    %v478 = vpop.f32.mrf.mxu0
    %v479 = vadd.f32 %v348, %v478
    %v480 = vpop.f32.mrf.mxu0
    %v481 = vadd.f32 %v352, %v480
    %v482 = vpop.f32.mrf.mxu0
    %v483 = vadd.f32 %v348, %v482
    %v484 = vpop.f32.mrf.mxu0
    %v485 = vadd.f32 %v352, %v484
    %486 = vmatprep.mubr.bf16.mxu0 0
    %487 = vmatmul.mubr.bf16.gmra.mxu0 %v383
    %v488 = vpop.f32.mrf.mxu0
    %v489 = vadd.f32 %v348, %v488
    %v490 = vpop.f32.mrf.mxu0
    %v491 = vadd.f32 %v352, %v490
    %v492 = vpop.f32.mrf.mxu0
    %v493 = vadd.f32 %v348, %v492
    %v494 = vpop.f32.mrf.mxu0
    %v495 = vadd.f32 %v352, %v494
    %496 = vmatprep.mubr.bf16.mxu0 0
    %497 = vmatmul.mubr.bf16.gmra.mxu0 %v385
    %v498 = vpop.f32.mrf.mxu0
    %v499 = vadd.f32 %v348, %v498
    %v500 = vpop.f32.mrf.mxu0
    %v501 = vadd.f32 %v352, %v500
    %v502 = vpop.f32.mrf.mxu0
    %v503 = vadd.f32 %v348, %v502
    %v504 = vpop.f32.mrf.mxu0
    %v505 = vadd.f32 %v352, %v504
    %506 = vdwg.mxu0
    %v507 = vmax.f32 %v429, 0.0
    %v508 = vmax.f32 %v431, 0.0
    %v509 = vmax.f32 %v433, 0.0
    %v510 = vmax.f32 %v435, 0.0
    %v511 = vmax.f32 %v439, 0.0
    %v512 = vmax.f32 %v441, 0.0
    %v513 = vmax.f32 %v443, 0.0
    %v514 = vmax.f32 %v445, 0.0
    %v515 = vmax.f32 %v449, 0.0
    %v516 = vmax.f32 %v451, 0.0
    %v517 = vmax.f32 %v453, 0.0
    %v518 = vmax.f32 %v455, 0.0
    %v519 = vmax.f32 %v459, 0.0
    %v520 = vmax.f32 %v461, 0.0
    %v521 = vmax.f32 %v463, 0.0
    %v522 = vmax.f32 %v465, 0.0
    %v523 = vmax.f32 %v469, 0.0
    %v524 = vmax.f32 %v471, 0.0
    %v525 = vmax.f32 %v473, 0.0
    %v526 = vmax.f32 %v475, 0.0
    %v527 = vmax.f32 %v479, 0.0
    %v528 = vmax.f32 %v481, 0.0
    %v529 = vmax.f32 %v483, 0.0
    %v530 = vmax.f32 %v485, 0.0
    %v531 = vmax.f32 %v489, 0.0
    %v532 = vmax.f32 %v491, 0.0
    %v533 = vmax.f32 %v493, 0.0
    %v534 = vmax.f32 %v495, 0.0
    %v535 = vmax.f32 %v499, 0.0
    %v536 = vmax.f32 %v501, 0.0
    %v537 = vmax.f32 %v503, 0.0
    %v538 = vmax.f32 %v505, 0.0
    %v539 = vadd.f32 %v507, %v509
    %v540 = vrot.slane %v539, 4
    %v541 = vadd.f32 %v539, %v540
    %v542 = vrot.slane %v541, 2
    %v543 = vadd.f32 %v541, %v542
    %v544 = vrot.slane %v543, 1
    %v545 = vadd.f32 %v543, %v544
    %v546 = vadd.f32 %v508, %v510
    %v547 = vrot.slane %v546, 4
    %v548 = vadd.f32 %v546, %v547
    %v549 = vrot.slane %v548, 2
    %v550 = vadd.f32 %v548, %v549
    %v551 = vrot.slane %v550, 1
    %v552 = vadd.f32 %v550, %v551
    %v553 = vadd.f32 %v511, %v513
    %v554 = vrot.slane %v553, 4
    %v555 = vadd.f32 %v553, %v554
    %v556 = vrot.slane %v555, 2
    %v557 = vadd.f32 %v555, %v556
    %v558 = vrot.slane %v557, 1
    %v559 = vadd.f32 %v557, %v558
    %v560 = vadd.f32 %v512, %v514
    %v561 = vrot.slane %v560, 4
    %v562 = vadd.f32 %v560, %v561
    %v563 = vrot.slane %v562, 2
    %v564 = vadd.f32 %v562, %v563
    %v565 = vrot.slane %v564, 1
    %v566 = vadd.f32 %v564, %v565
    %v567 = vadd.f32 %v515, %v517
    %v568 = vrot.slane %v567, 4
    %v569 = vadd.f32 %v567, %v568
    %v570 = vrot.slane %v569, 2
    %v571 = vadd.f32 %v569, %v570
    %v572 = vrot.slane %v571, 1
    %v573 = vadd.f32 %v571, %v572
    %v574 = vadd.f32 %v516, %v518
    %v575 = vrot.slane %v574, 4
    %v576 = vadd.f32 %v574, %v575
    %v577 = vrot.slane %v576, 2
    %v578 = vadd.f32 %v576, %v577
    %v579 = vrot.slane %v578, 1
    %v580 = vadd.f32 %v578, %v579
    %v581 = vadd.f32 %v519, %v521
    %v582 = vrot.slane %v581, 4
    %v583 = vadd.f32 %v581, %v582
    %v584 = vrot.slane %v583, 2
    %v585 = vadd.f32 %v583, %v584
    %v586 = vrot.slane %v585, 1
    %v587 = vadd.f32 %v585, %v586
    %v588 = vadd.f32 %v520, %v522
    %v589 = vrot.slane %v588, 4
    %v590 = vadd.f32 %v588, %v589
    %v591 = vrot.slane %v590, 2
    %v592 = vadd.f32 %v590, %v591
    %v593 = vrot.slane %v592, 1
    %v594 = vadd.f32 %v592, %v593
    %v595 = vadd.f32 %v523, %v525
    %v596 = vrot.slane %v595, 4
    %v597 = vadd.f32 %v595, %v596
    %v598 = vrot.slane %v597, 2
    %v599 = vadd.f32 %v597, %v598
    %v600 = vrot.slane %v599, 1
    %v601 = vadd.f32 %v599, %v600
    %v602 = vadd.f32 %v524, %v526
    %v603 = vrot.slane %v602, 4
    %v604 = vadd.f32 %v602, %v603
    %v605 = vrot.slane %v604, 2
    %v606 = vadd.f32 %v604, %v605
    %v607 = vrot.slane %v606, 1
    %v608 = vadd.f32 %v606, %v607
    %v609 = vadd.f32 %v527, %v529
    %v610 = vrot.slane %v609, 4
    %v611 = vadd.f32 %v609, %v610
    %v612 = vrot.slane %v611, 2
    %v613 = vadd.f32 %v611, %v612
    %v614 = vrot.slane %v613, 1
    %v615 = vadd.f32 %v613, %v614
    %v616 = vadd.f32 %v528, %v530
    %v617 = vrot.slane %v616, 4
    %v618 = vadd.f32 %v616, %v617
    %v619 = vrot.slane %v618, 2
    %v620 = vadd.f32 %v618, %v619
    %v621 = vrot.slane %v620, 1
    %v622 = vadd.f32 %v620, %v621
    %v623 = vadd.f32 %v531, %v533
    %v624 = vrot.slane %v623, 4
    %v625 = vadd.f32 %v623, %v624
    %v626 = vrot.slane %v625, 2
    %v627 = vadd.f32 %v625, %v626
    %v628 = vrot.slane %v627, 1
    %v629 = vadd.f32 %v627, %v628
    %v630 = vadd.f32 %v532, %v534
    %v631 = vrot.slane %v630, 4
    %v632 = vadd.f32 %v630, %v631
    %v633 = vrot.slane %v632, 2
    %v634 = vadd.f32 %v632, %v633
    %v635 = vrot.slane %v634, 1
    %v636 = vadd.f32 %v634, %v635
    %v637 = vadd.f32 %v535, %v537
    %v638 = vrot.slane %v637, 4
    %v639 = vadd.f32 %v637, %v638
    %v640 = vrot.slane %v639, 2
    %v641 = vadd.f32 %v639, %v640
    %v642 = vrot.slane %v641, 1
    %v643 = vadd.f32 %v641, %v642
    %v644 = vadd.f32 %v536, %v538
    %v645 = vrot.slane %v644, 4
    %v646 = vadd.f32 %v644, %v645
    %v647 = vrot.slane %v646, 2
    %v648 = vadd.f32 %v646, %v647
    %v649 = vrot.slane %v648, 1
    %v650 = vadd.f32 %v648, %v649
    %v651 = vpack.c.bf16 %v545, %v545
    %v652 = vpack.c.bf16 %v552, %v552
    %v653 = vpack.c.bf16 %v559, %v559
    %v654 = vpack.c.bf16 %v566, %v566
    %v655 = vpack.c.bf16 %v573, %v573
    %v656 = vpack.c.bf16 %v580, %v580
    %v657 = vpack.c.bf16 %v587, %v587
    %v658 = vpack.c.bf16 %v594, %v594
    %v659 = vpack.c.bf16 %v601, %v601
    %v660 = vpack.c.bf16 %v608, %v608
    %v661 = vpack.c.bf16 %v615, %v615
    %v662 = vpack.c.bf16 %v622, %v622
    %v663 = vpack.c.bf16 %v629, %v629
    %v664 = vpack.c.bf16 %v636, %v636
    %v665 = vpack.c.bf16 %v643, %v643
    %v666 = vpack.c.bf16 %v650, %v650
    %v667 = vld [vmem:[#allocation2] sm:$0xff]
    %v668 = vld [vmem:[#allocation2 + $0x8] sm:$0xff]
    %v669 = vld [vmem:[#allocation2 + $0x10] sm:$0xff]
    %v670 = vld [vmem:[#allocation2 + $0x18] sm:$0xff]
    %v671 = vld [vmem:[#allocation2 + $0x20] sm:$0xff]
    %v672 = vld [vmem:[#allocation2 + $0x28] sm:$0xff]
    %v673 = vld [vmem:[#allocation2 + $0x30] sm:$0xff]
    %v674 = vld [vmem:[#allocation2 + $0x38] sm:$0xff]
    %v675 = vld [vmem:[#allocation2 + $0x40] sm:$0xff]
    %v676 = vld [vmem:[#allocation2 + $0x48] sm:$0xff]
    %v677 = vld [vmem:[#allocation2 + $0x50] sm:$0xff]
    %v678 = vld [vmem:[#allocation2 + $0x58] sm:$0xff]
    %v679 = vld [vmem:[#allocation2 + $0x60] sm:$0xff]
    %v680 = vld [vmem:[#allocation2 + $0x68] sm:$0xff]
    %v681 = vld [vmem:[#allocation2 + $0x70] sm:$0xff]
    %v682 = vld [vmem:[#allocation2 + $0x78] sm:$0xff]
    %v683 = vld [vmem:[#allocation2 + $0x80] sm:$0xff]
    %v684 = vld [vmem:[#allocation2 + $0x88] sm:$0xff]
    %v685 = vld [vmem:[#allocation2 + $0x90] sm:$0xff]
    %v686 = vld [vmem:[#allocation2 + $0x98] sm:$0xff]
    %v687 = vld [vmem:[#allocation2 + $0xa0] sm:$0xff]
    %v688 = vld [vmem:[#allocation2 + $0xa8] sm:$0xff]
    %v689 = vld [vmem:[#allocation2 + $0xb0] sm:$0xff]
    %v690 = vld [vmem:[#allocation2 + $0xb8] sm:$0xff]
    %v691 = vld [vmem:[#allocation2 + $0xc0] sm:$0xff]
    %v692 = vld [vmem:[#allocation2 + $0xc8] sm:$0xff]
    %v693 = vld [vmem:[#allocation2 + $0xd0] sm:$0xff]
    %v694 = vld [vmem:[#allocation2 + $0xd8] sm:$0xff]
    %v695 = vld [vmem:[#allocation2 + $0xe0] sm:$0xff]
    %v696 = vld [vmem:[#allocation2 + $0xe8] sm:$0xff]
    %v697 = vld [vmem:[#allocation2 + $0xf0] sm:$0xff]
    %v698 = vld [vmem:[#allocation2 + $0xf8] sm:$0xff]
    %v699 = vld [vmem:[#allocation2 + $0x100] sm:$0xff]
    %v700 = vld [vmem:[#allocation2 + $0x108] sm:$0xff]
    %v701 = vld [vmem:[#allocation2 + $0x110] sm:$0xff]
    %v702 = vld [vmem:[#allocation2 + $0x118] sm:$0xff]
    %v703 = vld [vmem:[#allocation2 + $0x120] sm:$0xff]
    %v704 = vld [vmem:[#allocation2 + $0x128] sm:$0xff]
    %v705 = vld [vmem:[#allocation2 + $0x130] sm:$0xff]
    %v706 = vld [vmem:[#allocation2 + $0x138] sm:$0xff]
    %v707 = vld [vmem:[#allocation2 + $0x140] sm:$0xff]
    %v708 = vld [vmem:[#allocation2 + $0x148] sm:$0xff]
    %v709 = vld [vmem:[#allocation2 + $0x150] sm:$0xff]
    %v710 = vld [vmem:[#allocation2 + $0x158] sm:$0xff]
    %v711 = vld [vmem:[#allocation2 + $0x160] sm:$0xff]
    %v712 = vld [vmem:[#allocation2 + $0x168] sm:$0xff]
    %v713 = vld [vmem:[#allocation2 + $0x170] sm:$0xff]
    %v714 = vld [vmem:[#allocation2 + $0x178] sm:$0xff]
    %v715 = vld [vmem:[#allocation2 + $0x180] sm:$0xff]
    %v716 = vld [vmem:[#allocation2 + $0x188] sm:$0xff]
    %v717 = vld [vmem:[#allocation2 + $0x190] sm:$0xff]
    %v718 = vld [vmem:[#allocation2 + $0x198] sm:$0xff]
    %v719 = vld [vmem:[#allocation2 + $0x1a0] sm:$0xff]
    %v720 = vld [vmem:[#allocation2 + $0x1a8] sm:$0xff]
    %v721 = vld [vmem:[#allocation2 + $0x1b0] sm:$0xff]
    %v722 = vld [vmem:[#allocation2 + $0x1b8] sm:$0xff]
    %v723 = vld [vmem:[#allocation2 + $0x1c0] sm:$0xff]
    %v724 = vld [vmem:[#allocation2 + $0x1c8] sm:$0xff]
    %v725 = vld [vmem:[#allocation2 + $0x1d0] sm:$0xff]
    %v726 = vld [vmem:[#allocation2 + $0x1d8] sm:$0xff]
    %v727 = vld [vmem:[#allocation2 + $0x1e0] sm:$0xff]
    %v728 = vld [vmem:[#allocation2 + $0x1e8] sm:$0xff]
    %v729 = vld [vmem:[#allocation2 + $0x1f0] sm:$0xff]
    %v730 = vld [vmem:[#allocation2 + $0x1f8] sm:$0xff]
    %v731 = vld [vmem:[#allocation2 + $0x200] sm:$0xff]
    %v732 = vld [vmem:[#allocation2 + $0x208] sm:$0xff]
    %v733 = vld [vmem:[#allocation2 + $0x210] sm:$0xff]
    %v734 = vld [vmem:[#allocation2 + $0x218] sm:$0xff]
    %v735 = vld [vmem:[#allocation2 + $0x220] sm:$0xff]
    %v736 = vld [vmem:[#allocation2 + $0x228] sm:$0xff]
    %v737 = vld [vmem:[#allocation2 + $0x230] sm:$0xff]
    %v738 = vld [vmem:[#allocation2 + $0x238] sm:$0xff]
    %v739 = vld [vmem:[#allocation2 + $0x240] sm:$0xff]
    %v740 = vld [vmem:[#allocation2 + $0x248] sm:$0xff]
    %v741 = vld [vmem:[#allocation2 + $0x250] sm:$0xff]
    %v742 = vld [vmem:[#allocation2 + $0x258] sm:$0xff]
    %v743 = vld [vmem:[#allocation2 + $0x260] sm:$0xff]
    %v744 = vld [vmem:[#allocation2 + $0x268] sm:$0xff]
    %v745 = vld [vmem:[#allocation2 + $0x270] sm:$0xff]
    %v746 = vld [vmem:[#allocation2 + $0x278] sm:$0xff]
    %v747 = vld [vmem:[#allocation2 + $0x280] sm:$0xff]
    %v748 = vld [vmem:[#allocation2 + $0x288] sm:$0xff]
    %v749 = vld [vmem:[#allocation2 + $0x290] sm:$0xff]
    %v750 = vld [vmem:[#allocation2 + $0x298] sm:$0xff]
    %v751 = vld [vmem:[#allocation2 + $0x2a0] sm:$0xff]
    %v752 = vld [vmem:[#allocation2 + $0x2a8] sm:$0xff]
    %v753 = vld [vmem:[#allocation2 + $0x2b0] sm:$0xff]
    %v754 = vld [vmem:[#allocation2 + $0x2b8] sm:$0xff]
    %v755 = vld [vmem:[#allocation2 + $0x2c0] sm:$0xff]
    %v756 = vld [vmem:[#allocation2 + $0x2c8] sm:$0xff]
    %v757 = vld [vmem:[#allocation2 + $0x2d0] sm:$0xff]
    %v758 = vld [vmem:[#allocation2 + $0x2d8] sm:$0xff]
    %v759 = vld [vmem:[#allocation2 + $0x2e0] sm:$0xff]
    %v760 = vld [vmem:[#allocation2 + $0x2e8] sm:$0xff]
    %v761 = vld [vmem:[#allocation2 + $0x2f0] sm:$0xff]
    %v762 = vld [vmem:[#allocation2 + $0x2f8] sm:$0xff]
    %v763 = vld [vmem:[#allocation2 + $0x300] sm:$0xff]
    %v764 = vld [vmem:[#allocation2 + $0x308] sm:$0xff]
    %v765 = vld [vmem:[#allocation2 + $0x310] sm:$0xff]
    %v766 = vld [vmem:[#allocation2 + $0x318] sm:$0xff]
    %v767 = vld [vmem:[#allocation2 + $0x320] sm:$0xff]
    %v768 = vld [vmem:[#allocation2 + $0x328] sm:$0xff]
    %v769 = vld [vmem:[#allocation2 + $0x330] sm:$0xff]
    %v770 = vld [vmem:[#allocation2 + $0x338] sm:$0xff]
    %v771 = vld [vmem:[#allocation2 + $0x340] sm:$0xff]
    %v772 = vld [vmem:[#allocation2 + $0x348] sm:$0xff]
    %v773 = vld [vmem:[#allocation2 + $0x350] sm:$0xff]
    %v774 = vld [vmem:[#allocation2 + $0x358] sm:$0xff]
    %v775 = vld [vmem:[#allocation2 + $0x360] sm:$0xff]
    %v776 = vld [vmem:[#allocation2 + $0x368] sm:$0xff]
    %v777 = vld [vmem:[#allocation2 + $0x370] sm:$0xff]
    %v778 = vld [vmem:[#allocation2 + $0x378] sm:$0xff]
    %v779 = vld [vmem:[#allocation2 + $0x380] sm:$0xff]
    %v780 = vld [vmem:[#allocation2 + $0x388] sm:$0xff]
    %v781 = vld [vmem:[#allocation2 + $0x390] sm:$0xff]
    %v782 = vld [vmem:[#allocation2 + $0x398] sm:$0xff]
    %v783 = vld [vmem:[#allocation2 + $0x3a0] sm:$0xff]
    %v784 = vld [vmem:[#allocation2 + $0x3a8] sm:$0xff]
    %v785 = vld [vmem:[#allocation2 + $0x3b0] sm:$0xff]
    %v786 = vld [vmem:[#allocation2 + $0x3b8] sm:$0xff]
    %v787 = vld [vmem:[#allocation2 + $0x3c0] sm:$0xff]
    %v788 = vld [vmem:[#allocation2 + $0x3c8] sm:$0xff]
    %v789 = vld [vmem:[#allocation2 + $0x3d0] sm:$0xff]
    %v790 = vld [vmem:[#allocation2 + $0x3d8] sm:$0xff]
    %v791 = vld [vmem:[#allocation2 + $0x3e0] sm:$0xff]
    %v792 = vld [vmem:[#allocation2 + $0x3e8] sm:$0xff]
    %v793 = vld [vmem:[#allocation2 + $0x3f0] sm:$0xff]
    %v794 = vld [vmem:[#allocation2 + $0x3f8] sm:$0xff]
    %v795 = vld [vmem:[%s4] sm:$0xff]
    %v797 = vlaneseq
    %v798 = vshrl.u32 %v797, 7
    %v799 = vsub.s32 0, %v798
    %v800 = vrot.slane %v795, %v799
    %v801 = vlaneseq
    %v802 = vshrl.u32 %v801, 7
    %v803 = vsub.s32 1, %v802
    %v804 = vrot.slane %v795, %v803
    %v805 = vlaneseq
    %v806 = vshrl.u32 %v805, 7
    %v807 = vsub.s32 2, %v806
    %v808 = vrot.slane %v795, %v807
    %v809 = vlaneseq
    %v810 = vshrl.u32 %v809, 7
    %v811 = vsub.s32 3, %v810
    %v812 = vrot.slane %v795, %v811
    %v813 = vlaneseq
    %v814 = vshrl.u32 %v813, 7
    %v815 = vsub.s32 4, %v814
    %v816 = vrot.slane %v795, %v815
    %v817 = vlaneseq
    %v818 = vshrl.u32 %v817, 7
    %v819 = vsub.s32 5, %v818
    %v820 = vrot.slane %v795, %v819
    %v821 = vlaneseq
    %v822 = vshrl.u32 %v821, 7
    %v823 = vsub.s32 6, %v822
    %v824 = vrot.slane %v795, %v823
    %v825 = vlaneseq
    %v826 = vshrl.u32 %v825, 7
    %v827 = vsub.s32 7, %v826
    %v828 = vrot.slane %v795, %v827
    %v853 = vunpack.c.l.b16 %v651
    %v854 = vunpack.c.l.b16 %v652
    %v855 = vunpack.c.l.b16 %v653
    %v856 = vunpack.c.l.b16 %v654
    %v857 = vunpack.c.l.b16 %v655
    %v858 = vunpack.c.l.b16 %v656
    %v859 = vunpack.c.l.b16 %v657
    %v860 = vunpack.c.l.b16 %v658
    %v861 = vunpack.c.l.b16 %v659
    %v862 = vunpack.c.l.b16 %v660
    %v863 = vunpack.c.l.b16 %v661
    %v864 = vunpack.c.l.b16 %v662
    %v865 = vunpack.c.l.b16 %v663
    %v866 = vunpack.c.l.b16 %v664
    %v867 = vunpack.c.l.b16 %v665
    %v868 = vunpack.c.l.b16 %v666
    %vm869 = vcmask 1041409
    %v870 = vsel %vm869, %v855, %v853
    %vm871 = vcmask 1042434
    %v872 = vsel %vm871, %v857, %v870
    %vm873 = vcmask 1043459
    %v874 = vsel %vm873, %v859, %v872
    %vm875 = vcmask 1044484
    %v876 = vsel %vm875, %v861, %v874
    %vm877 = vcmask 1045509
    %v878 = vsel %vm877, %v863, %v876
    %vm879 = vcmask 1046534
    %v880 = vsel %vm879, %v865, %v878
    %vm881 = vcmask 1047559
    %v882 = vsel %vm881, %v867, %v880
    %v883 = vsel %vm869, %v856, %v854
    %v884 = vsel %vm871, %v858, %v883
    %v885 = vsel %vm873, %v860, %v884
    %v886 = vsel %vm875, %v862, %v885
    %v887 = vsel %vm877, %v864, %v886
    %v888 = vsel %vm879, %v866, %v887
    %v889 = vsel %vm881, %v868, %v888
    %v890 = vpack.c.b16 %v882, %v882
    %v891 = vpack.c.b16 %v889, %v889
    %v1022 = vunpack.c.l.b16 %v667
    %v1023 = vunpack.c.h.b16 %v667
    %v1024 = vunpack.c.l.b16 %v668
    %v1025 = vunpack.c.h.b16 %v668
    %v1026 = vunpack.c.l.b16 %v669
    %v1027 = vunpack.c.h.b16 %v669
    %v1028 = vunpack.c.l.b16 %v670
    %v1029 = vunpack.c.h.b16 %v670
    %v1030 = vunpack.c.l.b16 %v671
    %v1031 = vunpack.c.h.b16 %v671
    %v1032 = vunpack.c.l.b16 %v672
    %v1033 = vunpack.c.h.b16 %v672
    %v1034 = vunpack.c.l.b16 %v673
    %v1035 = vunpack.c.h.b16 %v673
    %v1036 = vunpack.c.l.b16 %v674
    %v1037 = vunpack.c.h.b16 %v674
    %v1038 = vunpack.c.l.b16 %v675
    %v1039 = vunpack.c.h.b16 %v675
    %v1040 = vunpack.c.l.b16 %v676
    %v1041 = vunpack.c.h.b16 %v676
    %v1042 = vunpack.c.l.b16 %v677
    %v1043 = vunpack.c.h.b16 %v677
    %v1044 = vunpack.c.l.b16 %v678
    %v1045 = vunpack.c.h.b16 %v678
    %v1046 = vunpack.c.l.b16 %v679
    %v1047 = vunpack.c.h.b16 %v679
    %v1048 = vunpack.c.l.b16 %v680
    %v1049 = vunpack.c.h.b16 %v680
    %v1050 = vunpack.c.l.b16 %v681
    %v1051 = vunpack.c.h.b16 %v681
    %v1052 = vunpack.c.l.b16 %v682
    %v1053 = vunpack.c.h.b16 %v682
    %v1054 = vunpack.c.l.b16 %v683
    %v1055 = vunpack.c.h.b16 %v683
    %v1056 = vunpack.c.l.b16 %v684
    %v1057 = vunpack.c.h.b16 %v684
    %v1058 = vunpack.c.l.b16 %v685
    %v1059 = vunpack.c.h.b16 %v685
    %v1060 = vunpack.c.l.b16 %v686
    %v1061 = vunpack.c.h.b16 %v686
    %v1062 = vunpack.c.l.b16 %v687
    %v1063 = vunpack.c.h.b16 %v687
    %v1064 = vunpack.c.l.b16 %v688
    %v1065 = vunpack.c.h.b16 %v688
    %v1066 = vunpack.c.l.b16 %v689
    %v1067 = vunpack.c.h.b16 %v689
    %v1068 = vunpack.c.l.b16 %v690
    %v1069 = vunpack.c.h.b16 %v690
    %v1070 = vunpack.c.l.b16 %v691
    %v1071 = vunpack.c.h.b16 %v691
    %v1072 = vunpack.c.l.b16 %v692
    %v1073 = vunpack.c.h.b16 %v692
    %v1074 = vunpack.c.l.b16 %v693
    %v1075 = vunpack.c.h.b16 %v693
    %v1076 = vunpack.c.l.b16 %v694
    %v1077 = vunpack.c.h.b16 %v694
    %v1078 = vunpack.c.l.b16 %v695
    %v1079 = vunpack.c.h.b16 %v695
    %v1080 = vunpack.c.l.b16 %v696
    %v1081 = vunpack.c.h.b16 %v696
    %v1082 = vunpack.c.l.b16 %v697
    %v1083 = vunpack.c.h.b16 %v697
    %v1084 = vunpack.c.l.b16 %v698
    %v1085 = vunpack.c.h.b16 %v698
    %v1086 = vunpack.c.l.b16 %v699
    %v1087 = vunpack.c.h.b16 %v699
    %v1088 = vunpack.c.l.b16 %v700
    %v1089 = vunpack.c.h.b16 %v700
    %v1090 = vunpack.c.l.b16 %v701
    %v1091 = vunpack.c.h.b16 %v701
    %v1092 = vunpack.c.l.b16 %v702
    %v1093 = vunpack.c.h.b16 %v702
    %v1094 = vunpack.c.l.b16 %v703
    %v1095 = vunpack.c.h.b16 %v703
    %v1096 = vunpack.c.l.b16 %v704
    %v1097 = vunpack.c.h.b16 %v704
    %v1098 = vunpack.c.l.b16 %v705
    %v1099 = vunpack.c.h.b16 %v705
    %v1100 = vunpack.c.l.b16 %v706
    %v1101 = vunpack.c.h.b16 %v706
    %v1102 = vunpack.c.l.b16 %v707
    %v1103 = vunpack.c.h.b16 %v707
    %v1104 = vunpack.c.l.b16 %v708
    %v1105 = vunpack.c.h.b16 %v708
    %v1106 = vunpack.c.l.b16 %v709
    %v1107 = vunpack.c.h.b16 %v709
    %v1108 = vunpack.c.l.b16 %v710
    %v1109 = vunpack.c.h.b16 %v710
    %v1110 = vunpack.c.l.b16 %v711
    %v1111 = vunpack.c.h.b16 %v711
    %v1112 = vunpack.c.l.b16 %v712
    %v1113 = vunpack.c.h.b16 %v712
    %v1114 = vunpack.c.l.b16 %v713
    %v1115 = vunpack.c.h.b16 %v713
    %v1116 = vunpack.c.l.b16 %v714
    %v1117 = vunpack.c.h.b16 %v714
    %v1118 = vunpack.c.l.b16 %v715
    %v1119 = vunpack.c.h.b16 %v715
    %v1120 = vunpack.c.l.b16 %v716
    %v1121 = vunpack.c.h.b16 %v716
    %v1122 = vunpack.c.l.b16 %v717
    %v1123 = vunpack.c.h.b16 %v717
    %v1124 = vunpack.c.l.b16 %v718
    %v1125 = vunpack.c.h.b16 %v718
    %v1126 = vunpack.c.l.b16 %v719
    %v1127 = vunpack.c.h.b16 %v719
    %v1128 = vunpack.c.l.b16 %v720
    %v1129 = vunpack.c.h.b16 %v720
    %v1130 = vunpack.c.l.b16 %v721
    %v1131 = vunpack.c.h.b16 %v721
    %v1132 = vunpack.c.l.b16 %v722
    %v1133 = vunpack.c.h.b16 %v722
    %v1134 = vunpack.c.l.b16 %v723
    %v1135 = vunpack.c.h.b16 %v723
    %v1136 = vunpack.c.l.b16 %v724
    %v1137 = vunpack.c.h.b16 %v724
    %v1138 = vunpack.c.l.b16 %v725
    %v1139 = vunpack.c.h.b16 %v725
    %v1140 = vunpack.c.l.b16 %v726
    %v1141 = vunpack.c.h.b16 %v726
    %v1142 = vunpack.c.l.b16 %v727
    %v1143 = vunpack.c.h.b16 %v727
    %v1144 = vunpack.c.l.b16 %v728
    %v1145 = vunpack.c.h.b16 %v728
    %v1146 = vunpack.c.l.b16 %v729
    %v1147 = vunpack.c.h.b16 %v729
    %v1148 = vunpack.c.l.b16 %v730
    %v1149 = vunpack.c.h.b16 %v730
    %v1150 = vunpack.c.l.b16 %v731
    %v1151 = vunpack.c.h.b16 %v731
    %v1152 = vunpack.c.l.b16 %v732
    %v1153 = vunpack.c.h.b16 %v732
    %v1154 = vunpack.c.l.b16 %v733
    %v1155 = vunpack.c.h.b16 %v733
    %v1156 = vunpack.c.l.b16 %v734
    %v1157 = vunpack.c.h.b16 %v734
    %v1158 = vunpack.c.l.b16 %v735
    %v1159 = vunpack.c.h.b16 %v735
    %v1160 = vunpack.c.l.b16 %v736
    %v1161 = vunpack.c.h.b16 %v736
    %v1162 = vunpack.c.l.b16 %v737
    %v1163 = vunpack.c.h.b16 %v737
    %v1164 = vunpack.c.l.b16 %v738
    %v1165 = vunpack.c.h.b16 %v738
    %v1166 = vunpack.c.l.b16 %v739
    %v1167 = vunpack.c.h.b16 %v739
    %v1168 = vunpack.c.l.b16 %v740
    %v1169 = vunpack.c.h.b16 %v740
    %v1170 = vunpack.c.l.b16 %v741
    %v1171 = vunpack.c.h.b16 %v741
    %v1172 = vunpack.c.l.b16 %v742
    %v1173 = vunpack.c.h.b16 %v742
    %v1174 = vunpack.c.l.b16 %v743
    %v1175 = vunpack.c.h.b16 %v743
    %v1176 = vunpack.c.l.b16 %v744
    %v1177 = vunpack.c.h.b16 %v744
    %v1178 = vunpack.c.l.b16 %v745
    %v1179 = vunpack.c.h.b16 %v745
    %v1180 = vunpack.c.l.b16 %v746
    %v1181 = vunpack.c.h.b16 %v746
    %v1182 = vunpack.c.l.b16 %v747
    %v1183 = vunpack.c.h.b16 %v747
    %v1184 = vunpack.c.l.b16 %v748
    %v1185 = vunpack.c.h.b16 %v748
    %v1186 = vunpack.c.l.b16 %v749
    %v1187 = vunpack.c.h.b16 %v749
    %v1188 = vunpack.c.l.b16 %v750
    %v1189 = vunpack.c.h.b16 %v750
    %v1190 = vunpack.c.l.b16 %v751
    %v1191 = vunpack.c.h.b16 %v751
    %v1192 = vunpack.c.l.b16 %v752
    %v1193 = vunpack.c.h.b16 %v752
    %v1194 = vunpack.c.l.b16 %v753
    %v1195 = vunpack.c.h.b16 %v753
    %v1196 = vunpack.c.l.b16 %v754
    %v1197 = vunpack.c.h.b16 %v754
    %v1198 = vunpack.c.l.b16 %v755
    %v1199 = vunpack.c.h.b16 %v755
    %v1200 = vunpack.c.l.b16 %v756
    %v1201 = vunpack.c.h.b16 %v756
    %v1202 = vunpack.c.l.b16 %v757
    %v1203 = vunpack.c.h.b16 %v757
    %v1204 = vunpack.c.l.b16 %v758
    %v1205 = vunpack.c.h.b16 %v758
    %v1206 = vunpack.c.l.b16 %v759
    %v1207 = vunpack.c.h.b16 %v759
    %v1208 = vunpack.c.l.b16 %v760
    %v1209 = vunpack.c.h.b16 %v760
    %v1210 = vunpack.c.l.b16 %v761
    %v1211 = vunpack.c.h.b16 %v761
    %v1212 = vunpack.c.l.b16 %v762
    %v1213 = vunpack.c.h.b16 %v762
    %v1214 = vunpack.c.l.b16 %v763
    %v1215 = vunpack.c.h.b16 %v763
    %v1216 = vunpack.c.l.b16 %v764
    %v1217 = vunpack.c.h.b16 %v764
    %v1218 = vunpack.c.l.b16 %v765
    %v1219 = vunpack.c.h.b16 %v765
    %v1220 = vunpack.c.l.b16 %v766
    %v1221 = vunpack.c.h.b16 %v766
    %v1222 = vunpack.c.l.b16 %v767
    %v1223 = vunpack.c.h.b16 %v767
    %v1224 = vunpack.c.l.b16 %v768
    %v1225 = vunpack.c.h.b16 %v768
    %v1226 = vunpack.c.l.b16 %v769
    %v1227 = vunpack.c.h.b16 %v769
    %v1228 = vunpack.c.l.b16 %v770
    %v1229 = vunpack.c.h.b16 %v770
    %v1230 = vunpack.c.l.b16 %v771
    %v1231 = vunpack.c.h.b16 %v771
    %v1232 = vunpack.c.l.b16 %v772
    %v1233 = vunpack.c.h.b16 %v772
    %v1234 = vunpack.c.l.b16 %v773
    %v1235 = vunpack.c.h.b16 %v773
    %v1236 = vunpack.c.l.b16 %v774
    %v1237 = vunpack.c.h.b16 %v774
    %v1238 = vunpack.c.l.b16 %v775
    %v1239 = vunpack.c.h.b16 %v775
    %v1240 = vunpack.c.l.b16 %v776
    %v1241 = vunpack.c.h.b16 %v776
    %v1242 = vunpack.c.l.b16 %v777
    %v1243 = vunpack.c.h.b16 %v777
    %v1244 = vunpack.c.l.b16 %v778
    %v1245 = vunpack.c.h.b16 %v778
    %v1246 = vunpack.c.l.b16 %v779
    %v1247 = vunpack.c.h.b16 %v779
    %v1248 = vunpack.c.l.b16 %v780
    %v1249 = vunpack.c.h.b16 %v780
    %v1250 = vunpack.c.l.b16 %v781
    %v1251 = vunpack.c.h.b16 %v781
    %v1252 = vunpack.c.l.b16 %v782
    %v1253 = vunpack.c.h.b16 %v782
    %v1254 = vunpack.c.l.b16 %v783
    %v1255 = vunpack.c.h.b16 %v783
    %v1256 = vunpack.c.l.b16 %v784
    %v1257 = vunpack.c.h.b16 %v784
    %v1258 = vunpack.c.l.b16 %v785
    %v1259 = vunpack.c.h.b16 %v785
    %v1260 = vunpack.c.l.b16 %v786
    %v1261 = vunpack.c.h.b16 %v786
    %v1262 = vunpack.c.l.b16 %v787
    %v1263 = vunpack.c.h.b16 %v787
    %v1264 = vunpack.c.l.b16 %v788
    %v1265 = vunpack.c.h.b16 %v788
    %v1266 = vunpack.c.l.b16 %v789
    %v1267 = vunpack.c.h.b16 %v789
    %v1268 = vunpack.c.l.b16 %v790
    %v1269 = vunpack.c.h.b16 %v790
    %v1270 = vunpack.c.l.b16 %v791
    %v1271 = vunpack.c.h.b16 %v791
    %v1272 = vunpack.c.l.b16 %v792
    %v1273 = vunpack.c.h.b16 %v792
    %v1274 = vunpack.c.l.b16 %v793
    %v1275 = vunpack.c.h.b16 %v793
    %v1276 = vunpack.c.l.b16 %v794
    %v1277 = vunpack.c.h.b16 %v794
    %v1278 = vpack.c.b16 %v1030, %v1022
    %v1279 = vpack.c.b16 %v1031, %v1023
    %v1280 = vpack.c.b16 %v1032, %v1024
    %v1281 = vpack.c.b16 %v1033, %v1025
    %v1282 = vpack.c.b16 %v1034, %v1026
    %v1283 = vpack.c.b16 %v1035, %v1027
    %v1284 = vpack.c.b16 %v1036, %v1028
    %v1285 = vpack.c.b16 %v1037, %v1029
    %v1286 = vpack.c.b16 %v1046, %v1038
    %v1287 = vpack.c.b16 %v1047, %v1039
    %v1288 = vpack.c.b16 %v1048, %v1040
    %v1289 = vpack.c.b16 %v1049, %v1041
    %v1290 = vpack.c.b16 %v1050, %v1042
    %v1291 = vpack.c.b16 %v1051, %v1043
    %v1292 = vpack.c.b16 %v1052, %v1044
    %v1293 = vpack.c.b16 %v1053, %v1045
    %v1294 = vpack.c.b16 %v1062, %v1054
    %v1295 = vpack.c.b16 %v1063, %v1055
    %v1296 = vpack.c.b16 %v1064, %v1056
    %v1297 = vpack.c.b16 %v1065, %v1057
    %v1298 = vpack.c.b16 %v1066, %v1058
    %v1299 = vpack.c.b16 %v1067, %v1059
    %v1300 = vpack.c.b16 %v1068, %v1060
    %v1301 = vpack.c.b16 %v1069, %v1061
    %v1302 = vpack.c.b16 %v1078, %v1070
    %v1303 = vpack.c.b16 %v1079, %v1071
    %v1304 = vpack.c.b16 %v1080, %v1072
    %v1305 = vpack.c.b16 %v1081, %v1073
    %v1306 = vpack.c.b16 %v1082, %v1074
    %v1307 = vpack.c.b16 %v1083, %v1075
    %v1308 = vpack.c.b16 %v1084, %v1076
    %v1309 = vpack.c.b16 %v1085, %v1077
    %v1310 = vpack.c.b16 %v1094, %v1086
    %v1311 = vpack.c.b16 %v1095, %v1087
    %v1312 = vpack.c.b16 %v1096, %v1088
    %v1313 = vpack.c.b16 %v1097, %v1089
    %v1314 = vpack.c.b16 %v1098, %v1090
    %v1315 = vpack.c.b16 %v1099, %v1091
    %v1316 = vpack.c.b16 %v1100, %v1092
    %v1317 = vpack.c.b16 %v1101, %v1093
    %v1318 = vpack.c.b16 %v1110, %v1102
    %v1319 = vpack.c.b16 %v1111, %v1103
    %v1320 = vpack.c.b16 %v1112, %v1104
    %v1321 = vpack.c.b16 %v1113, %v1105
    %v1322 = vpack.c.b16 %v1114, %v1106
    %v1323 = vpack.c.b16 %v1115, %v1107
    %v1324 = vpack.c.b16 %v1116, %v1108
    %v1325 = vpack.c.b16 %v1117, %v1109
    %v1326 = vpack.c.b16 %v1126, %v1118
    %v1327 = vpack.c.b16 %v1127, %v1119
    %v1328 = vpack.c.b16 %v1128, %v1120
    %v1329 = vpack.c.b16 %v1129, %v1121
    %v1330 = vpack.c.b16 %v1130, %v1122
    %v1331 = vpack.c.b16 %v1131, %v1123
    %v1332 = vpack.c.b16 %v1132, %v1124
    %v1333 = vpack.c.b16 %v1133, %v1125
    %v1334 = vpack.c.b16 %v1142, %v1134
    %v1335 = vpack.c.b16 %v1143, %v1135
    %v1336 = vpack.c.b16 %v1144, %v1136
    %v1337 = vpack.c.b16 %v1145, %v1137
    %v1338 = vpack.c.b16 %v1146, %v1138
    %v1339 = vpack.c.b16 %v1147, %v1139
    %v1340 = vpack.c.b16 %v1148, %v1140
    %v1341 = vpack.c.b16 %v1149, %v1141
    %v1342 = vpack.c.b16 %v1158, %v1150
    %v1343 = vpack.c.b16 %v1159, %v1151
    %v1344 = vpack.c.b16 %v1160, %v1152
    %v1345 = vpack.c.b16 %v1161, %v1153
    %v1346 = vpack.c.b16 %v1162, %v1154
    %v1347 = vpack.c.b16 %v1163, %v1155
    %v1348 = vpack.c.b16 %v1164, %v1156
    %v1349 = vpack.c.b16 %v1165, %v1157
    %v1350 = vpack.c.b16 %v1174, %v1166
    %v1351 = vpack.c.b16 %v1175, %v1167
    %v1352 = vpack.c.b16 %v1176, %v1168
    %v1353 = vpack.c.b16 %v1177, %v1169
    %v1354 = vpack.c.b16 %v1178, %v1170
    %v1355 = vpack.c.b16 %v1179, %v1171
    %v1356 = vpack.c.b16 %v1180, %v1172
    %v1357 = vpack.c.b16 %v1181, %v1173
    %v1358 = vpack.c.b16 %v1190, %v1182
    %v1359 = vpack.c.b16 %v1191, %v1183
    %v1360 = vpack.c.b16 %v1192, %v1184
    %v1361 = vpack.c.b16 %v1193, %v1185
    %v1362 = vpack.c.b16 %v1194, %v1186
    %v1363 = vpack.c.b16 %v1195, %v1187
    %v1364 = vpack.c.b16 %v1196, %v1188
    %v1365 = vpack.c.b16 %v1197, %v1189
    %v1366 = vpack.c.b16 %v1206, %v1198
    %v1367 = vpack.c.b16 %v1207, %v1199
    %v1368 = vpack.c.b16 %v1208, %v1200
    %v1369 = vpack.c.b16 %v1209, %v1201
    %v1370 = vpack.c.b16 %v1210, %v1202
    %v1371 = vpack.c.b16 %v1211, %v1203
    %v1372 = vpack.c.b16 %v1212, %v1204
    %v1373 = vpack.c.b16 %v1213, %v1205
    %v1374 = vpack.c.b16 %v1222, %v1214
    %v1375 = vpack.c.b16 %v1223, %v1215
    %v1376 = vpack.c.b16 %v1224, %v1216
    %v1377 = vpack.c.b16 %v1225, %v1217
    %v1378 = vpack.c.b16 %v1226, %v1218
    %v1379 = vpack.c.b16 %v1227, %v1219
    %v1380 = vpack.c.b16 %v1228, %v1220
    %v1381 = vpack.c.b16 %v1229, %v1221
    %v1382 = vpack.c.b16 %v1238, %v1230
    %v1383 = vpack.c.b16 %v1239, %v1231
    %v1384 = vpack.c.b16 %v1240, %v1232
    %v1385 = vpack.c.b16 %v1241, %v1233
    %v1386 = vpack.c.b16 %v1242, %v1234
    %v1387 = vpack.c.b16 %v1243, %v1235
    %v1388 = vpack.c.b16 %v1244, %v1236
    %v1389 = vpack.c.b16 %v1245, %v1237
    %v1390 = vpack.c.b16 %v1254, %v1246
    %v1391 = vpack.c.b16 %v1255, %v1247
    %v1392 = vpack.c.b16 %v1256, %v1248
    %v1393 = vpack.c.b16 %v1257, %v1249
    %v1394 = vpack.c.b16 %v1258, %v1250
    %v1395 = vpack.c.b16 %v1259, %v1251
    %v1396 = vpack.c.b16 %v1260, %v1252
    %v1397 = vpack.c.b16 %v1261, %v1253
    %v1398 = vpack.c.b16 %v1270, %v1262
    %v1399 = vpack.c.b16 %v1271, %v1263
    %v1400 = vpack.c.b16 %v1272, %v1264
    %v1401 = vpack.c.b16 %v1273, %v1265
    %v1402 = vpack.c.b16 %v1274, %v1266
    %v1403 = vpack.c.b16 %v1275, %v1267
    %v1404 = vpack.c.b16 %v1276, %v1268
    %v1405 = vpack.c.b16 %v1277, %v1269
    %1534 = vmatprep.subr.bf16.mxu0 %v1335
    %1535 = vmatpush1.bf16.msra.mxu0 %v1334
    %1536 = vmatprep.subr.bf16.mxu0 %v1327
    %1537 = vmatpush1.bf16.msra.mxu0 %v1326
    %1538 = vmatprep.subr.bf16.mxu0 %v1319
    %1539 = vmatpush1.bf16.msra.mxu0 %v1318
    %1540 = vmatprep.subr.bf16.mxu0 %v1311
    %1541 = vmatpush1.bf16.msra.mxu0 %v1310
    %1542 = vmatprep.subr.bf16.mxu0 %v1303
    %1543 = vmatpush1.bf16.msra.mxu0 %v1302
    %1544 = vmatprep.subr.bf16.mxu0 %v1295
    %1545 = vmatpush1.bf16.msra.mxu0 %v1294
    %1546 = vmatprep.subr.bf16.mxu0 %v1287
    %1547 = vmatpush1.bf16.msra.mxu0 %v1286
    %1548 = vmatprep.subr.bf16.mxu0 %v1279
    %1549 = vmatpush1.bf16.msra.mxu0 %v1278
    %1550 = vmatprep.subr.bf16.mxu0 %v1399
    %1551 = vmatpush2.bf16.msra.mxu0 %v1398
    %1552 = vmatprep.subr.bf16.mxu0 %v1391
    %1553 = vmatpush2.bf16.msra.mxu0 %v1390
    %1554 = vmatprep.subr.bf16.mxu0 %v1383
    %1555 = vmatpush2.bf16.msra.mxu0 %v1382
    %1556 = vmatprep.subr.bf16.mxu0 %v1375
    %1557 = vmatpush2.bf16.msra.mxu0 %v1374
    %1558 = vmatprep.subr.bf16.mxu0 %v1367
    %1559 = vmatpush2.bf16.msra.mxu0 %v1366
    %1560 = vmatprep.subr.bf16.mxu0 %v1359
    %1561 = vmatpush2.bf16.msra.mxu0 %v1358
    %1562 = vmatprep.subr.bf16.mxu0 %v1351
    %1563 = vmatpush2.bf16.msra.mxu0 %v1350
    %1564 = vmatprep.subr.bf16.mxu0 %v1343
    %1565 = vmatpush2.bf16.msra.mxu0 %v1342
    %1566 = vmatprep.mubr.bf16.mxu0 %v891
    %1567 = vmatmul.mubr.bf16.gmra.mxu0 %v890
    %v1568 = vpop.f32.mrf.mxu0
    %v1569 = vadd.f32 %v800, %v1568
    %v1570 = vpop.f32.mrf.mxu0
    %v1571 = vadd.f32 %v804, %v1570
    %v1572 = vpop.f32.mrf.mxu0
    %v1573 = vpop.f32.mrf.mxu0
    %1574 = vdwg.mxu0
    %1575 = vmatprep.subr.bf16.mxu0 %v1337
    %1576 = vmatpush1.bf16.msra.mxu0 %v1336
    %1577 = vmatprep.subr.bf16.mxu0 %v1329
    %1578 = vmatpush1.bf16.msra.mxu0 %v1328
    %1579 = vmatprep.subr.bf16.mxu0 %v1321
    %1580 = vmatpush1.bf16.msra.mxu0 %v1320
    %1581 = vmatprep.subr.bf16.mxu0 %v1313
    %1582 = vmatpush1.bf16.msra.mxu0 %v1312
    %1583 = vmatprep.subr.bf16.mxu0 %v1305
    %1584 = vmatpush1.bf16.msra.mxu0 %v1304
    %1585 = vmatprep.subr.bf16.mxu0 %v1297
    %1586 = vmatpush1.bf16.msra.mxu0 %v1296
    %1587 = vmatprep.subr.bf16.mxu0 %v1289
    %1588 = vmatpush1.bf16.msra.mxu0 %v1288
    %1589 = vmatprep.subr.bf16.mxu0 %v1281
    %1590 = vmatpush1.bf16.msra.mxu0 %v1280
    %1591 = vmatprep.subr.bf16.mxu0 %v1401
    %1592 = vmatpush2.bf16.msra.mxu0 %v1400
    %1593 = vmatprep.subr.bf16.mxu0 %v1393
    %1594 = vmatpush2.bf16.msra.mxu0 %v1392
    %1595 = vmatprep.subr.bf16.mxu0 %v1385
    %1596 = vmatpush2.bf16.msra.mxu0 %v1384
    %1597 = vmatprep.subr.bf16.mxu0 %v1377
    %1598 = vmatpush2.bf16.msra.mxu0 %v1376
    %1599 = vmatprep.subr.bf16.mxu0 %v1369
    %1600 = vmatpush2.bf16.msra.mxu0 %v1368
    %1601 = vmatprep.subr.bf16.mxu0 %v1361
    %1602 = vmatpush2.bf16.msra.mxu0 %v1360
    %1603 = vmatprep.subr.bf16.mxu0 %v1353
    %1604 = vmatpush2.bf16.msra.mxu0 %v1352
    %1605 = vmatprep.subr.bf16.mxu0 %v1345
    %1606 = vmatpush2.bf16.msra.mxu0 %v1344
    %1607 = vmatprep.mubr.bf16.mxu0 %v891
    %1608 = vmatmul.mubr.bf16.gmra.mxu0 %v890
    %v1609 = vpop.f32.mrf.mxu0
    %v1610 = vadd.f32 %v808, %v1609
    %v1611 = vpop.f32.mrf.mxu0
    %v1612 = vadd.f32 %v812, %v1611
    %v1613 = vpop.f32.mrf.mxu0
    %v1614 = vpop.f32.mrf.mxu0
    %1615 = vdwg.mxu0
    %1616 = vmatprep.subr.bf16.mxu0 %v1339
    %1617 = vmatpush1.bf16.msra.mxu0 %v1338
    %1618 = vmatprep.subr.bf16.mxu0 %v1331
    %1619 = vmatpush1.bf16.msra.mxu0 %v1330
    %1620 = vmatprep.subr.bf16.mxu0 %v1323
    %1621 = vmatpush1.bf16.msra.mxu0 %v1322
    %1622 = vmatprep.subr.bf16.mxu0 %v1315
    %1623 = vmatpush1.bf16.msra.mxu0 %v1314
    %1624 = vmatprep.subr.bf16.mxu0 %v1307
    %1625 = vmatpush1.bf16.msra.mxu0 %v1306
    %1626 = vmatprep.subr.bf16.mxu0 %v1299
    %1627 = vmatpush1.bf16.msra.mxu0 %v1298
    %1628 = vmatprep.subr.bf16.mxu0 %v1291
    %1629 = vmatpush1.bf16.msra.mxu0 %v1290
    %1630 = vmatprep.subr.bf16.mxu0 %v1283
    %1631 = vmatpush1.bf16.msra.mxu0 %v1282
    %1632 = vmatprep.subr.bf16.mxu0 %v1403
    %1633 = vmatpush2.bf16.msra.mxu0 %v1402
    %1634 = vmatprep.subr.bf16.mxu0 %v1395
    %1635 = vmatpush2.bf16.msra.mxu0 %v1394
    %1636 = vmatprep.subr.bf16.mxu0 %v1387
    %1637 = vmatpush2.bf16.msra.mxu0 %v1386
    %1638 = vmatprep.subr.bf16.mxu0 %v1379
    %1639 = vmatpush2.bf16.msra.mxu0 %v1378
    %1640 = vmatprep.subr.bf16.mxu0 %v1371
    %1641 = vmatpush2.bf16.msra.mxu0 %v1370
    %1642 = vmatprep.subr.bf16.mxu0 %v1363
    %1643 = vmatpush2.bf16.msra.mxu0 %v1362
    %1644 = vmatprep.subr.bf16.mxu0 %v1355
    %1645 = vmatpush2.bf16.msra.mxu0 %v1354
    %1646 = vmatprep.subr.bf16.mxu0 %v1347
    %1647 = vmatpush2.bf16.msra.mxu0 %v1346
    %1648 = vmatprep.mubr.bf16.mxu0 %v891
    %1649 = vmatmul.mubr.bf16.gmra.mxu0 %v890
    %v1650 = vpop.f32.mrf.mxu0
    %v1651 = vadd.f32 %v816, %v1650
    %v1652 = vpop.f32.mrf.mxu0
    %v1653 = vadd.f32 %v820, %v1652
    %v1654 = vpop.f32.mrf.mxu0
    %v1655 = vpop.f32.mrf.mxu0
    %1656 = vdwg.mxu0
    %1657 = vmatprep.subr.bf16.mxu0 %v1341
    %1658 = vmatpush1.bf16.msra.mxu0 %v1340
    %1659 = vmatprep.subr.bf16.mxu0 %v1333
    %1660 = vmatpush1.bf16.msra.mxu0 %v1332
    %1661 = vmatprep.subr.bf16.mxu0 %v1325
    %1662 = vmatpush1.bf16.msra.mxu0 %v1324
    %1663 = vmatprep.subr.bf16.mxu0 %v1317
    %1664 = vmatpush1.bf16.msra.mxu0 %v1316
    %1665 = vmatprep.subr.bf16.mxu0 %v1309
    %1666 = vmatpush1.bf16.msra.mxu0 %v1308
    %1667 = vmatprep.subr.bf16.mxu0 %v1301
    %1668 = vmatpush1.bf16.msra.mxu0 %v1300
    %1669 = vmatprep.subr.bf16.mxu0 %v1293
    %1670 = vmatpush1.bf16.msra.mxu0 %v1292
    %1671 = vmatprep.subr.bf16.mxu0 %v1285
    %1672 = vmatpush1.bf16.msra.mxu0 %v1284
    %1673 = vmatprep.subr.bf16.mxu0 %v1405
    %1674 = vmatpush2.bf16.msra.mxu0 %v1404
    %1675 = vmatprep.subr.bf16.mxu0 %v1397
    %1676 = vmatpush2.bf16.msra.mxu0 %v1396
    %1677 = vmatprep.subr.bf16.mxu0 %v1389
    %1678 = vmatpush2.bf16.msra.mxu0 %v1388
    %1679 = vmatprep.subr.bf16.mxu0 %v1381
    %1680 = vmatpush2.bf16.msra.mxu0 %v1380
    %1681 = vmatprep.subr.bf16.mxu0 %v1373
    %1682 = vmatpush2.bf16.msra.mxu0 %v1372
    %1683 = vmatprep.subr.bf16.mxu0 %v1365
    %1684 = vmatpush2.bf16.msra.mxu0 %v1364
    %1685 = vmatprep.subr.bf16.mxu0 %v1357
    %1686 = vmatpush2.bf16.msra.mxu0 %v1356
    %1687 = vmatprep.subr.bf16.mxu0 %v1349
    %1688 = vmatpush2.bf16.msra.mxu0 %v1348
    %1689 = vmatprep.mubr.bf16.mxu0 %v891
    %1690 = vmatmul.mubr.bf16.gmra.mxu0 %v890
    %v1691 = vpop.f32.mrf.mxu0
    %v1692 = vadd.f32 %v824, %v1691
    %v1693 = vpop.f32.mrf.mxu0
    %v1694 = vadd.f32 %v828, %v1693
    %v1695 = vpop.f32.mrf.mxu0
    %v1696 = vpop.f32.mrf.mxu0
    %1697 = vdwg.mxu0
    %v1698 = vpack.c.bf16 %v1569, %v1569
    %v1699 = vpack.c.bf16 %v1571, %v1571
    %v1700 = vpack.c.bf16 %v1610, %v1610
    %v1701 = vpack.c.bf16 %v1612, %v1612
    %v1702 = vpack.c.bf16 %v1651, %v1651
    %v1703 = vpack.c.bf16 %v1653, %v1653
    %v1704 = vpack.c.bf16 %v1692, %v1692
    %v1705 = vpack.c.bf16 %v1694, %v1694
    %v1706 = vld [vmem:[#allocation4] sm:$0xff]
    %v1707 = vld [vmem:[#allocation4 + $0x8] sm:$0xff]
    %v1708 = vld [vmem:[#allocation4 + $0x10] sm:$0xff]
    %v1709 = vld [vmem:[#allocation4 + $0x18] sm:$0xff]
    %v1710 = vld [vmem:[#allocation4 + $0x20] sm:$0xff]
    %v1711 = vld [vmem:[#allocation4 + $0x28] sm:$0xff]
    %v1712 = vld [vmem:[#allocation4 + $0x30] sm:$0xff]
    %v1713 = vld [vmem:[#allocation4 + $0x38] sm:$0xff]
    %v1714 = vld [vmem:[#allocation4 + $0x40] sm:$0xff]
    %v1715 = vld [vmem:[#allocation4 + $0x48] sm:$0xff]
    %v1716 = vld [vmem:[#allocation4 + $0x50] sm:$0xff]
    %v1717 = vld [vmem:[#allocation4 + $0x58] sm:$0xff]
    %v1718 = vld [vmem:[#allocation4 + $0x60] sm:$0xff]
    %v1719 = vld [vmem:[#allocation4 + $0x68] sm:$0xff]
    %v1720 = vld [vmem:[#allocation4 + $0x70] sm:$0xff]
    %v1721 = vld [vmem:[#allocation4 + $0x78] sm:$0xff]
    %v1722 = vld [vmem:[#allocation4 + $0x80] sm:$0xff]
    %v1723 = vld [vmem:[#allocation4 + $0x88] sm:$0xff]
    %v1724 = vld [vmem:[#allocation4 + $0x90] sm:$0xff]
    %v1725 = vld [vmem:[#allocation4 + $0x98] sm:$0xff]
    %v1726 = vld [vmem:[#allocation4 + $0xa0] sm:$0xff]
    %v1727 = vld [vmem:[#allocation4 + $0xa8] sm:$0xff]
    %v1728 = vld [vmem:[#allocation4 + $0xb0] sm:$0xff]
    %v1729 = vld [vmem:[#allocation4 + $0xb8] sm:$0xff]
    %v1730 = vld [vmem:[#allocation4 + $0xc0] sm:$0xff]
    %v1731 = vld [vmem:[#allocation4 + $0xc8] sm:$0xff]
    %v1732 = vld [vmem:[#allocation4 + $0xd0] sm:$0xff]
    %v1733 = vld [vmem:[#allocation4 + $0xd8] sm:$0xff]
    %v1734 = vld [vmem:[#allocation4 + $0xe0] sm:$0xff]
    %v1735 = vld [vmem:[#allocation4 + $0xe8] sm:$0xff]
    %v1736 = vld [vmem:[#allocation4 + $0xf0] sm:$0xff]
    %v1737 = vld [vmem:[#allocation4 + $0xf8] sm:$0xff]
    %v1738 = vld [vmem:[#allocation4 + $0x100] sm:$0xff]
    %v1739 = vld [vmem:[#allocation4 + $0x108] sm:$0xff]
    %v1740 = vld [vmem:[#allocation4 + $0x110] sm:$0xff]
    %v1741 = vld [vmem:[#allocation4 + $0x118] sm:$0xff]
    %v1742 = vld [vmem:[#allocation4 + $0x120] sm:$0xff]
    %v1743 = vld [vmem:[#allocation4 + $0x128] sm:$0xff]
    %v1744 = vld [vmem:[#allocation4 + $0x130] sm:$0xff]
    %v1745 = vld [vmem:[#allocation4 + $0x138] sm:$0xff]
    %v1746 = vld [vmem:[#allocation4 + $0x140] sm:$0xff]
    %v1747 = vld [vmem:[#allocation4 + $0x148] sm:$0xff]
    %v1748 = vld [vmem:[#allocation4 + $0x150] sm:$0xff]
    %v1749 = vld [vmem:[#allocation4 + $0x158] sm:$0xff]
    %v1750 = vld [vmem:[#allocation4 + $0x160] sm:$0xff]
    %v1751 = vld [vmem:[#allocation4 + $0x168] sm:$0xff]
    %v1752 = vld [vmem:[#allocation4 + $0x170] sm:$0xff]
    %v1753 = vld [vmem:[#allocation4 + $0x178] sm:$0xff]
    %v1754 = vld [vmem:[#allocation4 + $0x180] sm:$0xff]
    %v1755 = vld [vmem:[#allocation4 + $0x188] sm:$0xff]
    %v1756 = vld [vmem:[#allocation4 + $0x190] sm:$0xff]
    %v1757 = vld [vmem:[#allocation4 + $0x198] sm:$0xff]
    %v1758 = vld [vmem:[#allocation4 + $0x1a0] sm:$0xff]
    %v1759 = vld [vmem:[#allocation4 + $0x1a8] sm:$0xff]
    %v1760 = vld [vmem:[#allocation4 + $0x1b0] sm:$0xff]
    %v1761 = vld [vmem:[#allocation4 + $0x1b8] sm:$0xff]
    %v1762 = vld [vmem:[#allocation4 + $0x1c0] sm:$0xff]
    %v1763 = vld [vmem:[#allocation4 + $0x1c8] sm:$0xff]
    %v1764 = vld [vmem:[#allocation4 + $0x1d0] sm:$0xff]
    %v1765 = vld [vmem:[#allocation4 + $0x1d8] sm:$0xff]
    %v1766 = vld [vmem:[#allocation4 + $0x1e0] sm:$0xff]
    %v1767 = vld [vmem:[#allocation4 + $0x1e8] sm:$0xff]
    %v1768 = vld [vmem:[#allocation4 + $0x1f0] sm:$0xff]
    %v1769 = vld [vmem:[#allocation4 + $0x1f8] sm:$0xff]
    %v1770 = vld [vmem:[#allocation4 + $0x200] sm:$0xff]
    %v1771 = vld [vmem:[#allocation4 + $0x208] sm:$0xff]
    %v1772 = vld [vmem:[#allocation4 + $0x210] sm:$0xff]
    %v1773 = vld [vmem:[#allocation4 + $0x218] sm:$0xff]
    %v1774 = vld [vmem:[#allocation4 + $0x220] sm:$0xff]
    %v1775 = vld [vmem:[#allocation4 + $0x228] sm:$0xff]
    %v1776 = vld [vmem:[#allocation4 + $0x230] sm:$0xff]
    %v1777 = vld [vmem:[#allocation4 + $0x238] sm:$0xff]
    %v1778 = vld [vmem:[#allocation4 + $0x240] sm:$0xff]
    %v1779 = vld [vmem:[#allocation4 + $0x248] sm:$0xff]
    %v1780 = vld [vmem:[#allocation4 + $0x250] sm:$0xff]
    %v1781 = vld [vmem:[#allocation4 + $0x258] sm:$0xff]
    %v1782 = vld [vmem:[#allocation4 + $0x260] sm:$0xff]
    %v1783 = vld [vmem:[#allocation4 + $0x268] sm:$0xff]
    %v1784 = vld [vmem:[#allocation4 + $0x270] sm:$0xff]
    %v1785 = vld [vmem:[#allocation4 + $0x278] sm:$0xff]
    %v1786 = vld [vmem:[#allocation4 + $0x280] sm:$0xff]
    %v1787 = vld [vmem:[#allocation4 + $0x288] sm:$0xff]
    %v1788 = vld [vmem:[#allocation4 + $0x290] sm:$0xff]
    %v1789 = vld [vmem:[#allocation4 + $0x298] sm:$0xff]
    %v1790 = vld [vmem:[#allocation4 + $0x2a0] sm:$0xff]
    %v1791 = vld [vmem:[#allocation4 + $0x2a8] sm:$0xff]
    %v1792 = vld [vmem:[#allocation4 + $0x2b0] sm:$0xff]
    %v1793 = vld [vmem:[#allocation4 + $0x2b8] sm:$0xff]
    %v1794 = vld [vmem:[#allocation4 + $0x2c0] sm:$0xff]
    %v1795 = vld [vmem:[#allocation4 + $0x2c8] sm:$0xff]
    %v1796 = vld [vmem:[#allocation4 + $0x2d0] sm:$0xff]
    %v1797 = vld [vmem:[#allocation4 + $0x2d8] sm:$0xff]
    %v1798 = vld [vmem:[#allocation4 + $0x2e0] sm:$0xff]
    %v1799 = vld [vmem:[#allocation4 + $0x2e8] sm:$0xff]
    %v1800 = vld [vmem:[#allocation4 + $0x2f0] sm:$0xff]
    %v1801 = vld [vmem:[#allocation4 + $0x2f8] sm:$0xff]
    %v1802 = vld [vmem:[#allocation4 + $0x300] sm:$0xff]
    %v1803 = vld [vmem:[#allocation4 + $0x308] sm:$0xff]
    %v1804 = vld [vmem:[#allocation4 + $0x310] sm:$0xff]
    %v1805 = vld [vmem:[#allocation4 + $0x318] sm:$0xff]
    %v1806 = vld [vmem:[#allocation4 + $0x320] sm:$0xff]
    %v1807 = vld [vmem:[#allocation4 + $0x328] sm:$0xff]
    %v1808 = vld [vmem:[#allocation4 + $0x330] sm:$0xff]
    %v1809 = vld [vmem:[#allocation4 + $0x338] sm:$0xff]
    %v1810 = vld [vmem:[#allocation4 + $0x340] sm:$0xff]
    %v1811 = vld [vmem:[#allocation4 + $0x348] sm:$0xff]
    %v1812 = vld [vmem:[#allocation4 + $0x350] sm:$0xff]
    %v1813 = vld [vmem:[#allocation4 + $0x358] sm:$0xff]
    %v1814 = vld [vmem:[#allocation4 + $0x360] sm:$0xff]
    %v1815 = vld [vmem:[#allocation4 + $0x368] sm:$0xff]
    %v1816 = vld [vmem:[#allocation4 + $0x370] sm:$0xff]
    %v1817 = vld [vmem:[#allocation4 + $0x378] sm:$0xff]
    %v1818 = vld [vmem:[#allocation4 + $0x380] sm:$0xff]
    %v1819 = vld [vmem:[#allocation4 + $0x388] sm:$0xff]
    %v1820 = vld [vmem:[#allocation4 + $0x390] sm:$0xff]
    %v1821 = vld [vmem:[#allocation4 + $0x398] sm:$0xff]
    %v1822 = vld [vmem:[#allocation4 + $0x3a0] sm:$0xff]
    %v1823 = vld [vmem:[#allocation4 + $0x3a8] sm:$0xff]
    %v1824 = vld [vmem:[#allocation4 + $0x3b0] sm:$0xff]
    %v1825 = vld [vmem:[#allocation4 + $0x3b8] sm:$0xff]
    %v1826 = vld [vmem:[#allocation4 + $0x3c0] sm:$0xff]
    %v1827 = vld [vmem:[#allocation4 + $0x3c8] sm:$0xff]
    %v1828 = vld [vmem:[#allocation4 + $0x3d0] sm:$0xff]
    %v1829 = vld [vmem:[#allocation4 + $0x3d8] sm:$0xff]
    %v1830 = vld [vmem:[#allocation4 + $0x3e0] sm:$0xff]
    %v1831 = vld [vmem:[#allocation4 + $0x3e8] sm:$0xff]
    %v1832 = vld [vmem:[#allocation4 + $0x3f0] sm:$0xff]
    %v1833 = vld [vmem:[#allocation4 + $0x3f8] sm:$0xff]
    %v1834 = vld [vmem:[#allocation4 + $0x400] sm:$0xff]
    %v1835 = vld [vmem:[#allocation4 + $0x408] sm:$0xff]
    %v1836 = vld [vmem:[#allocation4 + $0x410] sm:$0xff]
    %v1837 = vld [vmem:[#allocation4 + $0x418] sm:$0xff]
    %v1838 = vld [vmem:[#allocation4 + $0x420] sm:$0xff]
    %v1839 = vld [vmem:[#allocation4 + $0x428] sm:$0xff]
    %v1840 = vld [vmem:[#allocation4 + $0x430] sm:$0xff]
    %v1841 = vld [vmem:[#allocation4 + $0x438] sm:$0xff]
    %v1842 = vld [vmem:[#allocation4 + $0x440] sm:$0xff]
    %v1843 = vld [vmem:[#allocation4 + $0x448] sm:$0xff]
    %v1844 = vld [vmem:[#allocation4 + $0x450] sm:$0xff]
    %v1845 = vld [vmem:[#allocation4 + $0x458] sm:$0xff]
    %v1846 = vld [vmem:[#allocation4 + $0x460] sm:$0xff]
    %v1847 = vld [vmem:[#allocation4 + $0x468] sm:$0xff]
    %v1848 = vld [vmem:[#allocation4 + $0x470] sm:$0xff]
    %v1849 = vld [vmem:[#allocation4 + $0x478] sm:$0xff]
    %v1850 = vld [vmem:[#allocation4 + $0x480] sm:$0xff]
    %v1851 = vld [vmem:[#allocation4 + $0x488] sm:$0xff]
    %v1852 = vld [vmem:[#allocation4 + $0x490] sm:$0xff]
    %v1853 = vld [vmem:[#allocation4 + $0x498] sm:$0xff]
    %v1854 = vld [vmem:[#allocation4 + $0x4a0] sm:$0xff]
    %v1855 = vld [vmem:[#allocation4 + $0x4a8] sm:$0xff]
    %v1856 = vld [vmem:[#allocation4 + $0x4b0] sm:$0xff]
    %v1857 = vld [vmem:[#allocation4 + $0x4b8] sm:$0xff]
    %v1858 = vld [vmem:[#allocation4 + $0x4c0] sm:$0xff]
    %v1859 = vld [vmem:[#allocation4 + $0x4c8] sm:$0xff]
    %v1860 = vld [vmem:[#allocation4 + $0x4d0] sm:$0xff]
    %v1861 = vld [vmem:[#allocation4 + $0x4d8] sm:$0xff]
    %v1862 = vld [vmem:[#allocation4 + $0x4e0] sm:$0xff]
    %v1863 = vld [vmem:[#allocation4 + $0x4e8] sm:$0xff]
    %v1864 = vld [vmem:[#allocation4 + $0x4f0] sm:$0xff]
    %v1865 = vld [vmem:[#allocation4 + $0x4f8] sm:$0xff]
    %v1866 = vld [vmem:[#allocation4 + $0x500] sm:$0xff]
    %v1867 = vld [vmem:[#allocation4 + $0x508] sm:$0xff]
    %v1868 = vld [vmem:[#allocation4 + $0x510] sm:$0xff]
    %v1869 = vld [vmem:[#allocation4 + $0x518] sm:$0xff]
    %v1870 = vld [vmem:[#allocation4 + $0x520] sm:$0xff]
    %v1871 = vld [vmem:[#allocation4 + $0x528] sm:$0xff]
    %v1872 = vld [vmem:[#allocation4 + $0x530] sm:$0xff]
    %v1873 = vld [vmem:[#allocation4 + $0x538] sm:$0xff]
    %v1874 = vld [vmem:[#allocation4 + $0x540] sm:$0xff]
    %v1875 = vld [vmem:[#allocation4 + $0x548] sm:$0xff]
    %v1876 = vld [vmem:[#allocation4 + $0x550] sm:$0xff]
    %v1877 = vld [vmem:[#allocation4 + $0x558] sm:$0xff]
    %v1878 = vld [vmem:[#allocation4 + $0x560] sm:$0xff]
    %v1879 = vld [vmem:[#allocation4 + $0x568] sm:$0xff]
    %v1880 = vld [vmem:[#allocation4 + $0x570] sm:$0xff]
    %v1881 = vld [vmem:[#allocation4 + $0x578] sm:$0xff]
    %v1882 = vld [vmem:[#allocation4 + $0x580] sm:$0xff]
    %v1883 = vld [vmem:[#allocation4 + $0x588] sm:$0xff]
    %v1884 = vld [vmem:[#allocation4 + $0x590] sm:$0xff]
    %v1885 = vld [vmem:[#allocation4 + $0x598] sm:$0xff]
    %v1886 = vld [vmem:[#allocation4 + $0x5a0] sm:$0xff]
    %v1887 = vld [vmem:[#allocation4 + $0x5a8] sm:$0xff]
    %v1888 = vld [vmem:[#allocation4 + $0x5b0] sm:$0xff]
    %v1889 = vld [vmem:[#allocation4 + $0x5b8] sm:$0xff]
    %v1890 = vld [vmem:[#allocation4 + $0x5c0] sm:$0xff]
    %v1891 = vld [vmem:[#allocation4 + $0x5c8] sm:$0xff]
    %v1892 = vld [vmem:[#allocation4 + $0x5d0] sm:$0xff]
    %v1893 = vld [vmem:[#allocation4 + $0x5d8] sm:$0xff]
    %v1894 = vld [vmem:[#allocation4 + $0x5e0] sm:$0xff]
    %v1895 = vld [vmem:[#allocation4 + $0x5e8] sm:$0xff]
    %v1896 = vld [vmem:[#allocation4 + $0x5f0] sm:$0xff]
    %v1897 = vld [vmem:[#allocation4 + $0x5f8] sm:$0xff]
    %v1898 = vld [vmem:[#allocation4 + $0x600] sm:$0xff]
    %v1899 = vld [vmem:[#allocation4 + $0x608] sm:$0xff]
    %v1900 = vld [vmem:[#allocation4 + $0x610] sm:$0xff]
    %v1901 = vld [vmem:[#allocation4 + $0x618] sm:$0xff]
    %v1902 = vld [vmem:[#allocation4 + $0x620] sm:$0xff]
    %v1903 = vld [vmem:[#allocation4 + $0x628] sm:$0xff]
    %v1904 = vld [vmem:[#allocation4 + $0x630] sm:$0xff]
    %v1905 = vld [vmem:[#allocation4 + $0x638] sm:$0xff]
    %v1906 = vld [vmem:[#allocation4 + $0x640] sm:$0xff]
    %v1907 = vld [vmem:[#allocation4 + $0x648] sm:$0xff]
    %v1908 = vld [vmem:[#allocation4 + $0x650] sm:$0xff]
    %v1909 = vld [vmem:[#allocation4 + $0x658] sm:$0xff]
    %v1910 = vld [vmem:[#allocation4 + $0x660] sm:$0xff]
    %v1911 = vld [vmem:[#allocation4 + $0x668] sm:$0xff]
    %v1912 = vld [vmem:[#allocation4 + $0x670] sm:$0xff]
    %v1913 = vld [vmem:[#allocation4 + $0x678] sm:$0xff]
    %v1914 = vld [vmem:[#allocation4 + $0x680] sm:$0xff]
    %v1915 = vld [vmem:[#allocation4 + $0x688] sm:$0xff]
    %v1916 = vld [vmem:[#allocation4 + $0x690] sm:$0xff]
    %v1917 = vld [vmem:[#allocation4 + $0x698] sm:$0xff]
    %v1918 = vld [vmem:[#allocation4 + $0x6a0] sm:$0xff]
    %v1919 = vld [vmem:[#allocation4 + $0x6a8] sm:$0xff]
    %v1920 = vld [vmem:[#allocation4 + $0x6b0] sm:$0xff]
    %v1921 = vld [vmem:[#allocation4 + $0x6b8] sm:$0xff]
    %v1922 = vld [vmem:[#allocation4 + $0x6c0] sm:$0xff]
    %v1923 = vld [vmem:[#allocation4 + $0x6c8] sm:$0xff]
    %v1924 = vld [vmem:[#allocation4 + $0x6d0] sm:$0xff]
    %v1925 = vld [vmem:[#allocation4 + $0x6d8] sm:$0xff]
    %v1926 = vld [vmem:[#allocation4 + $0x6e0] sm:$0xff]
    %v1927 = vld [vmem:[#allocation4 + $0x6e8] sm:$0xff]
    %v1928 = vld [vmem:[#allocation4 + $0x6f0] sm:$0xff]
    %v1929 = vld [vmem:[#allocation4 + $0x6f8] sm:$0xff]
    %v1930 = vld [vmem:[#allocation4 + $0x700] sm:$0xff]
    %v1931 = vld [vmem:[#allocation4 + $0x708] sm:$0xff]
    %v1932 = vld [vmem:[#allocation4 + $0x710] sm:$0xff]
    %v1933 = vld [vmem:[#allocation4 + $0x718] sm:$0xff]
    %v1934 = vld [vmem:[#allocation4 + $0x720] sm:$0xff]
    %v1935 = vld [vmem:[#allocation4 + $0x728] sm:$0xff]
    %v1936 = vld [vmem:[#allocation4 + $0x730] sm:$0xff]
    %v1937 = vld [vmem:[#allocation4 + $0x738] sm:$0xff]
    %v1938 = vld [vmem:[#allocation4 + $0x740] sm:$0xff]
    %v1939 = vld [vmem:[#allocation4 + $0x748] sm:$0xff]
    %v1940 = vld [vmem:[#allocation4 + $0x750] sm:$0xff]
    %v1941 = vld [vmem:[#allocation4 + $0x758] sm:$0xff]
    %v1942 = vld [vmem:[#allocation4 + $0x760] sm:$0xff]
    %v1943 = vld [vmem:[#allocation4 + $0x768] sm:$0xff]
    %v1944 = vld [vmem:[#allocation4 + $0x770] sm:$0xff]
    %v1945 = vld [vmem:[#allocation4 + $0x778] sm:$0xff]
    %v1946 = vld [vmem:[#allocation4 + $0x780] sm:$0xff]
    %v1947 = vld [vmem:[#allocation4 + $0x788] sm:$0xff]
    %v1948 = vld [vmem:[#allocation4 + $0x790] sm:$0xff]
    %v1949 = vld [vmem:[#allocation4 + $0x798] sm:$0xff]
    %v1950 = vld [vmem:[#allocation4 + $0x7a0] sm:$0xff]
    %v1951 = vld [vmem:[#allocation4 + $0x7a8] sm:$0xff]
    %v1952 = vld [vmem:[#allocation4 + $0x7b0] sm:$0xff]
    %v1953 = vld [vmem:[#allocation4 + $0x7b8] sm:$0xff]
    %v1954 = vld [vmem:[#allocation4 + $0x7c0] sm:$0xff]
    %v1955 = vld [vmem:[#allocation4 + $0x7c8] sm:$0xff]
    %v1956 = vld [vmem:[#allocation4 + $0x7d0] sm:$0xff]
    %v1957 = vld [vmem:[#allocation4 + $0x7d8] sm:$0xff]
    %v1958 = vld [vmem:[#allocation4 + $0x7e0] sm:$0xff]
    %v1959 = vld [vmem:[#allocation4 + $0x7e8] sm:$0xff]
    %v1960 = vld [vmem:[#allocation4 + $0x7f0] sm:$0xff]
    %v1961 = vld [vmem:[#allocation4 + $0x7f8] sm:$0xff]
    %v1962 = vld [vmem:[%s6] sm:$0xf]
    %v1964 = vlaneseq
    %v1965 = vshrl.u32 %v1964, 7
    %v1966 = vsub.s32 0, %v1965
    %v1967 = vrot.slane %v1962, %v1966
    %v1968 = vlaneseq
    %v1969 = vshrl.u32 %v1968, 7
    %v1970 = vsub.s32 1, %v1969
    %v1971 = vrot.slane %v1962, %v1970
    %v1972 = vlaneseq
    %v1973 = vshrl.u32 %v1972, 7
    %v1974 = vsub.s32 2, %v1973
    %v1975 = vrot.slane %v1962, %v1974
    %v1976 = vlaneseq
    %v1977 = vshrl.u32 %v1976, 7
    %v1978 = vsub.s32 3, %v1977
    %v1979 = vrot.slane %v1962, %v1978
    %v2240 = vunpack.c.l.b16 %v1706
    %v2241 = vunpack.c.h.b16 %v1706
    %v2242 = vunpack.c.l.b16 %v1707
    %v2243 = vunpack.c.h.b16 %v1707
    %v2244 = vunpack.c.l.b16 %v1708
    %v2245 = vunpack.c.h.b16 %v1708
    %v2246 = vunpack.c.l.b16 %v1709
    %v2247 = vunpack.c.h.b16 %v1709
    %v2248 = vunpack.c.l.b16 %v1710
    %v2249 = vunpack.c.h.b16 %v1710
    %v2250 = vunpack.c.l.b16 %v1711
    %v2251 = vunpack.c.h.b16 %v1711
    %v2252 = vunpack.c.l.b16 %v1712
    %v2253 = vunpack.c.h.b16 %v1712
    %v2254 = vunpack.c.l.b16 %v1713
    %v2255 = vunpack.c.h.b16 %v1713
    %v2256 = vunpack.c.l.b16 %v1714
    %v2257 = vunpack.c.h.b16 %v1714
    %v2258 = vunpack.c.l.b16 %v1715
    %v2259 = vunpack.c.h.b16 %v1715
    %v2260 = vunpack.c.l.b16 %v1716
    %v2261 = vunpack.c.h.b16 %v1716
    %v2262 = vunpack.c.l.b16 %v1717
    %v2263 = vunpack.c.h.b16 %v1717
    %v2264 = vunpack.c.l.b16 %v1718
    %v2265 = vunpack.c.h.b16 %v1718
    %v2266 = vunpack.c.l.b16 %v1719
    %v2267 = vunpack.c.h.b16 %v1719
    %v2268 = vunpack.c.l.b16 %v1720
    %v2269 = vunpack.c.h.b16 %v1720
    %v2270 = vunpack.c.l.b16 %v1721
    %v2271 = vunpack.c.h.b16 %v1721
    %v2272 = vunpack.c.l.b16 %v1722
    %v2273 = vunpack.c.h.b16 %v1722
    %v2274 = vunpack.c.l.b16 %v1723
    %v2275 = vunpack.c.h.b16 %v1723
    %v2276 = vunpack.c.l.b16 %v1724
    %v2277 = vunpack.c.h.b16 %v1724
    %v2278 = vunpack.c.l.b16 %v1725
    %v2279 = vunpack.c.h.b16 %v1725
    %v2280 = vunpack.c.l.b16 %v1726
    %v2281 = vunpack.c.h.b16 %v1726
    %v2282 = vunpack.c.l.b16 %v1727
    %v2283 = vunpack.c.h.b16 %v1727
    %v2284 = vunpack.c.l.b16 %v1728
    %v2285 = vunpack.c.h.b16 %v1728
    %v2286 = vunpack.c.l.b16 %v1729
    %v2287 = vunpack.c.h.b16 %v1729
    %v2288 = vunpack.c.l.b16 %v1730
    %v2289 = vunpack.c.h.b16 %v1730
    %v2290 = vunpack.c.l.b16 %v1731
    %v2291 = vunpack.c.h.b16 %v1731
    %v2292 = vunpack.c.l.b16 %v1732
    %v2293 = vunpack.c.h.b16 %v1732
    %v2294 = vunpack.c.l.b16 %v1733
    %v2295 = vunpack.c.h.b16 %v1733
    %v2296 = vunpack.c.l.b16 %v1734
    %v2297 = vunpack.c.h.b16 %v1734
    %v2298 = vunpack.c.l.b16 %v1735
    %v2299 = vunpack.c.h.b16 %v1735
    %v2300 = vunpack.c.l.b16 %v1736
    %v2301 = vunpack.c.h.b16 %v1736
    %v2302 = vunpack.c.l.b16 %v1737
    %v2303 = vunpack.c.h.b16 %v1737
    %v2304 = vunpack.c.l.b16 %v1738
    %v2305 = vunpack.c.h.b16 %v1738
    %v2306 = vunpack.c.l.b16 %v1739
    %v2307 = vunpack.c.h.b16 %v1739
    %v2308 = vunpack.c.l.b16 %v1740
    %v2309 = vunpack.c.h.b16 %v1740
    %v2310 = vunpack.c.l.b16 %v1741
    %v2311 = vunpack.c.h.b16 %v1741
    %v2312 = vunpack.c.l.b16 %v1742
    %v2313 = vunpack.c.h.b16 %v1742
    %v2314 = vunpack.c.l.b16 %v1743
    %v2315 = vunpack.c.h.b16 %v1743
    %v2316 = vunpack.c.l.b16 %v1744
    %v2317 = vunpack.c.h.b16 %v1744
    %v2318 = vunpack.c.l.b16 %v1745
    %v2319 = vunpack.c.h.b16 %v1745
    %v2320 = vunpack.c.l.b16 %v1746
    %v2321 = vunpack.c.h.b16 %v1746
    %v2322 = vunpack.c.l.b16 %v1747
    %v2323 = vunpack.c.h.b16 %v1747
    %v2324 = vunpack.c.l.b16 %v1748
    %v2325 = vunpack.c.h.b16 %v1748
    %v2326 = vunpack.c.l.b16 %v1749
    %v2327 = vunpack.c.h.b16 %v1749
    %v2328 = vunpack.c.l.b16 %v1750
    %v2329 = vunpack.c.h.b16 %v1750
    %v2330 = vunpack.c.l.b16 %v1751
    %v2331 = vunpack.c.h.b16 %v1751
    %v2332 = vunpack.c.l.b16 %v1752
    %v2333 = vunpack.c.h.b16 %v1752
    %v2334 = vunpack.c.l.b16 %v1753
    %v2335 = vunpack.c.h.b16 %v1753
    %v2336 = vunpack.c.l.b16 %v1754
    %v2337 = vunpack.c.h.b16 %v1754
    %v2338 = vunpack.c.l.b16 %v1755
    %v2339 = vunpack.c.h.b16 %v1755
    %v2340 = vunpack.c.l.b16 %v1756
    %v2341 = vunpack.c.h.b16 %v1756
    %v2342 = vunpack.c.l.b16 %v1757
    %v2343 = vunpack.c.h.b16 %v1757
    %v2344 = vunpack.c.l.b16 %v1758
    %v2345 = vunpack.c.h.b16 %v1758
    %v2346 = vunpack.c.l.b16 %v1759
    %v2347 = vunpack.c.h.b16 %v1759
    %v2348 = vunpack.c.l.b16 %v1760
    %v2349 = vunpack.c.h.b16 %v1760
    %v2350 = vunpack.c.l.b16 %v1761
    %v2351 = vunpack.c.h.b16 %v1761
    %v2352 = vunpack.c.l.b16 %v1762
    %v2353 = vunpack.c.h.b16 %v1762
    %v2354 = vunpack.c.l.b16 %v1763
    %v2355 = vunpack.c.h.b16 %v1763
    %v2356 = vunpack.c.l.b16 %v1764
    %v2357 = vunpack.c.h.b16 %v1764
    %v2358 = vunpack.c.l.b16 %v1765
    %v2359 = vunpack.c.h.b16 %v1765
    %v2360 = vunpack.c.l.b16 %v1766
    %v2361 = vunpack.c.h.b16 %v1766
    %v2362 = vunpack.c.l.b16 %v1767
    %v2363 = vunpack.c.h.b16 %v1767
    %v2364 = vunpack.c.l.b16 %v1768
    %v2365 = vunpack.c.h.b16 %v1768
    %v2366 = vunpack.c.l.b16 %v1769
    %v2367 = vunpack.c.h.b16 %v1769
    %v2368 = vunpack.c.l.b16 %v1770
    %v2369 = vunpack.c.h.b16 %v1770
    %v2370 = vunpack.c.l.b16 %v1771
    %v2371 = vunpack.c.h.b16 %v1771
    %v2372 = vunpack.c.l.b16 %v1772
    %v2373 = vunpack.c.h.b16 %v1772
    %v2374 = vunpack.c.l.b16 %v1773
    %v2375 = vunpack.c.h.b16 %v1773
    %v2376 = vunpack.c.l.b16 %v1774
    %v2377 = vunpack.c.h.b16 %v1774
    %v2378 = vunpack.c.l.b16 %v1775
    %v2379 = vunpack.c.h.b16 %v1775
    %v2380 = vunpack.c.l.b16 %v1776
    %v2381 = vunpack.c.h.b16 %v1776
    %v2382 = vunpack.c.l.b16 %v1777
    %v2383 = vunpack.c.h.b16 %v1777
    %v2384 = vunpack.c.l.b16 %v1778
    %v2385 = vunpack.c.h.b16 %v1778
    %v2386 = vunpack.c.l.b16 %v1779
    %v2387 = vunpack.c.h.b16 %v1779
    %v2388 = vunpack.c.l.b16 %v1780
    %v2389 = vunpack.c.h.b16 %v1780
    %v2390 = vunpack.c.l.b16 %v1781
    %v2391 = vunpack.c.h.b16 %v1781
    %v2392 = vunpack.c.l.b16 %v1782
    %v2393 = vunpack.c.h.b16 %v1782
    %v2394 = vunpack.c.l.b16 %v1783
    %v2395 = vunpack.c.h.b16 %v1783
    %v2396 = vunpack.c.l.b16 %v1784
    %v2397 = vunpack.c.h.b16 %v1784
    %v2398 = vunpack.c.l.b16 %v1785
    %v2399 = vunpack.c.h.b16 %v1785
    %v2400 = vunpack.c.l.b16 %v1786
    %v2401 = vunpack.c.h.b16 %v1786
    %v2402 = vunpack.c.l.b16 %v1787
    %v2403 = vunpack.c.h.b16 %v1787
    %v2404 = vunpack.c.l.b16 %v1788
    %v2405 = vunpack.c.h.b16 %v1788
    %v2406 = vunpack.c.l.b16 %v1789
    %v2407 = vunpack.c.h.b16 %v1789
    %v2408 = vunpack.c.l.b16 %v1790
    %v2409 = vunpack.c.h.b16 %v1790
    %v2410 = vunpack.c.l.b16 %v1791
    %v2411 = vunpack.c.h.b16 %v1791
    %v2412 = vunpack.c.l.b16 %v1792
    %v2413 = vunpack.c.h.b16 %v1792
    %v2414 = vunpack.c.l.b16 %v1793
    %v2415 = vunpack.c.h.b16 %v1793
    %v2416 = vunpack.c.l.b16 %v1794
    %v2417 = vunpack.c.h.b16 %v1794
    %v2418 = vunpack.c.l.b16 %v1795
    %v2419 = vunpack.c.h.b16 %v1795
    %v2420 = vunpack.c.l.b16 %v1796
    %v2421 = vunpack.c.h.b16 %v1796
    %v2422 = vunpack.c.l.b16 %v1797
    %v2423 = vunpack.c.h.b16 %v1797
    %v2424 = vunpack.c.l.b16 %v1798
    %v2425 = vunpack.c.h.b16 %v1798
    %v2426 = vunpack.c.l.b16 %v1799
    %v2427 = vunpack.c.h.b16 %v1799
    %v2428 = vunpack.c.l.b16 %v1800
    %v2429 = vunpack.c.h.b16 %v1800
    %v2430 = vunpack.c.l.b16 %v1801
    %v2431 = vunpack.c.h.b16 %v1801
    %v2432 = vunpack.c.l.b16 %v1802
    %v2433 = vunpack.c.h.b16 %v1802
    %v2434 = vunpack.c.l.b16 %v1803
    %v2435 = vunpack.c.h.b16 %v1803
    %v2436 = vunpack.c.l.b16 %v1804
    %v2437 = vunpack.c.h.b16 %v1804
    %v2438 = vunpack.c.l.b16 %v1805
    %v2439 = vunpack.c.h.b16 %v1805
    %v2440 = vunpack.c.l.b16 %v1806
    %v2441 = vunpack.c.h.b16 %v1806
    %v2442 = vunpack.c.l.b16 %v1807
    %v2443 = vunpack.c.h.b16 %v1807
    %v2444 = vunpack.c.l.b16 %v1808
    %v2445 = vunpack.c.h.b16 %v1808
    %v2446 = vunpack.c.l.b16 %v1809
    %v2447 = vunpack.c.h.b16 %v1809
    %v2448 = vunpack.c.l.b16 %v1810
    %v2449 = vunpack.c.h.b16 %v1810
    %v2450 = vunpack.c.l.b16 %v1811
    %v2451 = vunpack.c.h.b16 %v1811
    %v2452 = vunpack.c.l.b16 %v1812
    %v2453 = vunpack.c.h.b16 %v1812
    %v2454 = vunpack.c.l.b16 %v1813
    %v2455 = vunpack.c.h.b16 %v1813
    %v2456 = vunpack.c.l.b16 %v1814
    %v2457 = vunpack.c.h.b16 %v1814
    %v2458 = vunpack.c.l.b16 %v1815
    %v2459 = vunpack.c.h.b16 %v1815
    %v2460 = vunpack.c.l.b16 %v1816
    %v2461 = vunpack.c.h.b16 %v1816
    %v2462 = vunpack.c.l.b16 %v1817
    %v2463 = vunpack.c.h.b16 %v1817
    %v2464 = vunpack.c.l.b16 %v1818
    %v2465 = vunpack.c.h.b16 %v1818
    %v2466 = vunpack.c.l.b16 %v1819
    %v2467 = vunpack.c.h.b16 %v1819
    %v2468 = vunpack.c.l.b16 %v1820
    %v2469 = vunpack.c.h.b16 %v1820
    %v2470 = vunpack.c.l.b16 %v1821
    %v2471 = vunpack.c.h.b16 %v1821
    %v2472 = vunpack.c.l.b16 %v1822
    %v2473 = vunpack.c.h.b16 %v1822
    %v2474 = vunpack.c.l.b16 %v1823
    %v2475 = vunpack.c.h.b16 %v1823
    %v2476 = vunpack.c.l.b16 %v1824
    %v2477 = vunpack.c.h.b16 %v1824
    %v2478 = vunpack.c.l.b16 %v1825
    %v2479 = vunpack.c.h.b16 %v1825
    %v2480 = vunpack.c.l.b16 %v1826
    %v2481 = vunpack.c.h.b16 %v1826
    %v2482 = vunpack.c.l.b16 %v1827
    %v2483 = vunpack.c.h.b16 %v1827
    %v2484 = vunpack.c.l.b16 %v1828
    %v2485 = vunpack.c.h.b16 %v1828
    %v2486 = vunpack.c.l.b16 %v1829
    %v2487 = vunpack.c.h.b16 %v1829
    %v2488 = vunpack.c.l.b16 %v1830
    %v2489 = vunpack.c.h.b16 %v1830
    %v2490 = vunpack.c.l.b16 %v1831
    %v2491 = vunpack.c.h.b16 %v1831
    %v2492 = vunpack.c.l.b16 %v1832
    %v2493 = vunpack.c.h.b16 %v1832
    %v2494 = vunpack.c.l.b16 %v1833
    %v2495 = vunpack.c.h.b16 %v1833
    %v2496 = vunpack.c.l.b16 %v1834
    %v2497 = vunpack.c.h.b16 %v1834
    %v2498 = vunpack.c.l.b16 %v1835
    %v2499 = vunpack.c.h.b16 %v1835
    %v2500 = vunpack.c.l.b16 %v1836
    %v2501 = vunpack.c.h.b16 %v1836
    %v2502 = vunpack.c.l.b16 %v1837
    %v2503 = vunpack.c.h.b16 %v1837
    %v2504 = vunpack.c.l.b16 %v1838
    %v2505 = vunpack.c.h.b16 %v1838
    %v2506 = vunpack.c.l.b16 %v1839
    %v2507 = vunpack.c.h.b16 %v1839
    %v2508 = vunpack.c.l.b16 %v1840
    %v2509 = vunpack.c.h.b16 %v1840
    %v2510 = vunpack.c.l.b16 %v1841
    %v2511 = vunpack.c.h.b16 %v1841
    %v2512 = vunpack.c.l.b16 %v1842
    %v2513 = vunpack.c.h.b16 %v1842
    %v2514 = vunpack.c.l.b16 %v1843
    %v2515 = vunpack.c.h.b16 %v1843
    %v2516 = vunpack.c.l.b16 %v1844
    %v2517 = vunpack.c.h.b16 %v1844
    %v2518 = vunpack.c.l.b16 %v1845
    %v2519 = vunpack.c.h.b16 %v1845
    %v2520 = vunpack.c.l.b16 %v1846
    %v2521 = vunpack.c.h.b16 %v1846
    %v2522 = vunpack.c.l.b16 %v1847
    %v2523 = vunpack.c.h.b16 %v1847
    %v2524 = vunpack.c.l.b16 %v1848
    %v2525 = vunpack.c.h.b16 %v1848
    %v2526 = vunpack.c.l.b16 %v1849
    %v2527 = vunpack.c.h.b16 %v1849
    %v2528 = vunpack.c.l.b16 %v1850
    %v2529 = vunpack.c.h.b16 %v1850
    %v2530 = vunpack.c.l.b16 %v1851
    %v2531 = vunpack.c.h.b16 %v1851
    %v2532 = vunpack.c.l.b16 %v1852
    %v2533 = vunpack.c.h.b16 %v1852
    %v2534 = vunpack.c.l.b16 %v1853
    %v2535 = vunpack.c.h.b16 %v1853
    %v2536 = vunpack.c.l.b16 %v1854
    %v2537 = vunpack.c.h.b16 %v1854
    %v2538 = vunpack.c.l.b16 %v1855
    %v2539 = vunpack.c.h.b16 %v1855
    %v2540 = vunpack.c.l.b16 %v1856
    %v2541 = vunpack.c.h.b16 %v1856
    %v2542 = vunpack.c.l.b16 %v1857
    %v2543 = vunpack.c.h.b16 %v1857
    %v2544 = vunpack.c.l.b16 %v1858
    %v2545 = vunpack.c.h.b16 %v1858
    %v2546 = vunpack.c.l.b16 %v1859
    %v2547 = vunpack.c.h.b16 %v1859
    %v2548 = vunpack.c.l.b16 %v1860
    %v2549 = vunpack.c.h.b16 %v1860
    %v2550 = vunpack.c.l.b16 %v1861
    %v2551 = vunpack.c.h.b16 %v1861
    %v2552 = vunpack.c.l.b16 %v1862
    %v2553 = vunpack.c.h.b16 %v1862
    %v2554 = vunpack.c.l.b16 %v1863
    %v2555 = vunpack.c.h.b16 %v1863
    %v2556 = vunpack.c.l.b16 %v1864
    %v2557 = vunpack.c.h.b16 %v1864
    %v2558 = vunpack.c.l.b16 %v1865
    %v2559 = vunpack.c.h.b16 %v1865
    %v2560 = vunpack.c.l.b16 %v1866
    %v2561 = vunpack.c.h.b16 %v1866
    %v2562 = vunpack.c.l.b16 %v1867
    %v2563 = vunpack.c.h.b16 %v1867
    %v2564 = vunpack.c.l.b16 %v1868
    %v2565 = vunpack.c.h.b16 %v1868
    %v2566 = vunpack.c.l.b16 %v1869
    %v2567 = vunpack.c.h.b16 %v1869
    %v2568 = vunpack.c.l.b16 %v1870
    %v2569 = vunpack.c.h.b16 %v1870
    %v2570 = vunpack.c.l.b16 %v1871
    %v2571 = vunpack.c.h.b16 %v1871
    %v2572 = vunpack.c.l.b16 %v1872
    %v2573 = vunpack.c.h.b16 %v1872
    %v2574 = vunpack.c.l.b16 %v1873
    %v2575 = vunpack.c.h.b16 %v1873
    %v2576 = vunpack.c.l.b16 %v1874
    %v2577 = vunpack.c.h.b16 %v1874
    %v2578 = vunpack.c.l.b16 %v1875
    %v2579 = vunpack.c.h.b16 %v1875
    %v2580 = vunpack.c.l.b16 %v1876
    %v2581 = vunpack.c.h.b16 %v1876
    %v2582 = vunpack.c.l.b16 %v1877
    %v2583 = vunpack.c.h.b16 %v1877
    %v2584 = vunpack.c.l.b16 %v1878
    %v2585 = vunpack.c.h.b16 %v1878
    %v2586 = vunpack.c.l.b16 %v1879
    %v2587 = vunpack.c.h.b16 %v1879
    %v2588 = vunpack.c.l.b16 %v1880
    %v2589 = vunpack.c.h.b16 %v1880
    %v2590 = vunpack.c.l.b16 %v1881
    %v2591 = vunpack.c.h.b16 %v1881
    %v2592 = vunpack.c.l.b16 %v1882
    %v2593 = vunpack.c.h.b16 %v1882
    %v2594 = vunpack.c.l.b16 %v1883
    %v2595 = vunpack.c.h.b16 %v1883
    %v2596 = vunpack.c.l.b16 %v1884
    %v2597 = vunpack.c.h.b16 %v1884
    %v2598 = vunpack.c.l.b16 %v1885
    %v2599 = vunpack.c.h.b16 %v1885
    %v2600 = vunpack.c.l.b16 %v1886
    %v2601 = vunpack.c.h.b16 %v1886
    %v2602 = vunpack.c.l.b16 %v1887
    %v2603 = vunpack.c.h.b16 %v1887
    %v2604 = vunpack.c.l.b16 %v1888
    %v2605 = vunpack.c.h.b16 %v1888
    %v2606 = vunpack.c.l.b16 %v1889
    %v2607 = vunpack.c.h.b16 %v1889
    %v2608 = vunpack.c.l.b16 %v1890
    %v2609 = vunpack.c.h.b16 %v1890
    %v2610 = vunpack.c.l.b16 %v1891
    %v2611 = vunpack.c.h.b16 %v1891
    %v2612 = vunpack.c.l.b16 %v1892
    %v2613 = vunpack.c.h.b16 %v1892
    %v2614 = vunpack.c.l.b16 %v1893
    %v2615 = vunpack.c.h.b16 %v1893
    %v2616 = vunpack.c.l.b16 %v1894
    %v2617 = vunpack.c.h.b16 %v1894
    %v2618 = vunpack.c.l.b16 %v1895
    %v2619 = vunpack.c.h.b16 %v1895
    %v2620 = vunpack.c.l.b16 %v1896
    %v2621 = vunpack.c.h.b16 %v1896
    %v2622 = vunpack.c.l.b16 %v1897
    %v2623 = vunpack.c.h.b16 %v1897
    %v2624 = vunpack.c.l.b16 %v1898
    %v2625 = vunpack.c.h.b16 %v1898
    %v2626 = vunpack.c.l.b16 %v1899
    %v2627 = vunpack.c.h.b16 %v1899
    %v2628 = vunpack.c.l.b16 %v1900
    %v2629 = vunpack.c.h.b16 %v1900
    %v2630 = vunpack.c.l.b16 %v1901
    %v2631 = vunpack.c.h.b16 %v1901
    %v2632 = vunpack.c.l.b16 %v1902
    %v2633 = vunpack.c.h.b16 %v1902
    %v2634 = vunpack.c.l.b16 %v1903
    %v2635 = vunpack.c.h.b16 %v1903
    %v2636 = vunpack.c.l.b16 %v1904
    %v2637 = vunpack.c.h.b16 %v1904
    %v2638 = vunpack.c.l.b16 %v1905
    %v2639 = vunpack.c.h.b16 %v1905
    %v2640 = vunpack.c.l.b16 %v1906
    %v2641 = vunpack.c.h.b16 %v1906
    %v2642 = vunpack.c.l.b16 %v1907
    %v2643 = vunpack.c.h.b16 %v1907
    %v2644 = vunpack.c.l.b16 %v1908
    %v2645 = vunpack.c.h.b16 %v1908
    %v2646 = vunpack.c.l.b16 %v1909
    %v2647 = vunpack.c.h.b16 %v1909
    %v2648 = vunpack.c.l.b16 %v1910
    %v2649 = vunpack.c.h.b16 %v1910
    %v2650 = vunpack.c.l.b16 %v1911
    %v2651 = vunpack.c.h.b16 %v1911
    %v2652 = vunpack.c.l.b16 %v1912
    %v2653 = vunpack.c.h.b16 %v1912
    %v2654 = vunpack.c.l.b16 %v1913
    %v2655 = vunpack.c.h.b16 %v1913
    %v2656 = vunpack.c.l.b16 %v1914
    %v2657 = vunpack.c.h.b16 %v1914
    %v2658 = vunpack.c.l.b16 %v1915
    %v2659 = vunpack.c.h.b16 %v1915
    %v2660 = vunpack.c.l.b16 %v1916
    %v2661 = vunpack.c.h.b16 %v1916
    %v2662 = vunpack.c.l.b16 %v1917
    %v2663 = vunpack.c.h.b16 %v1917
    %v2664 = vunpack.c.l.b16 %v1918
    %v2665 = vunpack.c.h.b16 %v1918
    %v2666 = vunpack.c.l.b16 %v1919
    %v2667 = vunpack.c.h.b16 %v1919
    %v2668 = vunpack.c.l.b16 %v1920
    %v2669 = vunpack.c.h.b16 %v1920
    %v2670 = vunpack.c.l.b16 %v1921
    %v2671 = vunpack.c.h.b16 %v1921
    %v2672 = vunpack.c.l.b16 %v1922
    %v2673 = vunpack.c.h.b16 %v1922
    %v2674 = vunpack.c.l.b16 %v1923
    %v2675 = vunpack.c.h.b16 %v1923
    %v2676 = vunpack.c.l.b16 %v1924
    %v2677 = vunpack.c.h.b16 %v1924
    %v2678 = vunpack.c.l.b16 %v1925
    %v2679 = vunpack.c.h.b16 %v1925
    %v2680 = vunpack.c.l.b16 %v1926
    %v2681 = vunpack.c.h.b16 %v1926
    %v2682 = vunpack.c.l.b16 %v1927
    %v2683 = vunpack.c.h.b16 %v1927
    %v2684 = vunpack.c.l.b16 %v1928
    %v2685 = vunpack.c.h.b16 %v1928
    %v2686 = vunpack.c.l.b16 %v1929
    %v2687 = vunpack.c.h.b16 %v1929
    %v2688 = vunpack.c.l.b16 %v1930
    %v2689 = vunpack.c.h.b16 %v1930
    %v2690 = vunpack.c.l.b16 %v1931
    %v2691 = vunpack.c.h.b16 %v1931
    %v2692 = vunpack.c.l.b16 %v1932
    %v2693 = vunpack.c.h.b16 %v1932
    %v2694 = vunpack.c.l.b16 %v1933
    %v2695 = vunpack.c.h.b16 %v1933
    %v2696 = vunpack.c.l.b16 %v1934
    %v2697 = vunpack.c.h.b16 %v1934
    %v2698 = vunpack.c.l.b16 %v1935
    %v2699 = vunpack.c.h.b16 %v1935
    %v2700 = vunpack.c.l.b16 %v1936
    %v2701 = vunpack.c.h.b16 %v1936
    %v2702 = vunpack.c.l.b16 %v1937
    %v2703 = vunpack.c.h.b16 %v1937
    %v2704 = vunpack.c.l.b16 %v1938
    %v2705 = vunpack.c.h.b16 %v1938
    %v2706 = vunpack.c.l.b16 %v1939
    %v2707 = vunpack.c.h.b16 %v1939
    %v2708 = vunpack.c.l.b16 %v1940
    %v2709 = vunpack.c.h.b16 %v1940
    %v2710 = vunpack.c.l.b16 %v1941
    %v2711 = vunpack.c.h.b16 %v1941
    %v2712 = vunpack.c.l.b16 %v1942
    %v2713 = vunpack.c.h.b16 %v1942
    %v2714 = vunpack.c.l.b16 %v1943
    %v2715 = vunpack.c.h.b16 %v1943
    %v2716 = vunpack.c.l.b16 %v1944
    %v2717 = vunpack.c.h.b16 %v1944
    %v2718 = vunpack.c.l.b16 %v1945
    %v2719 = vunpack.c.h.b16 %v1945
    %v2720 = vunpack.c.l.b16 %v1946
    %v2721 = vunpack.c.h.b16 %v1946
    %v2722 = vunpack.c.l.b16 %v1947
    %v2723 = vunpack.c.h.b16 %v1947
    %v2724 = vunpack.c.l.b16 %v1948
    %v2725 = vunpack.c.h.b16 %v1948
    %v2726 = vunpack.c.l.b16 %v1949
    %v2727 = vunpack.c.h.b16 %v1949
    %v2728 = vunpack.c.l.b16 %v1950
    %v2729 = vunpack.c.h.b16 %v1950
    %v2730 = vunpack.c.l.b16 %v1951
    %v2731 = vunpack.c.h.b16 %v1951
    %v2732 = vunpack.c.l.b16 %v1952
    %v2733 = vunpack.c.h.b16 %v1952
    %v2734 = vunpack.c.l.b16 %v1953
    %v2735 = vunpack.c.h.b16 %v1953
    %v2736 = vunpack.c.l.b16 %v1954
    %v2737 = vunpack.c.h.b16 %v1954
    %v2738 = vunpack.c.l.b16 %v1955
    %v2739 = vunpack.c.h.b16 %v1955
    %v2740 = vunpack.c.l.b16 %v1956
    %v2741 = vunpack.c.h.b16 %v1956
    %v2742 = vunpack.c.l.b16 %v1957
    %v2743 = vunpack.c.h.b16 %v1957
    %v2744 = vunpack.c.l.b16 %v1958
    %v2745 = vunpack.c.h.b16 %v1958
    %v2746 = vunpack.c.l.b16 %v1959
    %v2747 = vunpack.c.h.b16 %v1959
    %v2748 = vunpack.c.l.b16 %v1960
    %v2749 = vunpack.c.h.b16 %v1960
    %v2750 = vunpack.c.l.b16 %v1961
    %v2751 = vunpack.c.h.b16 %v1961
    %v2752 = vpack.c.b16 %v2244, %v2240
    %v2753 = vpack.c.b16 %v2245, %v2241
    %v2754 = vpack.c.b16 %v2246, %v2242
    %v2755 = vpack.c.b16 %v2247, %v2243
    %v2756 = vpack.c.b16 %v2252, %v2248
    %v2757 = vpack.c.b16 %v2253, %v2249
    %v2758 = vpack.c.b16 %v2254, %v2250
    %v2759 = vpack.c.b16 %v2255, %v2251
    %v2760 = vpack.c.b16 %v2260, %v2256
    %v2761 = vpack.c.b16 %v2261, %v2257
    %v2762 = vpack.c.b16 %v2262, %v2258
    %v2763 = vpack.c.b16 %v2263, %v2259
    %v2764 = vpack.c.b16 %v2268, %v2264
    %v2765 = vpack.c.b16 %v2269, %v2265
    %v2766 = vpack.c.b16 %v2270, %v2266
    %v2767 = vpack.c.b16 %v2271, %v2267
    %v2768 = vpack.c.b16 %v2276, %v2272
    %v2769 = vpack.c.b16 %v2277, %v2273
    %v2770 = vpack.c.b16 %v2278, %v2274
    %v2771 = vpack.c.b16 %v2279, %v2275
    %v2772 = vpack.c.b16 %v2284, %v2280
    %v2773 = vpack.c.b16 %v2285, %v2281
    %v2774 = vpack.c.b16 %v2286, %v2282
    %v2775 = vpack.c.b16 %v2287, %v2283
    %v2776 = vpack.c.b16 %v2292, %v2288
    %v2777 = vpack.c.b16 %v2293, %v2289
    %v2778 = vpack.c.b16 %v2294, %v2290
    %v2779 = vpack.c.b16 %v2295, %v2291
    %v2780 = vpack.c.b16 %v2300, %v2296
    %v2781 = vpack.c.b16 %v2301, %v2297
    %v2782 = vpack.c.b16 %v2302, %v2298
    %v2783 = vpack.c.b16 %v2303, %v2299
    %v2784 = vpack.c.b16 %v2308, %v2304
    %v2785 = vpack.c.b16 %v2309, %v2305
    %v2786 = vpack.c.b16 %v2310, %v2306
    %v2787 = vpack.c.b16 %v2311, %v2307
    %v2788 = vpack.c.b16 %v2316, %v2312
    %v2789 = vpack.c.b16 %v2317, %v2313
    %v2790 = vpack.c.b16 %v2318, %v2314
    %v2791 = vpack.c.b16 %v2319, %v2315
    %v2792 = vpack.c.b16 %v2324, %v2320
    %v2793 = vpack.c.b16 %v2325, %v2321
    %v2794 = vpack.c.b16 %v2326, %v2322
    %v2795 = vpack.c.b16 %v2327, %v2323
    %v2796 = vpack.c.b16 %v2332, %v2328
    %v2797 = vpack.c.b16 %v2333, %v2329
    %v2798 = vpack.c.b16 %v2334, %v2330
    %v2799 = vpack.c.b16 %v2335, %v2331
    %v2800 = vpack.c.b16 %v2340, %v2336
    %v2801 = vpack.c.b16 %v2341, %v2337
    %v2802 = vpack.c.b16 %v2342, %v2338
    %v2803 = vpack.c.b16 %v2343, %v2339
    %v2804 = vpack.c.b16 %v2348, %v2344
    %v2805 = vpack.c.b16 %v2349, %v2345
    %v2806 = vpack.c.b16 %v2350, %v2346
    %v2807 = vpack.c.b16 %v2351, %v2347
    %v2808 = vpack.c.b16 %v2356, %v2352
    %v2809 = vpack.c.b16 %v2357, %v2353
    %v2810 = vpack.c.b16 %v2358, %v2354
    %v2811 = vpack.c.b16 %v2359, %v2355
    %v2812 = vpack.c.b16 %v2364, %v2360
    %v2813 = vpack.c.b16 %v2365, %v2361
    %v2814 = vpack.c.b16 %v2366, %v2362
    %v2815 = vpack.c.b16 %v2367, %v2363
    %v2816 = vpack.c.b16 %v2372, %v2368
    %v2817 = vpack.c.b16 %v2373, %v2369
    %v2818 = vpack.c.b16 %v2374, %v2370
    %v2819 = vpack.c.b16 %v2375, %v2371
    %v2820 = vpack.c.b16 %v2380, %v2376
    %v2821 = vpack.c.b16 %v2381, %v2377
    %v2822 = vpack.c.b16 %v2382, %v2378
    %v2823 = vpack.c.b16 %v2383, %v2379
    %v2824 = vpack.c.b16 %v2388, %v2384
    %v2825 = vpack.c.b16 %v2389, %v2385
    %v2826 = vpack.c.b16 %v2390, %v2386
    %v2827 = vpack.c.b16 %v2391, %v2387
    %v2828 = vpack.c.b16 %v2396, %v2392
    %v2829 = vpack.c.b16 %v2397, %v2393
    %v2830 = vpack.c.b16 %v2398, %v2394
    %v2831 = vpack.c.b16 %v2399, %v2395
    %v2832 = vpack.c.b16 %v2404, %v2400
    %v2833 = vpack.c.b16 %v2405, %v2401
    %v2834 = vpack.c.b16 %v2406, %v2402
    %v2835 = vpack.c.b16 %v2407, %v2403
    %v2836 = vpack.c.b16 %v2412, %v2408
    %v2837 = vpack.c.b16 %v2413, %v2409
    %v2838 = vpack.c.b16 %v2414, %v2410
    %v2839 = vpack.c.b16 %v2415, %v2411
    %v2840 = vpack.c.b16 %v2420, %v2416
    %v2841 = vpack.c.b16 %v2421, %v2417
    %v2842 = vpack.c.b16 %v2422, %v2418
    %v2843 = vpack.c.b16 %v2423, %v2419
    %v2844 = vpack.c.b16 %v2428, %v2424
    %v2845 = vpack.c.b16 %v2429, %v2425
    %v2846 = vpack.c.b16 %v2430, %v2426
    %v2847 = vpack.c.b16 %v2431, %v2427
    %v2848 = vpack.c.b16 %v2436, %v2432
    %v2849 = vpack.c.b16 %v2437, %v2433
    %v2850 = vpack.c.b16 %v2438, %v2434
    %v2851 = vpack.c.b16 %v2439, %v2435
    %v2852 = vpack.c.b16 %v2444, %v2440
    %v2853 = vpack.c.b16 %v2445, %v2441
    %v2854 = vpack.c.b16 %v2446, %v2442
    %v2855 = vpack.c.b16 %v2447, %v2443
    %v2856 = vpack.c.b16 %v2452, %v2448
    %v2857 = vpack.c.b16 %v2453, %v2449
    %v2858 = vpack.c.b16 %v2454, %v2450
    %v2859 = vpack.c.b16 %v2455, %v2451
    %v2860 = vpack.c.b16 %v2460, %v2456
    %v2861 = vpack.c.b16 %v2461, %v2457
    %v2862 = vpack.c.b16 %v2462, %v2458
    %v2863 = vpack.c.b16 %v2463, %v2459
    %v2864 = vpack.c.b16 %v2468, %v2464
    %v2865 = vpack.c.b16 %v2469, %v2465
    %v2866 = vpack.c.b16 %v2470, %v2466
    %v2867 = vpack.c.b16 %v2471, %v2467
    %v2868 = vpack.c.b16 %v2476, %v2472
    %v2869 = vpack.c.b16 %v2477, %v2473
    %v2870 = vpack.c.b16 %v2478, %v2474
    %v2871 = vpack.c.b16 %v2479, %v2475
    %v2872 = vpack.c.b16 %v2484, %v2480
    %v2873 = vpack.c.b16 %v2485, %v2481
    %v2874 = vpack.c.b16 %v2486, %v2482
    %v2875 = vpack.c.b16 %v2487, %v2483
    %v2876 = vpack.c.b16 %v2492, %v2488
    %v2877 = vpack.c.b16 %v2493, %v2489
    %v2878 = vpack.c.b16 %v2494, %v2490
    %v2879 = vpack.c.b16 %v2495, %v2491
    %v2880 = vpack.c.b16 %v2500, %v2496
    %v2881 = vpack.c.b16 %v2501, %v2497
    %v2882 = vpack.c.b16 %v2502, %v2498
    %v2883 = vpack.c.b16 %v2503, %v2499
    %v2884 = vpack.c.b16 %v2508, %v2504
    %v2885 = vpack.c.b16 %v2509, %v2505
    %v2886 = vpack.c.b16 %v2510, %v2506
    %v2887 = vpack.c.b16 %v2511, %v2507
    %v2888 = vpack.c.b16 %v2516, %v2512
    %v2889 = vpack.c.b16 %v2517, %v2513
    %v2890 = vpack.c.b16 %v2518, %v2514
    %v2891 = vpack.c.b16 %v2519, %v2515
    %v2892 = vpack.c.b16 %v2524, %v2520
    %v2893 = vpack.c.b16 %v2525, %v2521
    %v2894 = vpack.c.b16 %v2526, %v2522
    %v2895 = vpack.c.b16 %v2527, %v2523
    %v2896 = vpack.c.b16 %v2532, %v2528
    %v2897 = vpack.c.b16 %v2533, %v2529
    %v2898 = vpack.c.b16 %v2534, %v2530
    %v2899 = vpack.c.b16 %v2535, %v2531
    %v2900 = vpack.c.b16 %v2540, %v2536
    %v2901 = vpack.c.b16 %v2541, %v2537
    %v2902 = vpack.c.b16 %v2542, %v2538
    %v2903 = vpack.c.b16 %v2543, %v2539
    %v2904 = vpack.c.b16 %v2548, %v2544
    %v2905 = vpack.c.b16 %v2549, %v2545
    %v2906 = vpack.c.b16 %v2550, %v2546
    %v2907 = vpack.c.b16 %v2551, %v2547
    %v2908 = vpack.c.b16 %v2556, %v2552
    %v2909 = vpack.c.b16 %v2557, %v2553
    %v2910 = vpack.c.b16 %v2558, %v2554
    %v2911 = vpack.c.b16 %v2559, %v2555
    %v2912 = vpack.c.b16 %v2564, %v2560
    %v2913 = vpack.c.b16 %v2565, %v2561
    %v2914 = vpack.c.b16 %v2566, %v2562
    %v2915 = vpack.c.b16 %v2567, %v2563
    %v2916 = vpack.c.b16 %v2572, %v2568
    %v2917 = vpack.c.b16 %v2573, %v2569
    %v2918 = vpack.c.b16 %v2574, %v2570
    %v2919 = vpack.c.b16 %v2575, %v2571
    %v2920 = vpack.c.b16 %v2580, %v2576
    %v2921 = vpack.c.b16 %v2581, %v2577
    %v2922 = vpack.c.b16 %v2582, %v2578
    %v2923 = vpack.c.b16 %v2583, %v2579
    %v2924 = vpack.c.b16 %v2588, %v2584
    %v2925 = vpack.c.b16 %v2589, %v2585
    %v2926 = vpack.c.b16 %v2590, %v2586
    %v2927 = vpack.c.b16 %v2591, %v2587
    %v2928 = vpack.c.b16 %v2596, %v2592
    %v2929 = vpack.c.b16 %v2597, %v2593
    %v2930 = vpack.c.b16 %v2598, %v2594
    %v2931 = vpack.c.b16 %v2599, %v2595
    %v2932 = vpack.c.b16 %v2604, %v2600
    %v2933 = vpack.c.b16 %v2605, %v2601
    %v2934 = vpack.c.b16 %v2606, %v2602
    %v2935 = vpack.c.b16 %v2607, %v2603
    %v2936 = vpack.c.b16 %v2612, %v2608
    %v2937 = vpack.c.b16 %v2613, %v2609
    %v2938 = vpack.c.b16 %v2614, %v2610
    %v2939 = vpack.c.b16 %v2615, %v2611
    %v2940 = vpack.c.b16 %v2620, %v2616
    %v2941 = vpack.c.b16 %v2621, %v2617
    %v2942 = vpack.c.b16 %v2622, %v2618
    %v2943 = vpack.c.b16 %v2623, %v2619
    %v2944 = vpack.c.b16 %v2628, %v2624
    %v2945 = vpack.c.b16 %v2629, %v2625
    %v2946 = vpack.c.b16 %v2630, %v2626
    %v2947 = vpack.c.b16 %v2631, %v2627
    %v2948 = vpack.c.b16 %v2636, %v2632
    %v2949 = vpack.c.b16 %v2637, %v2633
    %v2950 = vpack.c.b16 %v2638, %v2634
    %v2951 = vpack.c.b16 %v2639, %v2635
    %v2952 = vpack.c.b16 %v2644, %v2640
    %v2953 = vpack.c.b16 %v2645, %v2641
    %v2954 = vpack.c.b16 %v2646, %v2642
    %v2955 = vpack.c.b16 %v2647, %v2643
    %v2956 = vpack.c.b16 %v2652, %v2648
    %v2957 = vpack.c.b16 %v2653, %v2649
    %v2958 = vpack.c.b16 %v2654, %v2650
    %v2959 = vpack.c.b16 %v2655, %v2651
    %v2960 = vpack.c.b16 %v2660, %v2656
    %v2961 = vpack.c.b16 %v2661, %v2657
    %v2962 = vpack.c.b16 %v2662, %v2658
    %v2963 = vpack.c.b16 %v2663, %v2659
    %v2964 = vpack.c.b16 %v2668, %v2664
    %v2965 = vpack.c.b16 %v2669, %v2665
    %v2966 = vpack.c.b16 %v2670, %v2666
    %v2967 = vpack.c.b16 %v2671, %v2667
    %v2968 = vpack.c.b16 %v2676, %v2672
    %v2969 = vpack.c.b16 %v2677, %v2673
    %v2970 = vpack.c.b16 %v2678, %v2674
    %v2971 = vpack.c.b16 %v2679, %v2675
    %v2972 = vpack.c.b16 %v2684, %v2680
    %v2973 = vpack.c.b16 %v2685, %v2681
    %v2974 = vpack.c.b16 %v2686, %v2682
    %v2975 = vpack.c.b16 %v2687, %v2683
    %v2976 = vpack.c.b16 %v2692, %v2688
    %v2977 = vpack.c.b16 %v2693, %v2689
    %v2978 = vpack.c.b16 %v2694, %v2690
    %v2979 = vpack.c.b16 %v2695, %v2691
    %v2980 = vpack.c.b16 %v2700, %v2696
    %v2981 = vpack.c.b16 %v2701, %v2697
    %v2982 = vpack.c.b16 %v2702, %v2698
    %v2983 = vpack.c.b16 %v2703, %v2699
    %v2984 = vpack.c.b16 %v2708, %v2704
    %v2985 = vpack.c.b16 %v2709, %v2705
    %v2986 = vpack.c.b16 %v2710, %v2706
    %v2987 = vpack.c.b16 %v2711, %v2707
    %v2988 = vpack.c.b16 %v2716, %v2712
    %v2989 = vpack.c.b16 %v2717, %v2713
    %v2990 = vpack.c.b16 %v2718, %v2714
    %v2991 = vpack.c.b16 %v2719, %v2715
    %v2992 = vpack.c.b16 %v2724, %v2720
    %v2993 = vpack.c.b16 %v2725, %v2721
    %v2994 = vpack.c.b16 %v2726, %v2722
    %v2995 = vpack.c.b16 %v2727, %v2723
    %v2996 = vpack.c.b16 %v2732, %v2728
    %v2997 = vpack.c.b16 %v2733, %v2729
    %v2998 = vpack.c.b16 %v2734, %v2730
    %v2999 = vpack.c.b16 %v2735, %v2731
    %v3000 = vpack.c.b16 %v2740, %v2736
    %v3001 = vpack.c.b16 %v2741, %v2737
    %v3002 = vpack.c.b16 %v2742, %v2738
    %v3003 = vpack.c.b16 %v2743, %v2739
    %v3004 = vpack.c.b16 %v2748, %v2744
    %v3005 = vpack.c.b16 %v2749, %v2745
    %v3006 = vpack.c.b16 %v2750, %v2746
    %v3007 = vpack.c.b16 %v2751, %v2747
    %3264 = vmatprep.subr.bf16.mxu0 %v2781
    %3265 = vmatpush1.bf16.msra.mxu0 %v2780
    %3266 = vmatprep.subr.bf16.mxu0 %v2777
    %3267 = vmatpush1.bf16.msra.mxu0 %v2776
    %3268 = vmatprep.subr.bf16.mxu0 %v2773
    %3269 = vmatpush1.bf16.msra.mxu0 %v2772
    %3270 = vmatprep.subr.bf16.mxu0 %v2769
    %3271 = vmatpush1.bf16.msra.mxu0 %v2768
    %3272 = vmatprep.subr.bf16.mxu0 %v2765
    %3273 = vmatpush1.bf16.msra.mxu0 %v2764
    %3274 = vmatprep.subr.bf16.mxu0 %v2761
    %3275 = vmatpush1.bf16.msra.mxu0 %v2760
    %3276 = vmatprep.subr.bf16.mxu0 %v2757
    %3277 = vmatpush1.bf16.msra.mxu0 %v2756
    %3278 = vmatprep.subr.bf16.mxu0 %v2753
    %3279 = vmatpush1.bf16.msra.mxu0 %v2752
    %3280 = vmatprep.subr.bf16.mxu0 %v2813
    %3281 = vmatpush2.bf16.msra.mxu0 %v2812
    %3282 = vmatprep.subr.bf16.mxu0 %v2809
    %3283 = vmatpush2.bf16.msra.mxu0 %v2808
    %3284 = vmatprep.subr.bf16.mxu0 %v2805
    %3285 = vmatpush2.bf16.msra.mxu0 %v2804
    %3286 = vmatprep.subr.bf16.mxu0 %v2801
    %3287 = vmatpush2.bf16.msra.mxu0 %v2800
    %3288 = vmatprep.subr.bf16.mxu0 %v2797
    %3289 = vmatpush2.bf16.msra.mxu0 %v2796
    %3290 = vmatprep.subr.bf16.mxu0 %v2793
    %3291 = vmatpush2.bf16.msra.mxu0 %v2792
    %3292 = vmatprep.subr.bf16.mxu0 %v2789
    %3293 = vmatpush2.bf16.msra.mxu0 %v2788
    %3294 = vmatprep.subr.bf16.mxu0 %v2785
    %3295 = vmatpush2.bf16.msra.mxu0 %v2784
    %3296 = vmatprep.mubr.bf16.mxu0 %v1699
    %3297 = vmatmul.mubr.bf16.gmra.mxu0 %v1698
    %v3298 = vpop.f32.mrf.mxu0
    %v3299 = vadd.f32 %v1967, %v3298
    %v3300 = vpop.f32.mrf.mxu0
    %v3301 = vadd.f32 %v1971, %v3300
    %v3302 = vpop.f32.mrf.mxu0
    %v3303 = vpop.f32.mrf.mxu0
    %3304 = vdwg.mxu0
    %3305 = vmatprep.subr.bf16.mxu0 %v2845
    %3306 = vmatpush1.bf16.msra.mxu0 %v2844
    %3307 = vmatprep.subr.bf16.mxu0 %v2841
    %3308 = vmatpush1.bf16.msra.mxu0 %v2840
    %3309 = vmatprep.subr.bf16.mxu0 %v2837
    %3310 = vmatpush1.bf16.msra.mxu0 %v2836
    %3311 = vmatprep.subr.bf16.mxu0 %v2833
    %3312 = vmatpush1.bf16.msra.mxu0 %v2832
    %3313 = vmatprep.subr.bf16.mxu0 %v2829
    %3314 = vmatpush1.bf16.msra.mxu0 %v2828
    %3315 = vmatprep.subr.bf16.mxu0 %v2825
    %3316 = vmatpush1.bf16.msra.mxu0 %v2824
    %3317 = vmatprep.subr.bf16.mxu0 %v2821
    %3318 = vmatpush1.bf16.msra.mxu0 %v2820
    %3319 = vmatprep.subr.bf16.mxu0 %v2817
    %3320 = vmatpush1.bf16.msra.mxu0 %v2816
    %3321 = vmatprep.subr.bf16.mxu0 %v2877
    %3322 = vmatpush2.bf16.msra.mxu0 %v2876
    %3323 = vmatprep.subr.bf16.mxu0 %v2873
    %3324 = vmatpush2.bf16.msra.mxu0 %v2872
    %3325 = vmatprep.subr.bf16.mxu0 %v2869
    %3326 = vmatpush2.bf16.msra.mxu0 %v2868
    %3327 = vmatprep.subr.bf16.mxu0 %v2865
    %3328 = vmatpush2.bf16.msra.mxu0 %v2864
    %3329 = vmatprep.subr.bf16.mxu0 %v2861
    %3330 = vmatpush2.bf16.msra.mxu0 %v2860
    %3331 = vmatprep.subr.bf16.mxu0 %v2857
    %3332 = vmatpush2.bf16.msra.mxu0 %v2856
    %3333 = vmatprep.subr.bf16.mxu0 %v2853
    %3334 = vmatpush2.bf16.msra.mxu0 %v2852
    %3335 = vmatprep.subr.bf16.mxu0 %v2849
    %3336 = vmatpush2.bf16.msra.mxu0 %v2848
    %3337 = vmatprep.mubr.bf16.mxu0 %v1701
    %3338 = vmatmul.mubr.bf16.gmra.mxu0 %v1700
    %v3339 = vpop.f32.mrf.mxu0
    %v3340 = vadd.f32 %v3299, %v3339
    %v3341 = vpop.f32.mrf.mxu0
    %v3342 = vadd.f32 %v3301, %v3341
    %v3343 = vpop.f32.mrf.mxu0
    %v3344 = vpop.f32.mrf.mxu0
    %3345 = vdwg.mxu0
    %3346 = vmatprep.subr.bf16.mxu0 %v2909
    %3347 = vmatpush1.bf16.msra.mxu0 %v2908
    %3348 = vmatprep.subr.bf16.mxu0 %v2905
    %3349 = vmatpush1.bf16.msra.mxu0 %v2904
    %3350 = vmatprep.subr.bf16.mxu0 %v2901
    %3351 = vmatpush1.bf16.msra.mxu0 %v2900
    %3352 = vmatprep.subr.bf16.mxu0 %v2897
    %3353 = vmatpush1.bf16.msra.mxu0 %v2896
    %3354 = vmatprep.subr.bf16.mxu0 %v2893
    %3355 = vmatpush1.bf16.msra.mxu0 %v2892
    %3356 = vmatprep.subr.bf16.mxu0 %v2889
    %3357 = vmatpush1.bf16.msra.mxu0 %v2888
    %3358 = vmatprep.subr.bf16.mxu0 %v2885
    %3359 = vmatpush1.bf16.msra.mxu0 %v2884
    %3360 = vmatprep.subr.bf16.mxu0 %v2881
    %3361 = vmatpush1.bf16.msra.mxu0 %v2880
    %3362 = vmatprep.subr.bf16.mxu0 %v2941
    %3363 = vmatpush2.bf16.msra.mxu0 %v2940
    %3364 = vmatprep.subr.bf16.mxu0 %v2937
    %3365 = vmatpush2.bf16.msra.mxu0 %v2936
    %3366 = vmatprep.subr.bf16.mxu0 %v2933
    %3367 = vmatpush2.bf16.msra.mxu0 %v2932
    %3368 = vmatprep.subr.bf16.mxu0 %v2929
    %3369 = vmatpush2.bf16.msra.mxu0 %v2928
    %3370 = vmatprep.subr.bf16.mxu0 %v2925
    %3371 = vmatpush2.bf16.msra.mxu0 %v2924
    %3372 = vmatprep.subr.bf16.mxu0 %v2921
    %3373 = vmatpush2.bf16.msra.mxu0 %v2920
    %3374 = vmatprep.subr.bf16.mxu0 %v2917
    %3375 = vmatpush2.bf16.msra.mxu0 %v2916
    %3376 = vmatprep.subr.bf16.mxu0 %v2913
    %3377 = vmatpush2.bf16.msra.mxu0 %v2912
    %3378 = vmatprep.mubr.bf16.mxu0 %v1703
    %3379 = vmatmul.mubr.bf16.gmra.mxu0 %v1702
    %v3380 = vpop.f32.mrf.mxu0
    %v3381 = vadd.f32 %v3340, %v3380
    %v3382 = vpop.f32.mrf.mxu0
    %v3383 = vadd.f32 %v3342, %v3382
    %v3384 = vpop.f32.mrf.mxu0
    %v3385 = vpop.f32.mrf.mxu0
    %3386 = vdwg.mxu0
    %3387 = vmatprep.subr.bf16.mxu0 %v2973
    %3388 = vmatpush1.bf16.msra.mxu0 %v2972
    %3389 = vmatprep.subr.bf16.mxu0 %v2969
    %3390 = vmatpush1.bf16.msra.mxu0 %v2968
    %3391 = vmatprep.subr.bf16.mxu0 %v2965
    %3392 = vmatpush1.bf16.msra.mxu0 %v2964
    %3393 = vmatprep.subr.bf16.mxu0 %v2961
    %3394 = vmatpush1.bf16.msra.mxu0 %v2960
    %3395 = vmatprep.subr.bf16.mxu0 %v2957
    %3396 = vmatpush1.bf16.msra.mxu0 %v2956
    %3397 = vmatprep.subr.bf16.mxu0 %v2953
    %3398 = vmatpush1.bf16.msra.mxu0 %v2952
    %3399 = vmatprep.subr.bf16.mxu0 %v2949
    %3400 = vmatpush1.bf16.msra.mxu0 %v2948
    %3401 = vmatprep.subr.bf16.mxu0 %v2945
    %3402 = vmatpush1.bf16.msra.mxu0 %v2944
    %3403 = vmatprep.subr.bf16.mxu0 %v3005
    %3404 = vmatpush2.bf16.msra.mxu0 %v3004
    %3405 = vmatprep.subr.bf16.mxu0 %v3001
    %3406 = vmatpush2.bf16.msra.mxu0 %v3000
    %3407 = vmatprep.subr.bf16.mxu0 %v2997
    %3408 = vmatpush2.bf16.msra.mxu0 %v2996
    %3409 = vmatprep.subr.bf16.mxu0 %v2993
    %3410 = vmatpush2.bf16.msra.mxu0 %v2992
    %3411 = vmatprep.subr.bf16.mxu0 %v2989
    %3412 = vmatpush2.bf16.msra.mxu0 %v2988
    %3413 = vmatprep.subr.bf16.mxu0 %v2985
    %3414 = vmatpush2.bf16.msra.mxu0 %v2984
    %3415 = vmatprep.subr.bf16.mxu0 %v2981
    %3416 = vmatpush2.bf16.msra.mxu0 %v2980
    %3417 = vmatprep.subr.bf16.mxu0 %v2977
    %3418 = vmatpush2.bf16.msra.mxu0 %v2976
    %3419 = vmatprep.mubr.bf16.mxu0 %v1705
    %3420 = vmatmul.mubr.bf16.gmra.mxu0 %v1704
    %v3421 = vpop.f32.mrf.mxu0
    %v3422 = vadd.f32 %v3381, %v3421
    %v3423 = vpop.f32.mrf.mxu0
    %v3424 = vadd.f32 %v3383, %v3423
    %v3425 = vpop.f32.mrf.mxu0
    %v3426 = vpop.f32.mrf.mxu0
    %3427 = vdwg.mxu0
    %3428 = vmatprep.subr.bf16.mxu0 %v2783
    %3429 = vmatpush1.bf16.msra.mxu0 %v2782
    %3430 = vmatprep.subr.bf16.mxu0 %v2779
    %3431 = vmatpush1.bf16.msra.mxu0 %v2778
    %3432 = vmatprep.subr.bf16.mxu0 %v2775
    %3433 = vmatpush1.bf16.msra.mxu0 %v2774
    %3434 = vmatprep.subr.bf16.mxu0 %v2771
    %3435 = vmatpush1.bf16.msra.mxu0 %v2770
    %3436 = vmatprep.subr.bf16.mxu0 %v2767
    %3437 = vmatpush1.bf16.msra.mxu0 %v2766
    %3438 = vmatprep.subr.bf16.mxu0 %v2763
    %3439 = vmatpush1.bf16.msra.mxu0 %v2762
    %3440 = vmatprep.subr.bf16.mxu0 %v2759
    %3441 = vmatpush1.bf16.msra.mxu0 %v2758
    %3442 = vmatprep.subr.bf16.mxu0 %v2755
    %3443 = vmatpush1.bf16.msra.mxu0 %v2754
    %3444 = vmatprep.subr.bf16.mxu0 %v2815
    %3445 = vmatpush2.bf16.msra.mxu0 %v2814
    %3446 = vmatprep.subr.bf16.mxu0 %v2811
    %3447 = vmatpush2.bf16.msra.mxu0 %v2810
    %3448 = vmatprep.subr.bf16.mxu0 %v2807
    %3449 = vmatpush2.bf16.msra.mxu0 %v2806
    %3450 = vmatprep.subr.bf16.mxu0 %v2803
    %3451 = vmatpush2.bf16.msra.mxu0 %v2802
    %3452 = vmatprep.subr.bf16.mxu0 %v2799
    %3453 = vmatpush2.bf16.msra.mxu0 %v2798
    %3454 = vmatprep.subr.bf16.mxu0 %v2795
    %3455 = vmatpush2.bf16.msra.mxu0 %v2794
    %3456 = vmatprep.subr.bf16.mxu0 %v2791
    %3457 = vmatpush2.bf16.msra.mxu0 %v2790
    %3458 = vmatprep.subr.bf16.mxu0 %v2787
    %3459 = vmatpush2.bf16.msra.mxu0 %v2786
    %3460 = vmatprep.mubr.bf16.mxu0 %v1699
    %3461 = vmatmul.mubr.bf16.gmra.mxu0 %v1698
    %v3462 = vpop.f32.mrf.mxu0
    %v3463 = vadd.f32 %v1975, %v3462
    %v3464 = vpop.f32.mrf.mxu0
    %v3465 = vadd.f32 %v1979, %v3464
    %v3466 = vpop.f32.mrf.mxu0
    %v3467 = vpop.f32.mrf.mxu0
    %3468 = vdwg.mxu0
    %3469 = vmatprep.subr.bf16.mxu0 %v2847
    %3470 = vmatpush1.bf16.msra.mxu0 %v2846
    %3471 = vmatprep.subr.bf16.mxu0 %v2843
    %3472 = vmatpush1.bf16.msra.mxu0 %v2842
    %3473 = vmatprep.subr.bf16.mxu0 %v2839
    %3474 = vmatpush1.bf16.msra.mxu0 %v2838
    %3475 = vmatprep.subr.bf16.mxu0 %v2835
    %3476 = vmatpush1.bf16.msra.mxu0 %v2834
    %3477 = vmatprep.subr.bf16.mxu0 %v2831
    %3478 = vmatpush1.bf16.msra.mxu0 %v2830
    %3479 = vmatprep.subr.bf16.mxu0 %v2827
    %3480 = vmatpush1.bf16.msra.mxu0 %v2826
    %3481 = vmatprep.subr.bf16.mxu0 %v2823
    %3482 = vmatpush1.bf16.msra.mxu0 %v2822
    %3483 = vmatprep.subr.bf16.mxu0 %v2819
    %3484 = vmatpush1.bf16.msra.mxu0 %v2818
    %3485 = vmatprep.subr.bf16.mxu0 %v2879
    %3486 = vmatpush2.bf16.msra.mxu0 %v2878
    %3487 = vmatprep.subr.bf16.mxu0 %v2875
    %3488 = vmatpush2.bf16.msra.mxu0 %v2874
    %3489 = vmatprep.subr.bf16.mxu0 %v2871
    %3490 = vmatpush2.bf16.msra.mxu0 %v2870
    %3491 = vmatprep.subr.bf16.mxu0 %v2867
    %3492 = vmatpush2.bf16.msra.mxu0 %v2866
    %3493 = vmatprep.subr.bf16.mxu0 %v2863
    %3494 = vmatpush2.bf16.msra.mxu0 %v2862
    %3495 = vmatprep.subr.bf16.mxu0 %v2859
    %3496 = vmatpush2.bf16.msra.mxu0 %v2858
    %3497 = vmatprep.subr.bf16.mxu0 %v2855
    %3498 = vmatpush2.bf16.msra.mxu0 %v2854
    %3499 = vmatprep.subr.bf16.mxu0 %v2851
    %3500 = vmatpush2.bf16.msra.mxu0 %v2850
    %3501 = vmatprep.mubr.bf16.mxu0 %v1701
    %3502 = vmatmul.mubr.bf16.gmra.mxu0 %v1700
    %v3503 = vpop.f32.mrf.mxu0
    %v3504 = vadd.f32 %v3463, %v3503
    %v3505 = vpop.f32.mrf.mxu0
    %v3506 = vadd.f32 %v3465, %v3505
    %v3507 = vpop.f32.mrf.mxu0
    %v3508 = vpop.f32.mrf.mxu0
    %3509 = vdwg.mxu0
    %3510 = vmatprep.subr.bf16.mxu0 %v2911
    %3511 = vmatpush1.bf16.msra.mxu0 %v2910
    %3512 = vmatprep.subr.bf16.mxu0 %v2907
    %3513 = vmatpush1.bf16.msra.mxu0 %v2906
    %3514 = vmatprep.subr.bf16.mxu0 %v2903
    %3515 = vmatpush1.bf16.msra.mxu0 %v2902
    %3516 = vmatprep.subr.bf16.mxu0 %v2899
    %3517 = vmatpush1.bf16.msra.mxu0 %v2898
    %3518 = vmatprep.subr.bf16.mxu0 %v2895
    %3519 = vmatpush1.bf16.msra.mxu0 %v2894
    %3520 = vmatprep.subr.bf16.mxu0 %v2891
    %3521 = vmatpush1.bf16.msra.mxu0 %v2890
    %3522 = vmatprep.subr.bf16.mxu0 %v2887
    %3523 = vmatpush1.bf16.msra.mxu0 %v2886
    %3524 = vmatprep.subr.bf16.mxu0 %v2883
    %3525 = vmatpush1.bf16.msra.mxu0 %v2882
    %3526 = vmatprep.subr.bf16.mxu0 %v2943
    %3527 = vmatpush2.bf16.msra.mxu0 %v2942
    %3528 = vmatprep.subr.bf16.mxu0 %v2939
    %3529 = vmatpush2.bf16.msra.mxu0 %v2938
    %3530 = vmatprep.subr.bf16.mxu0 %v2935
    %3531 = vmatpush2.bf16.msra.mxu0 %v2934
    %3532 = vmatprep.subr.bf16.mxu0 %v2931
    %3533 = vmatpush2.bf16.msra.mxu0 %v2930
    %3534 = vmatprep.subr.bf16.mxu0 %v2927
    %3535 = vmatpush2.bf16.msra.mxu0 %v2926
    %3536 = vmatprep.subr.bf16.mxu0 %v2923
    %3537 = vmatpush2.bf16.msra.mxu0 %v2922
    %3538 = vmatprep.subr.bf16.mxu0 %v2919
    %3539 = vmatpush2.bf16.msra.mxu0 %v2918
    %3540 = vmatprep.subr.bf16.mxu0 %v2915
    %3541 = vmatpush2.bf16.msra.mxu0 %v2914
    %3542 = vmatprep.mubr.bf16.mxu0 %v1703
    %3543 = vmatmul.mubr.bf16.gmra.mxu0 %v1702
    %v3544 = vpop.f32.mrf.mxu0
    %v3545 = vadd.f32 %v3504, %v3544
    %v3546 = vpop.f32.mrf.mxu0
    %v3547 = vadd.f32 %v3506, %v3546
    %v3548 = vpop.f32.mrf.mxu0
    %v3549 = vpop.f32.mrf.mxu0
    %3550 = vdwg.mxu0
    %3551 = vmatprep.subr.bf16.mxu0 %v2975
    %3552 = vmatpush1.bf16.msra.mxu0 %v2974
    %3553 = vmatprep.subr.bf16.mxu0 %v2971
    %3554 = vmatpush1.bf16.msra.mxu0 %v2970
    %3555 = vmatprep.subr.bf16.mxu0 %v2967
    %3556 = vmatpush1.bf16.msra.mxu0 %v2966
    %3557 = vmatprep.subr.bf16.mxu0 %v2963
    %3558 = vmatpush1.bf16.msra.mxu0 %v2962
    %3559 = vmatprep.subr.bf16.mxu0 %v2959
    %3560 = vmatpush1.bf16.msra.mxu0 %v2958
    %3561 = vmatprep.subr.bf16.mxu0 %v2955
    %3562 = vmatpush1.bf16.msra.mxu0 %v2954
    %3563 = vmatprep.subr.bf16.mxu0 %v2951
    %3564 = vmatpush1.bf16.msra.mxu0 %v2950
    %3565 = vmatprep.subr.bf16.mxu0 %v2947
    %3566 = vmatpush1.bf16.msra.mxu0 %v2946
    %3567 = vmatprep.subr.bf16.mxu0 %v3007
    %3568 = vmatpush2.bf16.msra.mxu0 %v3006
    %3569 = vmatprep.subr.bf16.mxu0 %v3003
    %3570 = vmatpush2.bf16.msra.mxu0 %v3002
    %3571 = vmatprep.subr.bf16.mxu0 %v2999
    %3572 = vmatpush2.bf16.msra.mxu0 %v2998
    %3573 = vmatprep.subr.bf16.mxu0 %v2995
    %3574 = vmatpush2.bf16.msra.mxu0 %v2994
    %3575 = vmatprep.subr.bf16.mxu0 %v2991
    %3576 = vmatpush2.bf16.msra.mxu0 %v2990
    %3577 = vmatprep.subr.bf16.mxu0 %v2987
    %3578 = vmatpush2.bf16.msra.mxu0 %v2986
    %3579 = vmatprep.subr.bf16.mxu0 %v2983
    %3580 = vmatpush2.bf16.msra.mxu0 %v2982
    %3581 = vmatprep.subr.bf16.mxu0 %v2979
    %3582 = vmatpush2.bf16.msra.mxu0 %v2978
    %3583 = vmatprep.mubr.bf16.mxu0 %v1705
    %3584 = vmatmul.mubr.bf16.gmra.mxu0 %v1704
    %v3585 = vpop.f32.mrf.mxu0
    %v3586 = vadd.f32 %v3545, %v3585
    %v3587 = vpop.f32.mrf.mxu0
    %v3588 = vadd.f32 %v3547, %v3587
    %v3589 = vpop.f32.mrf.mxu0
    %v3590 = vpop.f32.mrf.mxu0
    %3591 = vdwg.mxu0
    %v3592 = vmax.f32 %v3422, 0.0
    %v3593 = vmax.f32 %v3424, 0.0
    %v3594 = vmax.f32 %v3586, 0.0
    %v3595 = vmax.f32 %v3588, 0.0
    %v3596 = vpack.c.bf16 %v3592, %v3592
    %v3597 = vpack.c.bf16 %v3593, %v3593
    %v3598 = vpack.c.bf16 %v3594, %v3594
    %v3599 = vpack.c.bf16 %v3595, %v3595
    %v3600 = vld [vmem:[%s7] sm:$0xf]
    %v3601 = vld [vmem:[%s7 + $0x4] sm:$0xf]
    %v3602 = vld [vmem:[%s7 + $0x8] sm:$0xf]
    %v3603 = vld [vmem:[%s7 + $0xc] sm:$0xf]
    %v3604 = vld [vmem:[%s7 + $0x10] sm:$0xf]
    %v3605 = vld [vmem:[%s7 + $0x14] sm:$0xf]
    %v3606 = vld [vmem:[%s7 + $0x18] sm:$0xf]
    %v3607 = vld [vmem:[%s7 + $0x1c] sm:$0xf]
    %v3608 = vld [vmem:[%s7 + $0x20] sm:$0xf]
    %v3609 = vld [vmem:[%s7 + $0x24] sm:$0xf]
    %v3610 = vld [vmem:[%s7 + $0x28] sm:$0xf]
    %v3611 = vld [vmem:[%s7 + $0x2c] sm:$0xf]
    %v3612 = vld [vmem:[%s7 + $0x30] sm:$0xf]
    %v3613 = vld [vmem:[%s7 + $0x34] sm:$0xf]
    %v3614 = vld [vmem:[%s7 + $0x38] sm:$0xf]
    %v3615 = vld [vmem:[%s7 + $0x3c] sm:$0xf]
    %v3616 = vld [vmem:[%s7 + $0x40] sm:$0xf]
    %v3617 = vld [vmem:[%s7 + $0x44] sm:$0xf]
    %v3618 = vld [vmem:[%s7 + $0x48] sm:$0xf]
    %v3619 = vld [vmem:[%s7 + $0x4c] sm:$0xf]
    %v3620 = vld [vmem:[%s7 + $0x50] sm:$0xf]
    %v3621 = vld [vmem:[%s7 + $0x54] sm:$0xf]
    %v3622 = vld [vmem:[%s7 + $0x58] sm:$0xf]
    %v3623 = vld [vmem:[%s7 + $0x5c] sm:$0xf]
    %v3624 = vld [vmem:[%s7 + $0x60] sm:$0xf]
    %v3625 = vld [vmem:[%s7 + $0x64] sm:$0xf]
    %v3626 = vld [vmem:[%s7 + $0x68] sm:$0xf]
    %v3627 = vld [vmem:[%s7 + $0x6c] sm:$0xf]
    %v3628 = vld [vmem:[%s7 + $0x70] sm:$0xf]
    %v3629 = vld [vmem:[%s7 + $0x74] sm:$0xf]
    %v3630 = vld [vmem:[%s7 + $0x78] sm:$0xf]
    %v3631 = vld [vmem:[%s7 + $0x7c] sm:$0xf]
    %v3632 = vld [vmem:[%s7 + $0x80] sm:$0xf]
    %v3633 = vld [vmem:[%s7 + $0x84] sm:$0xf]
    %v3634 = vld [vmem:[%s7 + $0x88] sm:$0xf]
    %v3635 = vld [vmem:[%s7 + $0x8c] sm:$0xf]
    %v3636 = vld [vmem:[%s7 + $0x90] sm:$0xf]
    %v3637 = vld [vmem:[%s7 + $0x94] sm:$0xf]
    %v3638 = vld [vmem:[%s7 + $0x98] sm:$0xf]
    %v3639 = vld [vmem:[%s7 + $0x9c] sm:$0xf]
    %v3640 = vld [vmem:[%s7 + $0xa0] sm:$0xf]
    %v3641 = vld [vmem:[%s7 + $0xa4] sm:$0xf]
    %v3642 = vld [vmem:[%s7 + $0xa8] sm:$0xf]
    %v3643 = vld [vmem:[%s7 + $0xac] sm:$0xf]
    %v3644 = vld [vmem:[%s7 + $0xb0] sm:$0xf]
    %v3645 = vld [vmem:[%s7 + $0xb4] sm:$0xf]
    %v3646 = vld [vmem:[%s7 + $0xb8] sm:$0xf]
    %v3647 = vld [vmem:[%s7 + $0xbc] sm:$0xf]
    %v3648 = vld [vmem:[%s7 + $0xc0] sm:$0xf]
    %v3649 = vld [vmem:[%s7 + $0xc4] sm:$0xf]
    %v3650 = vld [vmem:[%s7 + $0xc8] sm:$0xf]
    %v3651 = vld [vmem:[%s7 + $0xcc] sm:$0xf]
    %v3652 = vld [vmem:[%s7 + $0xd0] sm:$0xf]
    %v3653 = vld [vmem:[%s7 + $0xd4] sm:$0xf]
    %v3654 = vld [vmem:[%s7 + $0xd8] sm:$0xf]
    %v3655 = vld [vmem:[%s7 + $0xdc] sm:$0xf]
    %v3656 = vld [vmem:[%s7 + $0xe0] sm:$0xf]
    %v3657 = vld [vmem:[%s7 + $0xe4] sm:$0xf]
    %v3658 = vld [vmem:[%s7 + $0xe8] sm:$0xf]
    %v3659 = vld [vmem:[%s7 + $0xec] sm:$0xf]
    %v3660 = vld [vmem:[%s7 + $0xf0] sm:$0xf]
    %v3661 = vld [vmem:[%s7 + $0xf4] sm:$0xf]
    %v3662 = vld [vmem:[%s7 + $0xf8] sm:$0xf]
    %v3663 = vld [vmem:[%s7 + $0xfc] sm:$0xf]
    %v3664 = vld [vmem:[%s8] sm:$0x1]
    %v3666 = vlaneseq
    %v3667 = vshrl.u32 %v3666, 7
    %v3668 = vsub.s32 0, %v3667
    %v3669 = vrot.slane %v3664, %v3668
    %v3735 = vunpack.c.l.b16 %v3600
    %v3736 = vunpack.c.l.b16 %v3601
    %v3737 = vunpack.c.l.b16 %v3602
    %v3738 = vunpack.c.l.b16 %v3603
    %v3739 = vunpack.c.l.b16 %v3604
    %v3740 = vunpack.c.l.b16 %v3605
    %v3741 = vunpack.c.l.b16 %v3606
    %v3742 = vunpack.c.l.b16 %v3607
    %v3743 = vunpack.c.l.b16 %v3608
    %v3744 = vunpack.c.l.b16 %v3609
    %v3745 = vunpack.c.l.b16 %v3610
    %v3746 = vunpack.c.l.b16 %v3611
    %v3747 = vunpack.c.l.b16 %v3612
    %v3748 = vunpack.c.l.b16 %v3613
    %v3749 = vunpack.c.l.b16 %v3614
    %v3750 = vunpack.c.l.b16 %v3615
    %v3751 = vunpack.c.l.b16 %v3616
    %v3752 = vunpack.c.l.b16 %v3617
    %v3753 = vunpack.c.l.b16 %v3618
    %v3754 = vunpack.c.l.b16 %v3619
    %v3755 = vunpack.c.l.b16 %v3620
    %v3756 = vunpack.c.l.b16 %v3621
    %v3757 = vunpack.c.l.b16 %v3622
    %v3758 = vunpack.c.l.b16 %v3623
    %v3759 = vunpack.c.l.b16 %v3624
    %v3760 = vunpack.c.l.b16 %v3625
    %v3761 = vunpack.c.l.b16 %v3626
    %v3762 = vunpack.c.l.b16 %v3627
    %v3763 = vunpack.c.l.b16 %v3628
    %v3764 = vunpack.c.l.b16 %v3629
    %v3765 = vunpack.c.l.b16 %v3630
    %v3766 = vunpack.c.l.b16 %v3631
    %v3767 = vunpack.c.l.b16 %v3632
    %v3768 = vunpack.c.l.b16 %v3633
    %v3769 = vunpack.c.l.b16 %v3634
    %v3770 = vunpack.c.l.b16 %v3635
    %v3771 = vunpack.c.l.b16 %v3636
    %v3772 = vunpack.c.l.b16 %v3637
    %v3773 = vunpack.c.l.b16 %v3638
    %v3774 = vunpack.c.l.b16 %v3639
    %v3775 = vunpack.c.l.b16 %v3640
    %v3776 = vunpack.c.l.b16 %v3641
    %v3777 = vunpack.c.l.b16 %v3642
    %v3778 = vunpack.c.l.b16 %v3643
    %v3779 = vunpack.c.l.b16 %v3644
    %v3780 = vunpack.c.l.b16 %v3645
    %v3781 = vunpack.c.l.b16 %v3646
    %v3782 = vunpack.c.l.b16 %v3647
    %v3783 = vunpack.c.l.b16 %v3648
    %v3784 = vunpack.c.l.b16 %v3649
    %v3785 = vunpack.c.l.b16 %v3650
    %v3786 = vunpack.c.l.b16 %v3651
    %v3787 = vunpack.c.l.b16 %v3652
    %v3788 = vunpack.c.l.b16 %v3653
    %v3789 = vunpack.c.l.b16 %v3654
    %v3790 = vunpack.c.l.b16 %v3655
    %v3791 = vunpack.c.l.b16 %v3656
    %v3792 = vunpack.c.l.b16 %v3657
    %v3793 = vunpack.c.l.b16 %v3658
    %v3794 = vunpack.c.l.b16 %v3659
    %v3795 = vunpack.c.l.b16 %v3660
    %v3796 = vunpack.c.l.b16 %v3661
    %v3797 = vunpack.c.l.b16 %v3662
    %v3798 = vunpack.c.l.b16 %v3663
    %v3799 = vpack.c.b16 %v3736, %v3735
    %v3800 = vpack.c.b16 %v3738, %v3737
    %v3801 = vpack.c.b16 %v3740, %v3739
    %v3802 = vpack.c.b16 %v3742, %v3741
    %v3803 = vpack.c.b16 %v3744, %v3743
    %v3804 = vpack.c.b16 %v3746, %v3745
    %v3805 = vpack.c.b16 %v3748, %v3747
    %v3806 = vpack.c.b16 %v3750, %v3749
    %v3807 = vpack.c.b16 %v3752, %v3751
    %v3808 = vpack.c.b16 %v3754, %v3753
    %v3809 = vpack.c.b16 %v3756, %v3755
    %v3810 = vpack.c.b16 %v3758, %v3757
    %v3811 = vpack.c.b16 %v3760, %v3759
    %v3812 = vpack.c.b16 %v3762, %v3761
    %v3813 = vpack.c.b16 %v3764, %v3763
    %v3814 = vpack.c.b16 %v3766, %v3765
    %v3815 = vpack.c.b16 %v3768, %v3767
    %v3816 = vpack.c.b16 %v3770, %v3769
    %v3817 = vpack.c.b16 %v3772, %v3771
    %v3818 = vpack.c.b16 %v3774, %v3773
    %v3819 = vpack.c.b16 %v3776, %v3775
    %v3820 = vpack.c.b16 %v3778, %v3777
    %v3821 = vpack.c.b16 %v3780, %v3779
    %v3822 = vpack.c.b16 %v3782, %v3781
    %v3823 = vpack.c.b16 %v3784, %v3783
    %v3824 = vpack.c.b16 %v3786, %v3785
    %v3825 = vpack.c.b16 %v3788, %v3787
    %v3826 = vpack.c.b16 %v3790, %v3789
    %v3827 = vpack.c.b16 %v3792, %v3791
    %v3828 = vpack.c.b16 %v3794, %v3793
    %v3829 = vpack.c.b16 %v3796, %v3795
    %v3830 = vpack.c.b16 %v3798, %v3797
    %3863 = vmatprep.subr.bf16.mxu0 0
    %3864 = vmatpush1.bf16.msra.mxu0 %v3806
    %3865 = vmatprep.subr.bf16.mxu0 0
    %3866 = vmatpush1.bf16.msra.mxu0 %v3805
    %3867 = vmatprep.subr.bf16.mxu0 0
    %3868 = vmatpush1.bf16.msra.mxu0 %v3804
    %3869 = vmatprep.subr.bf16.mxu0 0
    %3870 = vmatpush1.bf16.msra.mxu0 %v3803
    %3871 = vmatprep.subr.bf16.mxu0 0
    %3872 = vmatpush1.bf16.msra.mxu0 %v3802
    %3873 = vmatprep.subr.bf16.mxu0 0
    %3874 = vmatpush1.bf16.msra.mxu0 %v3801
    %3875 = vmatprep.subr.bf16.mxu0 0
    %3876 = vmatpush1.bf16.msra.mxu0 %v3800
    %3877 = vmatprep.subr.bf16.mxu0 0
    %3878 = vmatpush1.bf16.msra.mxu0 %v3799
    %3879 = vmatprep.subr.bf16.mxu0 0
    %3880 = vmatpush2.bf16.msra.mxu0 %v3814
    %3881 = vmatprep.subr.bf16.mxu0 0
    %3882 = vmatpush2.bf16.msra.mxu0 %v3813
    %3883 = vmatprep.subr.bf16.mxu0 0
    %3884 = vmatpush2.bf16.msra.mxu0 %v3812
    %3885 = vmatprep.subr.bf16.mxu0 0
    %3886 = vmatpush2.bf16.msra.mxu0 %v3811
    %3887 = vmatprep.subr.bf16.mxu0 0
    %3888 = vmatpush2.bf16.msra.mxu0 %v3810
    %3889 = vmatprep.subr.bf16.mxu0 0
    %3890 = vmatpush2.bf16.msra.mxu0 %v3809
    %3891 = vmatprep.subr.bf16.mxu0 0
    %3892 = vmatpush2.bf16.msra.mxu0 %v3808
    %3893 = vmatprep.subr.bf16.mxu0 0
    %3894 = vmatpush2.bf16.msra.mxu0 %v3807
    %3895 = vmatprep.mubr.bf16.mxu0 %v3597
    %3896 = vmatmul.mubr.bf16.gmra.mxu0 %v3596
    %v3897 = vpop.f32.mrf.mxu0
    %v3898 = vadd.f32 %v3669, %v3897
    %v3899 = vpop.f32.mrf.mxu0
    %v3900 = vpop.f32.mrf.mxu0
    %v3901 = vpop.f32.mrf.mxu0
    %3902 = vdwg.mxu0
    %3903 = vmatprep.subr.bf16.mxu0 0
    %3904 = vmatpush1.bf16.msra.mxu0 %v3822
    %3905 = vmatprep.subr.bf16.mxu0 0
    %3906 = vmatpush1.bf16.msra.mxu0 %v3821
    %3907 = vmatprep.subr.bf16.mxu0 0
    %3908 = vmatpush1.bf16.msra.mxu0 %v3820
    %3909 = vmatprep.subr.bf16.mxu0 0
    %3910 = vmatpush1.bf16.msra.mxu0 %v3819
    %3911 = vmatprep.subr.bf16.mxu0 0
    %3912 = vmatpush1.bf16.msra.mxu0 %v3818
    %3913 = vmatprep.subr.bf16.mxu0 0
    %3914 = vmatpush1.bf16.msra.mxu0 %v3817
    %3915 = vmatprep.subr.bf16.mxu0 0
    %3916 = vmatpush1.bf16.msra.mxu0 %v3816
    %3917 = vmatprep.subr.bf16.mxu0 0
    %3918 = vmatpush1.bf16.msra.mxu0 %v3815
    %3919 = vmatprep.subr.bf16.mxu0 0
    %3920 = vmatpush2.bf16.msra.mxu0 %v3830
    %3921 = vmatprep.subr.bf16.mxu0 0
    %3922 = vmatpush2.bf16.msra.mxu0 %v3829
    %3923 = vmatprep.subr.bf16.mxu0 0
    %3924 = vmatpush2.bf16.msra.mxu0 %v3828
    %3925 = vmatprep.subr.bf16.mxu0 0
    %3926 = vmatpush2.bf16.msra.mxu0 %v3827
    %3927 = vmatprep.subr.bf16.mxu0 0
    %3928 = vmatpush2.bf16.msra.mxu0 %v3826
    %3929 = vmatprep.subr.bf16.mxu0 0
    %3930 = vmatpush2.bf16.msra.mxu0 %v3825
    %3931 = vmatprep.subr.bf16.mxu0 0
    %3932 = vmatpush2.bf16.msra.mxu0 %v3824
    %3933 = vmatprep.subr.bf16.mxu0 0
    %3934 = vmatpush2.bf16.msra.mxu0 %v3823
    %3935 = vmatprep.mubr.bf16.mxu0 %v3599
    %3936 = vmatmul.mubr.bf16.gmra.mxu0 %v3598
    %v3937 = vpop.f32.mrf.mxu0
    %v3938 = vadd.f32 %v3898, %v3937
    %v3939 = vpop.f32.mrf.mxu0
    %v3940 = vpop.f32.mrf.mxu0
    %v3941 = vpop.f32.mrf.mxu0
    %3942 = vdwg.mxu0
    %v3943 = vmul.f32 %v3938, 1.442695
    %v3944 = vpow.pop %v3943
    %v3945 = vld [vmem:[%s9] sm:$0xff]
    %3947 = vrot.lane.b32.xlu0 %v3945, 8
    %v3948 = vpop.permute.xlu0 %3947
    %v3950 = vmul.f32 %v3944, %v3948
    %3952 = vrot.lane.b32.xlu0 %v3950, 120
    %v3953 = vpop.permute.xlu0 %3952
    %v3955 = vadd.f32 %v3938, %v3953
    %v3956 = vmul.f32 %v3944, %v3944
    %v3957 = vmul.f32 %v3938, %v3938
    %3959 = vrot.lane.b32.xlu0 %v3957, 8
    %v3960 = vpop.permute.xlu0 %3959
    %v3962 = vadd.f32 %v3956, %v3960
    %v3963 = vsub.f32 %v3962, %v3938
    %v3964 = vsub.f32 %v3963, 0.5
    %3966 = vrot.lane.b32.xlu0 %v3964, 120
    %v3967 = vpop.permute.xlu0 %3966
    %v3969 = vsel %vm306, %v3967, 0.0
    %3970 = vadd.xlane.f32.xlu0 %v3969
    %v3971 = vpop.xlane.xlu0 %3970
    %v3972 = vsel %vm306, %v3955, %v3971
    %vm3973 = vcmask 72704
    %v3974 = vsel %vm3973, %v3972, 0.0
    %3975 = vst [vmem:[%s10] sm:$0xff] %v3974
    // Predicated region
    $region50: #{variational_encoder.1} parent=1 // pred_check
      _
    $region51: #{variational_encoder.1} parent=1 // pred_check_branch
      %3977 = sbr.rel (0) target = $region53
    $region52: #{variational_encoder.1} parent=1 // pred_region
      _
    $region53: #{variational_encoder.1} parent=1 // pred_fallthru
      _
    // Predicated region
    $region54: #{variational_encoder.1} parent=1 // pred_check
      _
    $region55: #{variational_encoder.1} parent=1 // pred_check_branch
      %3979 = sbr.rel (0) target = $region57
    $region56: #{variational_encoder.1} parent=1 // pred_region
      _
    $region57: #{variational_encoder.1} parent=1 // pred_fallthru
      _
    %3980 = vsyncpa [#allocation3], 1
    %3981 = vsyncpa [#allocation5], 1

</llo_original>
